<compile_context>
chip_gen: v7x
topology: tpu7x:2x2x1
jax: 0.10.0
libtpu: 0.0.40
codegen_flags: <defaults>
</compile_context>

<pallas_src>
import jax
import jax.numpy as jnp
import numpy as np
from jax import lax
from jax.experimental import pallas as pl
from jax.experimental.pallas import tpu as pltpu

D_MODEL = 20          # feature_size (fixed by the module: nhead=20 must divide it)
N_HEAD = 20
HEAD_DIM = D_MODEL // N_HEAD   # == 1  -> attention scale == 1/sqrt(1) == 1
D_FF = 2048           # nn.TransformerEncoderLayer default dim_feedforward
LN_EPS = 1e-5         # nn.LayerNorm default eps

# Batches packed into the lane dim for the attention elementwise section.
P_PACK = 6                      # 6 * D_MODEL = 120 of 128 lanes
# Batch-tile target: TB*S = 768 rows -> full M tiles on the MXU; multiple of
# lcm(P_PACK, 8) = 24 so packing and the (tb, S) output block stay legal.
TB_TARGET = 96


def encoder_kernel(x_ref, wqkv_ref, bqkv_ref, wo_ref, w1_ref, b1_ref, w2_ref,
                   slab_ref, o_ref):
    # x_ref block: (TB, S, D) f32 -- TB batch elements, TB % P_PACK == 0.
    TB, S, D = x_ref.shape
    R = TB * S
    G = TB // P_PACK

    x = x_ref[...].reshape(R, D)                   # (R, D) rows, (batch, seq) order
    xb = x.astype(jnp.bfloat16)

    # packed small parameters: (8, D) f32 slab
    bo = slab_ref[0:1, :]                          # out_proj bias       (1, D)
    ln1w = slab_ref[1:2, :]                        # LayerNorm1 weight   (1, D)
    ln1b = slab_ref[2:3, :]                        # LayerNorm1 bias     (1, D)
    b2 = slab_ref[3:4, :]                          # linear2 bias        (1, D)
    ln2w = slab_ref[4:5, :]                        # LayerNorm2 weight   (1, D)
    ln2b = slab_ref[5:6, :]                        # LayerNorm2 bias     (1, D)
    wdec = slab_ref[6:7, :]                        # decoder weight row  (1, D)
    bdec = slab_ref[7:8, 0:1]                      # decoder bias        (1, 1)

    # ---- Q/K/V projections: three lane-aligned bf16 dots, f32 accumulation ----
    # (no fused (R, 3D) dot -> no lane-offset slicing of the result)
    q = jnp.dot(xb, wqkv_ref[0], preferred_element_type=jnp.float32) + bqkv_ref[0:1, :]
    k = jnp.dot(xb, wqkv_ref[1], preferred_element_type=jnp.float32) + bqkv_ref[1:2, :]
    v = jnp.dot(xb, wqkv_ref[2], preferred_element_type=jnp.float32) + bqkv_ref[2:3, :]

    # ---- pack P_PACK batch elements into the lane dim: (R, D) -> (G, S, P*D) ----
    # reshape splits the row (sublane) dim on an 8-row tile boundary (S == 8-row
    # tiles per (g,p)); the lane concat is a cheap XLU shift on a small tensor.
    def pack(t):
        t = t.reshape(G, P_PACK, S, D)
        return jnp.concatenate([t[:, p] for p in range(P_PACK)], axis=-1)

    qp, kp, vp = pack(q), pack(k), pack(v)         # (G, S, P*D), 120/128 lanes

    # ---- multi-head self-attention (head_dim == 1, so head h == channel h) ----
    # scores[g,i,j,c] = q[g,i,c] * k[g,j,c]   (scale == 1 since head_dim == 1)
    scores = qp[:, :, None, :] * kp[:, None, :, :]           # (G, S, S, P*D)

    # causal mask from a tiny (1,S,S,1) index compare (broadcast over G, lanes);
    # large finite negative instead of -inf (robust even for fully-masked rows).
    row = lax.broadcasted_iota(jnp.int32, (1, S, S, 1), 1)
    col = lax.broadcasted_iota(jnp.int32, (1, S, S, 1), 2)
    scores = jnp.where(col <= row, scores, jnp.float32(-1e30))

    # softmax over the key axis (axis=2); diagonal is never masked.
    m = jnp.max(scores, axis=2, keepdims=True)     # (G, S, 1, P*D)
    p = jnp.exp(scores - m)
    denom = jnp.sum(p, axis=2, keepdims=True)
    probs = p * pl.reciprocal(denom, approx=True)  # EUP recip instead of VALU div

    attn_p = jnp.sum(probs * vp[:, None, :, :], axis=2)      # (G, S, P*D)

    # ---- unpack back to (R, D) rows ----
    parts = [attn_p[:, :, i * D:(i + 1) * D] for i in range(P_PACK)]   # (G,S,D) each
    attn = jnp.stack(parts, axis=1).reshape(R, D)                       # (G,P,S,D)->(R,D)

    attn = jnp.dot(attn.astype(jnp.bfloat16), wo_ref[...],
                   preferred_element_type=jnp.float32) + bo

    # ---- residual + LayerNorm1 (post-norm), f32 ----
    y = x + attn
    mu = jnp.mean(y, axis=-1, keepdims=True)
    var = jnp.mean((y - mu) ** 2, axis=-1, keepdims=True)
    y = (y - mu) * lax.rsqrt(var + LN_EPS) * ln1w + ln1b

    # ---- feed-forward (ReLU), bf16 matmuls with f32 accumulation ----
    # TODO(synk): D_FF chunking (review, v7x) skipped -- live (R,2048) f32 is
    # <= 6 MiB at TB<=96, comfortably under the 32 MiB VMEM limit set below.
    h = jnp.dot(y.astype(jnp.bfloat16), w1_ref[...],
                preferred_element_type=jnp.float32) + b1_ref[...]
    h = jnp.maximum(h, 0.0)
    f = jnp.dot(h.astype(jnp.bfloat16), w2_ref[...],
                preferred_element_type=jnp.float32) + b2

    # ---- residual + LayerNorm2, f32 ----
    z = y + f
    mu2 = jnp.mean(z, axis=-1, keepdims=True)
    var2 = jnp.mean((z - mu2) ** 2, axis=-1, keepdims=True)
    z = (z - mu2) * lax.rsqrt(var2 + LN_EPS) * ln2w + ln2b

    # ---- decoder: Linear(D, 1) as a lane reduction (no N=1 MXU pass) ----
    z3 = z.reshape(TB, S, D)
    dec = jnp.sum(z3 * wdec[None, :, :], axis=-1) + bdec      # (TB, S)
    o_ref[...] = dec


def _choose_tb(B, tb=None):
    """Pick a batch tile: multiple of P_PACK (lane packing); multiple of 24 when
    the grid has >1 step (output-block rule); >=2 steps when B allows (v7x)."""
    if tb is None:
        if B <= 4 * P_PACK:
            tb = P_PACK * pl.cdiv(B, P_PACK)                   # single small tile
        else:
            tb = min(TB_TARGET, 24 * pl.cdiv(B, 2 * 24))       # aim for >= 2 steps
    else:
        tb = P_PACK * pl.cdiv(tb, P_PACK)
        if pl.cdiv(B, tb) > 1 and tb % 8 != 0:
            tb = 24 * pl.cdiv(tb, 24)
    return tb


def transformer_forward(src, params, tb=None):
    """src: (S, B, D) float32  ->  (S, B, 1) float32 (matches the PyTorch module)."""
    S, B, D = src.shape
    x = jnp.transpose(src, (1, 0, 2))              # (B, S, D)

    tb = _choose_tb(B, tb)
    assert tb % P_PACK == 0
    nb = pl.cdiv(B, tb)                            # number of batch tiles
    B_pad = nb * tb
    if B_pad != B:                                 # pad batch to a tile multiple
        x = jnp.pad(x, ((0, B_pad - B), (0, 0), (0, 0)))

    # Pack the 10 tiny bias / LayerNorm / decoder vectors into one (8, D) f32 slab.
    slab = jnp.zeros((8, D), jnp.float32)
    slab = slab.at[0].set(params["out_proj_bias"])
    slab = slab.at[1].set(params["ln1_weight"])
    slab = slab.at[2].set(params["ln1_bias"])
    slab = slab.at[3].set(params["linear2_bias"])
    slab = slab.at[4].set(params["ln2_weight"])
    slab = slab.at[5].set(params["ln2_bias"])
    slab = slab.at[6].set(params["decoder_weight"][0])
    slab = slab.at[7, 0].set(params["decoder_bias"][0])

    # Pre-transpose weights so the kernel does y @ W; matmul weights in bf16.
    w_in = params["in_proj_weight"]                # (3D, D): rows = [Wq; Wk; Wv]
    wqkv = jnp.stack([w_in[0:D].T, w_in[D:2 * D].T, w_in[2 * D:].T]
                     ).astype(jnp.bfloat16)        # (3, D, D)
    weights = [
        wqkv,                                                   # (3, D, D) bf16
        params["in_proj_bias"].reshape(3, D),                   # (3, D)    f32
        params["out_proj_weight"].T.astype(jnp.bfloat16),       # (D, D)    bf16
        params["linear1_weight"].T.astype(jnp.bfloat16),        # (D, D_FF) bf16
        params["linear1_bias"][None, :],                        # (1, D_FF) f32
        params["linear2_weight"].T.astype(jnp.bfloat16),        # (D_FF, D) bf16
        slab,                                                   # (8, D)    f32
    ]
    # Constant index maps -> weights stay VMEM-resident across the grid.
    # (Buffered(1) single-buffering from the review skipped: VMEM headroom is ample.)
    wspecs = [pl.BlockSpec(w.shape, lambda b, _n=w.ndim: (0,) * _n) for w in weights]

    out = pl.pallas_call(
        encoder_kernel,
        out_shape=jax.ShapeDtypeStruct((B_pad, S), jnp.float32),
        grid=(nb,),
        in_specs=[pl.BlockSpec((tb, S, D), lambda b: (b, 0, 0))] + wspecs,
        out_specs=pl.BlockSpec((tb, S), lambda b: (b, 0)),
        compiler_params=pltpu.CompilerParams(
            dimension_semantics=("parallel",),
            vmem_limit_bytes=32 * 1024 * 1024),    # above v5e's 16 MiB scoped default
    )(x, *weights)

    out = out[:B]                                  # drop batch padding -> (B, S)
    return jnp.transpose(out, (1, 0))[:, :, None]  # (S, B, 1)


# ------------------------- pure-JAX f32 reference ------------------------------
def _layer_norm(x, w, b):
    mu = jnp.mean(x, axis=-1, keepdims=True)
    var = jnp.mean((x - mu) ** 2, axis=-1, keepdims=True)
    return (x - mu) / jnp.sqrt(var + LN_EPS) * w + b


def reference_forward(src, params):
    S, B, D = src.shape
    x = src                                                    # (S, B, D)
    qkv = x @ params["in_proj_weight"].T + params["in_proj_bias"]
    q, k, v = qkv[..., :D], qkv[..., D:2 * D], qkv[..., 2 * D:]
    mask = jnp.where(jnp.tril(jnp.ones((S, S), dtype=bool)), 0.0, -jnp.inf)
    scores = jnp.einsum("ibh,jbh->bhij", q, k) + mask           # head_dim == 1
    probs = jax.nn.softmax(scores, axis=-1)
    attn = jnp.einsum("bhij,jbh->ibh", probs, v)
    attn = attn @ params["out_proj_weight"].T + params["out_proj_bias"]
    y = _layer_norm(x + attn, params["ln1_weight"], params["ln1_bias"])
    h = jax.nn.relu(y @ params["linear1_weight"].T + params["linear1_bias"])
    f = h @ params["linear2_weight"].T + params["linear2_bias"]
    z = _layer_norm(y + f, params["ln2_weight"], params["ln2_bias"])
    return z @ params["decoder_weight"].T + params["decoder_bias"]


# ------------------------- deterministic parameter init -----------------------
def init_params(key):
    ks = jax.random.split(key, 8)
    u = lambda k, shape, s: jax.random.uniform(k, shape, jnp.float32, -s, s)
    D, F = D_MODEL, D_FF
    return {
        "in_proj_weight": u(ks[0], (3 * D, D), 0.2),
        "in_proj_bias": u(ks[1], (3 * D,), 0.1),
        "out_proj_weight": u(ks[2], (D, D), 0.2),
        "out_proj_bias": jnp.zeros((D,), jnp.float32),
        "ln1_weight": jnp.ones((D,), jnp.float32),
        "ln1_bias": jnp.zeros((D,), jnp.float32),
        "linear1_weight": u(ks[3], (F, D), 0.05),
        "linear1_bias": u(ks[4], (F,), 0.05),
        "linear2_weight": u(ks[5], (D, F), 0.05),
        "linear2_bias": u(ks[6], (D,), 0.05),
        "ln2_weight": jnp.ones((D,), jnp.float32),
        "ln2_bias": jnp.zeros((D,), jnp.float32),
        "decoder_weight": u(ks[7], (1, D), 0.3),          # init_weights(): U(-0.3, 0.3)
        "decoder_bias": jnp.zeros((1,), jnp.float32),     # init_weights(): zero
    }


if __name__ == "__main__":
    key = jax.random.PRNGKey(0)
    k_src, k_par, k_src2 = jax.random.split(key, 3)
    params = init_params(k_par)

    # bf16 matmul path vs. f32 reference -> bf16-appropriate tolerance.
    RTOL = ATOL = 5e-2

    # Small config matching the module's convention: (seq, batch, feature).
    S, B = 8, 2
    src = jax.random.normal(k_src, (S, B, D_MODEL), jnp.float32)
    out = jax.block_until_ready(transformer_forward(src, params))
    ref = jax.block_until_ready(reference_forward(src, params))
    assert out.shape == (S, B, 1)
    np.testing.assert_allclose(np.asarray(out), np.asarray(ref), rtol=RTOL, atol=ATOL)

    # Larger batch exercises lane packing with multiple groups, batch padding,
    # and a multi-step ("parallel") grid (nb=2 -> both v7x cores get work).
    S2, B2 = 8, 48
    src2 = jax.random.normal(k_src2, (S2, B2, D_MODEL), jnp.float32)
    out2 = jax.block_until_ready(transformer_forward(src2, params))
    ref2 = jax.block_until_ready(reference_forward(src2, params))
    assert out2.shape == (S2, B2, 1)
    np.testing.assert_allclose(np.asarray(out2), np.asarray(ref2), rtol=RTOL, atol=ATOL)

    print("KERNEL_OK")
</pallas_src>

<mosaic_0001>
module attributes {stable_mosaic.version = 11 : i64} {
  func.func @encoder_kernel(%arg0: i32, %arg1: memref<6x8x20xf32, #tpu.memory_space<vmem>>, %arg2: memref<3x20x20xbf16, #tpu.memory_space<vmem>>, %arg3: memref<3x20xf32, #tpu.memory_space<vmem>>, %arg4: memref<20x20xbf16, #tpu.memory_space<vmem>>, %arg5: memref<20x2048xbf16, #tpu.memory_space<vmem>>, %arg6: memref<1x2048xf32, #tpu.memory_space<vmem>>, %arg7: memref<2048x20xbf16, #tpu.memory_space<vmem>>, %arg8: memref<8x20xf32, #tpu.memory_space<vmem>>, %arg9: memref<6x8xf32, #tpu.memory_space<vmem>>) attributes {dimension_semantics = [#tpu.dimension_semantics<parallel>], iteration_bounds = array<i64: 1>, scalar_prefetch = 0 : i64, scratch_operands = 0 : i64, tpu.core_type = #tpu.core_type<tc>, window_params = [{transform_indices = @transform_0, window_bounds = array<i64: 6, 8, 20>}, {pipeline_mode = #tpu.pipeline_mode<synchronous>, transform_indices = @transform_1, window_bounds = array<i64: 3, 20, 20>}, {pipeline_mode = #tpu.pipeline_mode<synchronous>, transform_indices = @transform_2, window_bounds = array<i64: 3, 20>}, {pipeline_mode = #tpu.pipeline_mode<synchronous>, transform_indices = @transform_3, window_bounds = array<i64: 20, 20>}, {pipeline_mode = #tpu.pipeline_mode<synchronous>, transform_indices = @transform_4, window_bounds = array<i64: 20, 2048>}, {pipeline_mode = #tpu.pipeline_mode<synchronous>, transform_indices = @transform_5, window_bounds = array<i64: 1, 2048>}, {pipeline_mode = #tpu.pipeline_mode<synchronous>, transform_indices = @transform_6, window_bounds = array<i64: 2048, 20>}, {pipeline_mode = #tpu.pipeline_mode<synchronous>, transform_indices = @transform_7, window_bounds = array<i64: 8, 20>}, {transform_indices = @transform_8, window_bounds = array<i64: 6, 8>}]} {
    %c0 = arith.constant 0 : index
    %c0_0 = arith.constant 0 : index
    %c0_1 = arith.constant 0 : index
    %0 = vector.load %arg1[%c0, %c0_0, %c0_1] : memref<6x8x20xf32, #tpu.memory_space<vmem>>, vector<6x8x20xf32>
    %1 = vector.shape_cast %0 : vector<6x8x20xf32> to vector<48x20xf32>
    %2 = arith.truncf %1 : vector<48x20xf32> to vector<48x20xbf16>
    %c0_2 = arith.constant 0 : index
    %c0_3 = arith.constant 0 : index
    %3 = vector.load %arg8[%c0_2, %c0_3] : memref<8x20xf32, #tpu.memory_space<vmem>>, vector<1x20xf32>
    %c1 = arith.constant 1 : index
    %c0_4 = arith.constant 0 : index
    %4 = vector.load %arg8[%c1, %c0_4] : memref<8x20xf32, #tpu.memory_space<vmem>>, vector<1x20xf32>
    %c2 = arith.constant 2 : index
    %c0_5 = arith.constant 0 : index
    %5 = vector.load %arg8[%c2, %c0_5] : memref<8x20xf32, #tpu.memory_space<vmem>>, vector<1x20xf32>
    %c3 = arith.constant 3 : index
    %c0_6 = arith.constant 0 : index
    %6 = vector.load %arg8[%c3, %c0_6] : memref<8x20xf32, #tpu.memory_space<vmem>>, vector<1x20xf32>
    %c4 = arith.constant 4 : index
    %c0_7 = arith.constant 0 : index
    %7 = vector.load %arg8[%c4, %c0_7] : memref<8x20xf32, #tpu.memory_space<vmem>>, vector<1x20xf32>
    %c5 = arith.constant 5 : index
    %c0_8 = arith.constant 0 : index
    %8 = vector.load %arg8[%c5, %c0_8] : memref<8x20xf32, #tpu.memory_space<vmem>>, vector<1x20xf32>
    %c6 = arith.constant 6 : index
    %c0_9 = arith.constant 0 : index
    %9 = vector.load %arg8[%c6, %c0_9] : memref<8x20xf32, #tpu.memory_space<vmem>>, vector<1x20xf32>
    %c7 = arith.constant 7 : index
    %c0_10 = arith.constant 0 : index
    %10 = vector.load %arg8[%c7, %c0_10] : memref<8x20xf32, #tpu.memory_space<vmem>>, vector<1x1xf32>
    %c0_11 = arith.constant 0 : index
    %c0_12 = arith.constant 0 : index
    %c0_13 = arith.constant 0 : index
    %11 = vector.load %arg2[%c0_11, %c0_12, %c0_13] : memref<3x20x20xbf16, #tpu.memory_space<vmem>>, vector<1x20x20xbf16>
    %12 = vector.shape_cast %11 : vector<1x20x20xbf16> to vector<20x20xbf16>
    %cst = arith.constant dense<0.000000e+00> : vector<48x20xf32>
    %13 = tpu.matmul %2, %12, %cst {dimension_numbers = #tpu.dot_dimension_numbers<[1], [0], [0], [1], [0, 0, 1, 1], [], []>} : vector<48x20xbf16>, vector<20x20xbf16>, vector<48x20xf32> -> vector<48x20xf32>
    %c0_14 = arith.constant 0 : index
    %c0_15 = arith.constant 0 : index
    %14 = vector.load %arg3[%c0_14, %c0_15] : memref<3x20xf32, #tpu.memory_space<vmem>>, vector<1x20xf32>
    %15 = vector.broadcast %14 : vector<1x20xf32> to vector<48x20xf32>
    %16 = arith.addf %13, %15 : vector<48x20xf32>
    %c1_16 = arith.constant 1 : index
    %c0_17 = arith.constant 0 : index
    %c0_18 = arith.constant 0 : index
    %17 = vector.load %arg2[%c1_16, %c0_17, %c0_18] : memref<3x20x20xbf16, #tpu.memory_space<vmem>>, vector<1x20x20xbf16>
    %18 = vector.shape_cast %17 : vector<1x20x20xbf16> to vector<20x20xbf16>
    %cst_19 = arith.constant dense<0.000000e+00> : vector<48x20xf32>
    %19 = tpu.matmul %2, %18, %cst_19 {dimension_numbers = #tpu.dot_dimension_numbers<[1], [0], [0], [1], [0, 0, 1, 1], [], []>} : vector<48x20xbf16>, vector<20x20xbf16>, vector<48x20xf32> -> vector<48x20xf32>
    %c1_20 = arith.constant 1 : index
    %c0_21 = arith.constant 0 : index
    %20 = vector.load %arg3[%c1_20, %c0_21] : memref<3x20xf32, #tpu.memory_space<vmem>>, vector<1x20xf32>
    %21 = vector.broadcast %20 : vector<1x20xf32> to vector<48x20xf32>
    %22 = arith.addf %19, %21 : vector<48x20xf32>
    %c2_22 = arith.constant 2 : index
    %c0_23 = arith.constant 0 : index
    %c0_24 = arith.constant 0 : index
    %23 = vector.load %arg2[%c2_22, %c0_23, %c0_24] : memref<3x20x20xbf16, #tpu.memory_space<vmem>>, vector<1x20x20xbf16>
    %24 = vector.shape_cast %23 : vector<1x20x20xbf16> to vector<20x20xbf16>
    %cst_25 = arith.constant dense<0.000000e+00> : vector<48x20xf32>
    %25 = tpu.matmul %2, %24, %cst_25 {dimension_numbers = #tpu.dot_dimension_numbers<[1], [0], [0], [1], [0, 0, 1, 1], [], []>} : vector<48x20xbf16>, vector<20x20xbf16>, vector<48x20xf32> -> vector<48x20xf32>
    %c2_26 = arith.constant 2 : index
    %c0_27 = arith.constant 0 : index
    %26 = vector.load %arg3[%c2_26, %c0_27] : memref<3x20xf32, #tpu.memory_space<vmem>>, vector<1x20xf32>
    %27 = vector.broadcast %26 : vector<1x20xf32> to vector<48x20xf32>
    %28 = arith.addf %25, %27 : vector<48x20xf32>
    %29 = vector.shape_cast %16 : vector<48x20xf32> to vector<1x6x8x20xf32>
    %30 = vector.extract_strided_slice %29 {offsets = [0, 0, 0, 0], sizes = [1, 1, 8, 20], strides = [1, 1, 1, 1]} : vector<1x6x8x20xf32> to vector<1x1x8x20xf32>
    %31 = vector.shape_cast %30 : vector<1x1x8x20xf32> to vector<1x8x20xf32>
    %32 = vector.extract_strided_slice %29 {offsets = [0, 1, 0, 0], sizes = [1, 1, 8, 20], strides = [1, 1, 1, 1]} : vector<1x6x8x20xf32> to vector<1x1x8x20xf32>
    %33 = vector.shape_cast %32 : vector<1x1x8x20xf32> to vector<1x8x20xf32>
    %34 = vector.extract_strided_slice %29 {offsets = [0, 2, 0, 0], sizes = [1, 1, 8, 20], strides = [1, 1, 1, 1]} : vector<1x6x8x20xf32> to vector<1x1x8x20xf32>
    %35 = vector.shape_cast %34 : vector<1x1x8x20xf32> to vector<1x8x20xf32>
    %36 = vector.extract_strided_slice %29 {offsets = [0, 3, 0, 0], sizes = [1, 1, 8, 20], strides = [1, 1, 1, 1]} : vector<1x6x8x20xf32> to vector<1x1x8x20xf32>
    %37 = vector.shape_cast %36 : vector<1x1x8x20xf32> to vector<1x8x20xf32>
    %38 = vector.extract_strided_slice %29 {offsets = [0, 4, 0, 0], sizes = [1, 1, 8, 20], strides = [1, 1, 1, 1]} : vector<1x6x8x20xf32> to vector<1x1x8x20xf32>
    %39 = vector.shape_cast %38 : vector<1x1x8x20xf32> to vector<1x8x20xf32>
    %40 = vector.extract_strided_slice %29 {offsets = [0, 5, 0, 0], sizes = [1, 1, 8, 20], strides = [1, 1, 1, 1]} : vector<1x6x8x20xf32> to vector<1x1x8x20xf32>
    %41 = vector.shape_cast %40 : vector<1x1x8x20xf32> to vector<1x8x20xf32>
    %42 = tpu.concatenate %31, %33, %35, %37, %39, %41 in 2 : vector<1x8x20xf32>, vector<1x8x20xf32>, vector<1x8x20xf32>, vector<1x8x20xf32>, vector<1x8x20xf32>, vector<1x8x20xf32> -> vector<1x8x120xf32>
    %43 = vector.shape_cast %22 : vector<48x20xf32> to vector<1x6x8x20xf32>
    %44 = vector.extract_strided_slice %43 {offsets = [0, 0, 0, 0], sizes = [1, 1, 8, 20], strides = [1, 1, 1, 1]} : vector<1x6x8x20xf32> to vector<1x1x8x20xf32>
    %45 = vector.shape_cast %44 : vector<1x1x8x20xf32> to vector<1x8x20xf32>
    %46 = vector.extract_strided_slice %43 {offsets = [0, 1, 0, 0], sizes = [1, 1, 8, 20], strides = [1, 1, 1, 1]} : vector<1x6x8x20xf32> to vector<1x1x8x20xf32>
    %47 = vector.shape_cast %46 : vector<1x1x8x20xf32> to vector<1x8x20xf32>
    %48 = vector.extract_strided_slice %43 {offsets = [0, 2, 0, 0], sizes = [1, 1, 8, 20], strides = [1, 1, 1, 1]} : vector<1x6x8x20xf32> to vector<1x1x8x20xf32>
    %49 = vector.shape_cast %48 : vector<1x1x8x20xf32> to vector<1x8x20xf32>
    %50 = vector.extract_strided_slice %43 {offsets = [0, 3, 0, 0], sizes = [1, 1, 8, 20], strides = [1, 1, 1, 1]} : vector<1x6x8x20xf32> to vector<1x1x8x20xf32>
    %51 = vector.shape_cast %50 : vector<1x1x8x20xf32> to vector<1x8x20xf32>
    %52 = vector.extract_strided_slice %43 {offsets = [0, 4, 0, 0], sizes = [1, 1, 8, 20], strides = [1, 1, 1, 1]} : vector<1x6x8x20xf32> to vector<1x1x8x20xf32>
    %53 = vector.shape_cast %52 : vector<1x1x8x20xf32> to vector<1x8x20xf32>
    %54 = vector.extract_strided_slice %43 {offsets = [0, 5, 0, 0], sizes = [1, 1, 8, 20], strides = [1, 1, 1, 1]} : vector<1x6x8x20xf32> to vector<1x1x8x20xf32>
    %55 = vector.shape_cast %54 : vector<1x1x8x20xf32> to vector<1x8x20xf32>
    %56 = tpu.concatenate %45, %47, %49, %51, %53, %55 in 2 : vector<1x8x20xf32>, vector<1x8x20xf32>, vector<1x8x20xf32>, vector<1x8x20xf32>, vector<1x8x20xf32>, vector<1x8x20xf32> -> vector<1x8x120xf32>
    %57 = vector.shape_cast %28 : vector<48x20xf32> to vector<1x6x8x20xf32>
    %58 = vector.extract_strided_slice %57 {offsets = [0, 0, 0, 0], sizes = [1, 1, 8, 20], strides = [1, 1, 1, 1]} : vector<1x6x8x20xf32> to vector<1x1x8x20xf32>
    %59 = vector.shape_cast %58 : vector<1x1x8x20xf32> to vector<1x8x20xf32>
    %60 = vector.extract_strided_slice %57 {offsets = [0, 1, 0, 0], sizes = [1, 1, 8, 20], strides = [1, 1, 1, 1]} : vector<1x6x8x20xf32> to vector<1x1x8x20xf32>
    %61 = vector.shape_cast %60 : vector<1x1x8x20xf32> to vector<1x8x20xf32>
    %62 = vector.extract_strided_slice %57 {offsets = [0, 2, 0, 0], sizes = [1, 1, 8, 20], strides = [1, 1, 1, 1]} : vector<1x6x8x20xf32> to vector<1x1x8x20xf32>
    %63 = vector.shape_cast %62 : vector<1x1x8x20xf32> to vector<1x8x20xf32>
    %64 = vector.extract_strided_slice %57 {offsets = [0, 3, 0, 0], sizes = [1, 1, 8, 20], strides = [1, 1, 1, 1]} : vector<1x6x8x20xf32> to vector<1x1x8x20xf32>
    %65 = vector.shape_cast %64 : vector<1x1x8x20xf32> to vector<1x8x20xf32>
    %66 = vector.extract_strided_slice %57 {offsets = [0, 4, 0, 0], sizes = [1, 1, 8, 20], strides = [1, 1, 1, 1]} : vector<1x6x8x20xf32> to vector<1x1x8x20xf32>
    %67 = vector.shape_cast %66 : vector<1x1x8x20xf32> to vector<1x8x20xf32>
    %68 = vector.extract_strided_slice %57 {offsets = [0, 5, 0, 0], sizes = [1, 1, 8, 20], strides = [1, 1, 1, 1]} : vector<1x6x8x20xf32> to vector<1x1x8x20xf32>
    %69 = vector.shape_cast %68 : vector<1x1x8x20xf32> to vector<1x8x20xf32>
    %70 = tpu.concatenate %59, %61, %63, %65, %67, %69 in 2 : vector<1x8x20xf32>, vector<1x8x20xf32>, vector<1x8x20xf32>, vector<1x8x20xf32>, vector<1x8x20xf32>, vector<1x8x20xf32> -> vector<1x8x120xf32>
    %71 = vector.shape_cast %42 : vector<1x8x120xf32> to vector<1x8x1x120xf32>
    %72 = vector.shape_cast %56 : vector<1x8x120xf32> to vector<1x1x8x120xf32>
    %73 = vector.broadcast %71 : vector<1x8x1x120xf32> to vector<1x8x8x120xf32>
    %74 = vector.broadcast %72 : vector<1x1x8x120xf32> to vector<1x8x8x120xf32>
    %75 = arith.mulf %73, %74 : vector<1x8x8x120xf32>
    %76 = tpu.iota {dimensions = array<i32: 1>} : vector<1x8x8x1xi32>
    %77 = tpu.iota {dimensions = array<i32: 2>} : vector<1x8x8x1xi32>
    %78 = arith.cmpi sle, %77, %76 : vector<1x8x8x1xi32>
    %cst_28 = arith.constant -1.000000e+30 : f32
    %79 = vector.shape_cast %78 : vector<1x8x8x1xi1> to vector<1x8x8x1xi1>
    %80 = vector.broadcast %79 : vector<1x8x8x1xi1> to vector<1x8x8x120xi1>
    %81 = vector.broadcast %cst_28 : f32 to vector<1x8x8x120xf32>
    %82 = arith.select %80, %75, %81 : vector<1x8x8x120xi1>, vector<1x8x8x120xf32>
    %cst_29 = arith.constant dense<0xFF800000> : vector<1x8x120xf32>
    %83 = vector.multi_reduction <maximumf>, %82, %cst_29 [2] : vector<1x8x8x120xf32> to vector<1x8x120xf32>
    %84 = vector.shape_cast %83 : vector<1x8x120xf32> to vector<1x8x1x120xf32>
    %85 = vector.broadcast %84 : vector<1x8x1x120xf32> to vector<1x8x8x120xf32>
    %86 = arith.subf %82, %85 : vector<1x8x8x120xf32>
    %87 = math.exp %86 : vector<1x8x8x120xf32>
    %cst_30 = arith.constant dense<0.000000e+00> : vector<1x8x120xf32>
    %88 = vector.multi_reduction <add>, %87, %cst_30 [2] : vector<1x8x8x120xf32> to vector<1x8x120xf32>
    %89 = vector.shape_cast %88 : vector<1x8x120xf32> to vector<1x8x1x120xf32>
    %90 = tpu.reciprocal %89 {approx = true} : vector<1x8x1x120xf32> -> vector<1x8x1x120xf32>
    %91 = vector.broadcast %90 : vector<1x8x1x120xf32> to vector<1x8x8x120xf32>
    %92 = arith.mulf %87, %91 : vector<1x8x8x120xf32>
    %93 = vector.shape_cast %70 : vector<1x8x120xf32> to vector<1x1x8x120xf32>
    %94 = vector.broadcast %93 : vector<1x1x8x120xf32> to vector<1x8x8x120xf32>
    %95 = arith.mulf %92, %94 : vector<1x8x8x120xf32>
    %cst_31 = arith.constant dense<0.000000e+00> : vector<1x8x120xf32>
    %96 = vector.multi_reduction <add>, %95, %cst_31 [2] : vector<1x8x8x120xf32> to vector<1x8x120xf32>
    %97 = vector.extract_strided_slice %96 {offsets = [0, 0, 0], sizes = [1, 8, 20], strides = [1, 1, 1]} : vector<1x8x120xf32> to vector<1x8x20xf32>
    %98 = vector.extract_strided_slice %96 {offsets = [0, 0, 20], sizes = [1, 8, 20], strides = [1, 1, 1]} : vector<1x8x120xf32> to vector<1x8x20xf32>
    %99 = vector.extract_strided_slice %96 {offsets = [0, 0, 40], sizes = [1, 8, 20], strides = [1, 1, 1]} : vector<1x8x120xf32> to vector<1x8x20xf32>
    %100 = vector.extract_strided_slice %96 {offsets = [0, 0, 60], sizes = [1, 8, 20], strides = [1, 1, 1]} : vector<1x8x120xf32> to vector<1x8x20xf32>
    %101 = vector.extract_strided_slice %96 {offsets = [0, 0, 80], sizes = [1, 8, 20], strides = [1, 1, 1]} : vector<1x8x120xf32> to vector<1x8x20xf32>
    %102 = vector.extract_strided_slice %96 {offsets = [0, 0, 100], sizes = [1, 8, 20], strides = [1, 1, 1]} : vector<1x8x120xf32> to vector<1x8x20xf32>
    %103 = vector.shape_cast %97 : vector<1x8x20xf32> to vector<1x1x8x20xf32>
    %104 = vector.shape_cast %98 : vector<1x8x20xf32> to vector<1x1x8x20xf32>
    %105 = vector.shape_cast %99 : vector<1x8x20xf32> to vector<1x1x8x20xf32>
    %106 = vector.shape_cast %100 : vector<1x8x20xf32> to vector<1x1x8x20xf32>
    %107 = vector.shape_cast %101 : vector<1x8x20xf32> to vector<1x1x8x20xf32>
    %108 = vector.shape_cast %102 : vector<1x8x20xf32> to vector<1x1x8x20xf32>
    %109 = tpu.concatenate %103, %104, %105, %106, %107, %108 in 1 : vector<1x1x8x20xf32>, vector<1x1x8x20xf32>, vector<1x1x8x20xf32>, vector<1x1x8x20xf32>, vector<1x1x8x20xf32>, vector<1x1x8x20xf32> -> vector<1x6x8x20xf32>
    %110 = vector.shape_cast %109 : vector<1x6x8x20xf32> to vector<48x20xf32>
    %111 = arith.truncf %110 : vector<48x20xf32> to vector<48x20xbf16>
    %c0_32 = arith.constant 0 : index
    %c0_33 = arith.constant 0 : index
    %112 = vector.load %arg4[%c0_32, %c0_33] : memref<20x20xbf16, #tpu.memory_space<vmem>>, vector<20x20xbf16>
    %cst_34 = arith.constant dense<0.000000e+00> : vector<48x20xf32>
    %113 = tpu.matmul %111, %112, %cst_34 {dimension_numbers = #tpu.dot_dimension_numbers<[1], [0], [0], [1], [0, 0, 1, 1], [], []>} : vector<48x20xbf16>, vector<20x20xbf16>, vector<48x20xf32> -> vector<48x20xf32>
    %114 = vector.broadcast %3 : vector<1x20xf32> to vector<48x20xf32>
    %115 = arith.addf %113, %114 : vector<48x20xf32>
    %116 = arith.addf %1, %115 : vector<48x20xf32>
    %cst_35 = arith.constant dense<0.000000e+00> : vector<48xf32>
    %117 = vector.multi_reduction <add>, %116, %cst_35 [1] : vector<48x20xf32> to vector<48xf32>
    %118 = vector.shape_cast %117 : vector<48xf32> to vector<48x1xf32>
    %cst_36 = arith.constant 2.000000e+01 : f32
    %119 = vector.broadcast %cst_36 : f32 to vector<48x1xf32>
    %120 = arith.divf %118, %119 : vector<48x1xf32>
    %121 = vector.broadcast %120 : vector<48x1xf32> to vector<48x20xf32>
    %122 = arith.subf %116, %121 : vector<48x20xf32>
    %123 = arith.mulf %122, %122 : vector<48x20xf32>
    %cst_37 = arith.constant dense<0.000000e+00> : vector<48xf32>
    %124 = vector.multi_reduction <add>, %123, %cst_37 [1] : vector<48x20xf32> to vector<48xf32>
    %125 = vector.shape_cast %124 : vector<48xf32> to vector<48x1xf32>
    %cst_38 = arith.constant 2.000000e+01 : f32
    %126 = vector.broadcast %cst_38 : f32 to vector<48x1xf32>
    %127 = arith.divf %125, %126 : vector<48x1xf32>
    %128 = vector.broadcast %120 : vector<48x1xf32> to vector<48x20xf32>
    %129 = arith.subf %116, %128 : vector<48x20xf32>
    %cst_39 = arith.constant 9.99999974E-6 : f32
    %130 = vector.broadcast %cst_39 : f32 to vector<48x1xf32>
    %131 = arith.addf %127, %130 : vector<48x1xf32>
    %132 = math.rsqrt %131 : vector<48x1xf32>
    %133 = vector.broadcast %132 : vector<48x1xf32> to vector<48x20xf32>
    %134 = arith.mulf %129, %133 : vector<48x20xf32>
    %135 = vector.broadcast %4 : vector<1x20xf32> to vector<48x20xf32>
    %136 = arith.mulf %134, %135 : vector<48x20xf32>
    %137 = vector.broadcast %5 : vector<1x20xf32> to vector<48x20xf32>
    %138 = arith.addf %136, %137 : vector<48x20xf32>
    %139 = arith.truncf %138 : vector<48x20xf32> to vector<48x20xbf16>
    %c0_40 = arith.constant 0 : index
    %c0_41 = arith.constant 0 : index
    %140 = vector.load %arg5[%c0_40, %c0_41] : memref<20x2048xbf16, #tpu.memory_space<vmem>>, vector<20x2048xbf16>
    %cst_42 = arith.constant dense<0.000000e+00> : vector<48x2048xf32>
    %141 = tpu.matmul %139, %140, %cst_42 {dimension_numbers = #tpu.dot_dimension_numbers<[1], [0], [0], [1], [0, 0, 1, 1], [], []>} : vector<48x20xbf16>, vector<20x2048xbf16>, vector<48x2048xf32> -> vector<48x2048xf32>
    %c0_43 = arith.constant 0 : index
    %c0_44 = arith.constant 0 : index
    %142 = vector.load %arg6[%c0_43, %c0_44] : memref<1x2048xf32, #tpu.memory_space<vmem>>, vector<1x2048xf32>
    %143 = vector.broadcast %142 : vector<1x2048xf32> to vector<48x2048xf32>
    %144 = arith.addf %141, %143 : vector<48x2048xf32>
    %cst_45 = arith.constant 0.000000e+00 : f32
    %145 = vector.broadcast %cst_45 : f32 to vector<48x2048xf32>
    %146 = arith.maximumf %144, %145 : vector<48x2048xf32>
    %147 = arith.truncf %146 : vector<48x2048xf32> to vector<48x2048xbf16>
    %c0_46 = arith.constant 0 : index
    %c0_47 = arith.constant 0 : index
    %148 = vector.load %arg7[%c0_46, %c0_47] : memref<2048x20xbf16, #tpu.memory_space<vmem>>, vector<2048x20xbf16>
    %cst_48 = arith.constant dense<0.000000e+00> : vector<48x20xf32>
    %149 = tpu.matmul %147, %148, %cst_48 {dimension_numbers = #tpu.dot_dimension_numbers<[1], [0], [0], [1], [0, 0, 1, 1], [], []>} : vector<48x2048xbf16>, vector<2048x20xbf16>, vector<48x20xf32> -> vector<48x20xf32>
    %150 = vector.broadcast %6 : vector<1x20xf32> to vector<48x20xf32>
    %151 = arith.addf %149, %150 : vector<48x20xf32>
    %152 = arith.addf %138, %151 : vector<48x20xf32>
    %cst_49 = arith.constant dense<0.000000e+00> : vector<48xf32>
    %153 = vector.multi_reduction <add>, %152, %cst_49 [1] : vector<48x20xf32> to vector<48xf32>
    %154 = vector.shape_cast %153 : vector<48xf32> to vector<48x1xf32>
    %cst_50 = arith.constant 2.000000e+01 : f32
    %155 = vector.broadcast %cst_50 : f32 to vector<48x1xf32>
    %156 = arith.divf %154, %155 : vector<48x1xf32>
    %157 = vector.broadcast %156 : vector<48x1xf32> to vector<48x20xf32>
    %158 = arith.subf %152, %157 : vector<48x20xf32>
    %159 = arith.mulf %158, %158 : vector<48x20xf32>
    %cst_51 = arith.constant dense<0.000000e+00> : vector<48xf32>
    %160 = vector.multi_reduction <add>, %159, %cst_51 [1] : vector<48x20xf32> to vector<48xf32>
    %161 = vector.shape_cast %160 : vector<48xf32> to vector<48x1xf32>
    %cst_52 = arith.constant 2.000000e+01 : f32
    %162 = vector.broadcast %cst_52 : f32 to vector<48x1xf32>
    %163 = arith.divf %161, %162 : vector<48x1xf32>
    %164 = vector.broadcast %156 : vector<48x1xf32> to vector<48x20xf32>
    %165 = arith.subf %152, %164 : vector<48x20xf32>
    %cst_53 = arith.constant 9.99999974E-6 : f32
    %166 = vector.broadcast %cst_53 : f32 to vector<48x1xf32>
    %167 = arith.addf %163, %166 : vector<48x1xf32>
    %168 = math.rsqrt %167 : vector<48x1xf32>
    %169 = vector.broadcast %168 : vector<48x1xf32> to vector<48x20xf32>
    %170 = arith.mulf %165, %169 : vector<48x20xf32>
    %171 = vector.broadcast %7 : vector<1x20xf32> to vector<48x20xf32>
    %172 = arith.mulf %170, %171 : vector<48x20xf32>
    %173 = vector.broadcast %8 : vector<1x20xf32> to vector<48x20xf32>
    %174 = arith.addf %172, %173 : vector<48x20xf32>
    %175 = vector.shape_cast %174 : vector<48x20xf32> to vector<6x8x20xf32>
    %176 = vector.shape_cast %9 : vector<1x20xf32> to vector<1x1x20xf32>
    %177 = vector.broadcast %176 : vector<1x1x20xf32> to vector<6x8x20xf32>
    %178 = arith.mulf %175, %177 : vector<6x8x20xf32>
    %cst_54 = arith.constant dense<0.000000e+00> : vector<6x8xf32>
    %179 = vector.multi_reduction <add>, %178, %cst_54 [2] : vector<6x8x20xf32> to vector<6x8xf32>
    %180 = vector.broadcast %10 : vector<1x1xf32> to vector<6x8xf32>
    %181 = arith.addf %179, %180 : vector<6x8xf32>
    %c0_55 = arith.constant 0 : index
    %c0_56 = arith.constant 0 : index
    %182 = vector.load %arg9[%c0_55, %c0_56] : memref<6x8xf32, #tpu.memory_space<vmem>>, vector<6x8xf32>
    tpu.vector_store %arg9[%c0_55, %c0_56], %181 {strides = array<i32>} : memref<6x8xf32, #tpu.memory_space<vmem>>, vector<6x8xf32>,
    return
  }
  func.func @transform_0(%arg0: i32) -> (i32, i32, i32) {
    %c0_i32 = arith.constant 0 : i32
    %c0_i32_0 = arith.constant 0 : i32
    %c0_i32_1 = arith.constant 0 : i32
    return %arg0, %c0_i32, %c0_i32_0 : i32, i32, i32
  }
  func.func @transform_1(%arg0: i32) -> (i32, i32, i32) {
    %c0_i32 = arith.constant 0 : i32
    %c0_i32_0 = arith.constant 0 : i32
    %c0_i32_1 = arith.constant 0 : i32
    %c0_i32_2 = arith.constant 0 : i32
    return %c0_i32, %c0_i32_0, %c0_i32_1 : i32, i32, i32
  }
  func.func @transform_2(%arg0: i32) -> (i32, i32) {
    %c0_i32 = arith.constant 0 : i32
    %c0_i32_0 = arith.constant 0 : i32
    %c0_i32_1 = arith.constant 0 : i32
    return %c0_i32, %c0_i32_0 : i32, i32
  }
  func.func @transform_3(%arg0: i32) -> (i32, i32) {
    %c0_i32 = arith.constant 0 : i32
    %c0_i32_0 = arith.constant 0 : i32
    %c0_i32_1 = arith.constant 0 : i32
    return %c0_i32, %c0_i32_0 : i32, i32
  }
  func.func @transform_4(%arg0: i32) -> (i32, i32) {
    %c0_i32 = arith.constant 0 : i32
    %c0_i32_0 = arith.constant 0 : i32
    %c0_i32_1 = arith.constant 0 : i32
    return %c0_i32, %c0_i32_0 : i32, i32
  }
  func.func @transform_5(%arg0: i32) -> (i32, i32) {
    %c0_i32 = arith.constant 0 : i32
    %c0_i32_0 = arith.constant 0 : i32
    %c0_i32_1 = arith.constant 0 : i32
    return %c0_i32, %c0_i32_0 : i32, i32
  }
  func.func @transform_6(%arg0: i32) -> (i32, i32) {
    %c0_i32 = arith.constant 0 : i32
    %c0_i32_0 = arith.constant 0 : i32
    %c0_i32_1 = arith.constant 0 : i32
    return %c0_i32, %c0_i32_0 : i32, i32
  }
  func.func @transform_7(%arg0: i32) -> (i32, i32) {
    %c0_i32 = arith.constant 0 : i32
    %c0_i32_0 = arith.constant 0 : i32
    %c0_i32_1 = arith.constant 0 : i32
    return %c0_i32, %c0_i32_0 : i32, i32
  }
  func.func @transform_8(%arg0: i32) -> (i32, i32) {
    %c0_i32 = arith.constant 0 : i32
    %c0_i32_0 = arith.constant 0 : i32
    return %arg0, %c0_i32 : i32, i32
  }
}

</mosaic_0001>

<llo_original>
// kernel: tpu_custom_call.1
$region0: #{tpu_custom_call.1}
  #allocation0 [shape = 'u32[]', space=smem, size = 0x4, offset = 0x4, fixed_abs, tag = 'smem constant byte address 0x4 - core index']
  #allocation1 [shape = 'u32[144,128]{1,0:T(1,128)}', space=vmem, size = 0x12000, scoped, tag = 'internal scratch']
  %s0 = inlined_call_operand.vmem [shape: f32[6,8,20], index: 0, kind: input, shape index: {}]
  %s1 = inlined_call_operand.vmem [shape: bf16[3,20,20], index: 1, kind: input, shape index: {}]
  %s2 = inlined_call_operand.vmem [shape: f32[3,20], index: 2, kind: input, shape index: {}]
  %s3 = inlined_call_operand.vmem [shape: bf16[20,20], index: 3, kind: input, shape index: {}]
  %s4 = inlined_call_operand.vmem [shape: bf16[20,2048], index: 4, kind: input, shape index: {}]
  %s5 = inlined_call_operand.vmem [shape: f32[1,2048], index: 5, kind: input, shape index: {}]
  %s6 = inlined_call_operand.vmem [shape: bf16[2048,20], index: 6, kind: input, shape index: {}]
  %s7 = inlined_call_operand.vmem [shape: f32[8,20], index: 7, kind: input, shape index: {}]
  %s8 = inlined_call_operand.hbm [shape: f32[6,8], index: 8, kind: output, shape index: {}]
  %s9 = sld [smem:[#allocation0]]
  $region42: #{tpu_custom_call.1} parent=0
    _
  %s11 = ssub.s32 1, %s9
  %s12 = scalar_select 0, %s11, %s9
  $region1: #{tpu_custom_call.1} parent=0
    #allocation2 [shape = 'u8[4096]{0}', space=vmem, size = 0x1000, scoped, tag = 'output window, operand 0, single buffered']
    #allocation3 [shape = 's32[1]{0}', space=sflag, size = 0x4, scoped, tag = 'scoped memory for tpu_custom_call.1']
    %13 = vsyncpa [#allocation3], 0
    // Predicated region
    $region2: #{tpu_custom_call.1} parent=1 // pred_check
      _
    $region3: #{tpu_custom_call.1} parent=1 // pred_check_branch
      %15 = sbr.rel (0) target = $region5
    $region4: #{tpu_custom_call.1} parent=1 // pred_region
      _
    $region5: #{tpu_custom_call.1} parent=1 // pred_fallthru
      _
    // Predicated region
    $region6: #{tpu_custom_call.1} parent=1 // pred_check
      _
    $region7: #{tpu_custom_call.1} parent=1 // pred_check_branch
      %17 = sbr.rel (0) target = $region9
    $region8: #{tpu_custom_call.1} parent=1 // pred_region
      _
    $region9: #{tpu_custom_call.1} parent=1 // pred_fallthru
      _
    // Predicated region
    $region10: #{tpu_custom_call.1} parent=1 // pred_check
      _
    $region11: #{tpu_custom_call.1} parent=1 // pred_check_branch
      %19 = sbr.rel (0) target = $region13
    $region12: #{tpu_custom_call.1} parent=1 // pred_region
      _
    $region13: #{tpu_custom_call.1} parent=1 // pred_fallthru
      _
    // Predicated region
    $region14: #{tpu_custom_call.1} parent=1 // pred_check
      _
    $region15: #{tpu_custom_call.1} parent=1 // pred_check_branch
      %21 = sbr.rel (0) target = $region17
    $region16: #{tpu_custom_call.1} parent=1 // pred_region
      _
    $region17: #{tpu_custom_call.1} parent=1 // pred_fallthru
      _
    // Predicated region
    $region18: #{tpu_custom_call.1} parent=1 // pred_check
      _
    $region19: #{tpu_custom_call.1} parent=1 // pred_check_branch
      %23 = sbr.rel (0) target = $region21
    $region20: #{tpu_custom_call.1} parent=1 // pred_region
      _
    $region21: #{tpu_custom_call.1} parent=1 // pred_fallthru
      _
    // Predicated region
    $region22: #{tpu_custom_call.1} parent=1 // pred_check
      _
    $region23: #{tpu_custom_call.1} parent=1 // pred_check_branch
      %25 = sbr.rel (0) target = $region25
    $region24: #{tpu_custom_call.1} parent=1 // pred_region
      _
    $region25: #{tpu_custom_call.1} parent=1 // pred_fallthru
      _
    // Predicated region
    $region26: #{tpu_custom_call.1} parent=1 // pred_check
      _
    $region27: #{tpu_custom_call.1} parent=1 // pred_check_branch
      %27 = sbr.rel (0) target = $region29
    $region28: #{tpu_custom_call.1} parent=1 // pred_region
      _
    $region29: #{tpu_custom_call.1} parent=1 // pred_fallthru
      _
    // Predicated region
    $region30: #{tpu_custom_call.1} parent=1 // pred_check
      _
    $region31: #{tpu_custom_call.1} parent=1 // pred_check_branch
      %29 = sbr.rel (0) target = $region33
    $region32: #{tpu_custom_call.1} parent=1 // pred_region
      _
    $region33: #{tpu_custom_call.1} parent=1 // pred_fallthru
      _
    %v31 = vld [vmem:[%s0] sm:$0xff]
    %v32 = vld [vmem:[%s0 + $0x8] sm:$0xff]
    %v33 = vld [vmem:[%s0 + $0x10] sm:$0xff]
    %v34 = vld [vmem:[%s0 + $0x18] sm:$0xff]
    %v35 = vld [vmem:[%s0 + $0x20] sm:$0xff]
    %v36 = vld [vmem:[%s0 + $0x28] sm:$0xff]
    %v37 = vpack.c.bf16 %v32, %v31
    %v38 = vpack.c.bf16 %v34, %v33
    %v39 = vpack.c.bf16 %v36, %v35
    %v40 = vld [vmem:[%s7] sm:$0x1]
    %v41 = vld [vmem:[%s7 + $0x1] sm:$0x1]
    %v42 = vld [vmem:[%s7 + $0x2] sm:$0x1]
    %v43 = vld [vmem:[%s7 + $0x3] sm:$0x1]
    %v44 = vld [vmem:[%s7 + $0x4] sm:$0x1]
    %v45 = vld [vmem:[%s7 + $0x5] sm:$0x1]
    %v46 = vld [vmem:[%s7 + $0x6] sm:$0x1]
    %v47 = vld [vmem:[%s7 + $0x7] sm:$0x1]
    %v48 = vld [vmem:[%s1] sm:$0xf]
    %v49 = vld [vmem:[%s1 + $0x4] sm:$0xf]
    %v50 = vld [vmem:[%s1 + $0x8] sm:$0x3]
    %v51 = vld [vmem:[%s2] sm:$0x1]
    %v52 = vlaneseq
    %v53 = vshrl.u32 %v52, 7
    %v54 = vsub.s32 0, %v53
    %v55 = vrot.slane %v51, %v54
    %v59 = vunpack.c.l.b16 %v48
    %v60 = vunpack.c.l.b16 %v49
    %v61 = vunpack.c.l.b16 %v50
    %v62 = vpack.c.b16 %v60, %v59
    %v63 = vpack.c.b16 %v61, %v61
    %vm65 = vcmask 162816
    %v67 = vsel %vm65, %v37, 0
    %v70 = vsel %vm65, %v38, 0
    %v73 = vsel %vm65, %v39, 0
    %vm75 = vcmask 1041408
    %v77 = vsel %vm75, %v63, 0
    %79 = vmatprep.subr.bf16.mxu0 0
    %80 = vmatpush1.bf16.msra.mxu0 %v62
    %81 = vmatprep.subr.bf16.mxu0 0
    %82 = vmatpush1.bf16.msra.mxu0 %v77
    %83 = vmatprep.subr.bf16.mxu0 0
    %84 = vmatpush1.bf16.msra.mxu0 0
    %85 = vmatprep.subr.bf16.mxu0 0
    %86 = vmatpush1.bf16.msra.mxu0 0
    %87 = vmatprep.subr.bf16.mxu0 0
    %88 = vmatpush1.bf16.msra.mxu0 0
    %89 = vmatprep.subr.bf16.mxu0 0
    %90 = vmatpush1.bf16.msra.mxu0 0
    %91 = vmatprep.subr.bf16.mxu0 0
    %92 = vmatpush1.bf16.msra.mxu0 0
    %93 = vmatprep.subr.bf16.mxu0 0
    %94 = vmatpush1.bf16.msra.mxu0 0
    %95 = vmatprep.subr.bf16.mxu0 0
    %96 = vmatpush1.bf16.msra.mxu0 0
    %97 = vmatprep.subr.bf16.mxu0 0
    %98 = vmatpush1.bf16.msra.mxu0 0
    %99 = vmatprep.subr.bf16.mxu0 0
    %100 = vmatpush1.bf16.msra.mxu0 0
    %101 = vmatprep.subr.bf16.mxu0 0
    %102 = vmatpush1.bf16.msra.mxu0 0
    %103 = vmatprep.subr.bf16.mxu0 0
    %104 = vmatpush1.bf16.msra.mxu0 0
    %105 = vmatprep.subr.bf16.mxu0 0
    %106 = vmatpush1.bf16.msra.mxu0 0
    %107 = vmatprep.subr.bf16.mxu0 0
    %108 = vmatpush1.bf16.msra.mxu0 0
    %109 = vmatprep.subr.bf16.mxu0 0
    %110 = vmatpush1.bf16.msra.mxu0 0
    %111 = vmatprep.mubr.bf16.mxu0 0
    %112 = vmatmul.mubr.bf16.gmra.mrb[0].mxu0 %v67
    %v113 = vpop.f32.mrb[0].mxu0
    %v114 = vadd.f32 %v55, %v113
    %v115 = vpop.f32.mrb[0].mxu0
    %v116 = vpop.f32.mrb[0].mxu0
    %v117 = vadd.f32 %v55, %v116
    %v118 = vpop.f32.mrb[0].mxu0
    %119 = vmatprep.mubr.bf16.mxu0 0
    %120 = vmatmul.mubr.bf16.gmra.mrb[0].mxu0 %v70
    %v121 = vpop.f32.mrb[0].mxu0
    %v122 = vadd.f32 %v55, %v121
    %v123 = vpop.f32.mrb[0].mxu0
    %v124 = vpop.f32.mrb[0].mxu0
    %v125 = vadd.f32 %v55, %v124
    %v126 = vpop.f32.mrb[0].mxu0
    %127 = vmatprep.mubr.bf16.mxu0 0
    %128 = vmatmul.mubr.bf16.gmra.mrb[0].mxu0 %v73
    %v129 = vpop.f32.mrb[0].mxu0
    %v130 = vadd.f32 %v55, %v129
    %v131 = vpop.f32.mrb[0].mxu0
    %v132 = vpop.f32.mrb[0].mxu0
    %v133 = vadd.f32 %v55, %v132
    %v134 = vpop.f32.mrb[0].mxu0
    %135 = vdwg.mxu0
    %s136 = scalar_lea.vmem %s1, 12
    %v137 = vld [vmem:[%s136] sm:$0xf]
    %v138 = vld [vmem:[%s136 + $0x4] sm:$0xf]
    %v139 = vld [vmem:[%s136 + $0x8] sm:$0x3]
    %v140 = vld [vmem:[%s2 + $0x1] sm:$0x1]
    %v141 = vlaneseq
    %v142 = vshrl.u32 %v141, 7
    %v143 = vsub.s32 0, %v142
    %v144 = vrot.slane %v140, %v143
    %v148 = vunpack.c.l.b16 %v137
    %v149 = vunpack.c.l.b16 %v138
    %v150 = vunpack.c.l.b16 %v139
    %v151 = vpack.c.b16 %v149, %v148
    %v152 = vpack.c.b16 %v150, %v150
    %v155 = vsel %vm75, %v152, 0
    %157 = vmatprep.subr.bf16.mxu0 0
    %158 = vmatpush1.bf16.msra.mxu0 %v151
    %159 = vmatprep.subr.bf16.mxu0 0
    %160 = vmatpush1.bf16.msra.mxu0 %v155
    %161 = vmatprep.subr.bf16.mxu0 0
    %162 = vmatpush1.bf16.msra.mxu0 0
    %163 = vmatprep.subr.bf16.mxu0 0
    %164 = vmatpush1.bf16.msra.mxu0 0
    %165 = vmatprep.subr.bf16.mxu0 0
    %166 = vmatpush1.bf16.msra.mxu0 0
    %167 = vmatprep.subr.bf16.mxu0 0
    %168 = vmatpush1.bf16.msra.mxu0 0
    %169 = vmatprep.subr.bf16.mxu0 0
    %170 = vmatpush1.bf16.msra.mxu0 0
    %171 = vmatprep.subr.bf16.mxu0 0
    %172 = vmatpush1.bf16.msra.mxu0 0
    %173 = vmatprep.subr.bf16.mxu0 0
    %174 = vmatpush1.bf16.msra.mxu0 0
    %175 = vmatprep.subr.bf16.mxu0 0
    %176 = vmatpush1.bf16.msra.mxu0 0
    %177 = vmatprep.subr.bf16.mxu0 0
    %178 = vmatpush1.bf16.msra.mxu0 0
    %179 = vmatprep.subr.bf16.mxu0 0
    %180 = vmatpush1.bf16.msra.mxu0 0
    %181 = vmatprep.subr.bf16.mxu0 0
    %182 = vmatpush1.bf16.msra.mxu0 0
    %183 = vmatprep.subr.bf16.mxu0 0
    %184 = vmatpush1.bf16.msra.mxu0 0
    %185 = vmatprep.subr.bf16.mxu0 0
    %186 = vmatpush1.bf16.msra.mxu0 0
    %187 = vmatprep.subr.bf16.mxu0 0
    %188 = vmatpush1.bf16.msra.mxu0 0
    %189 = vmatprep.mubr.bf16.mxu0 0
    %190 = vmatmul.mubr.bf16.gmra.mrb[0].mxu0 %v67
    %v191 = vpop.f32.mrb[0].mxu0
    %v192 = vadd.f32 %v144, %v191
    %v193 = vpop.f32.mrb[0].mxu0
    %v194 = vpop.f32.mrb[0].mxu0
    %v195 = vadd.f32 %v144, %v194
    %v196 = vpop.f32.mrb[0].mxu0
    %197 = vmatprep.mubr.bf16.mxu0 0
    %198 = vmatmul.mubr.bf16.gmra.mrb[0].mxu0 %v70
    %v199 = vpop.f32.mrb[0].mxu0
    %v200 = vadd.f32 %v144, %v199
    %v201 = vpop.f32.mrb[0].mxu0
    %v202 = vpop.f32.mrb[0].mxu0
    %v203 = vadd.f32 %v144, %v202
    %v204 = vpop.f32.mrb[0].mxu0
    %205 = vmatprep.mubr.bf16.mxu0 0
    %206 = vmatmul.mubr.bf16.gmra.mrb[0].mxu0 %v73
    %v207 = vpop.f32.mrb[0].mxu0
    %v208 = vadd.f32 %v144, %v207
    %v209 = vpop.f32.mrb[0].mxu0
    %v210 = vpop.f32.mrb[0].mxu0
    %v211 = vadd.f32 %v144, %v210
    %v212 = vpop.f32.mrb[0].mxu0
    %213 = vdwg.mxu0
    %s214 = scalar_lea.vmem %s1, 24
    %v215 = vld [vmem:[%s214] sm:$0xf]
    %v216 = vld [vmem:[%s214 + $0x4] sm:$0xf]
    %v217 = vld [vmem:[%s214 + $0x8] sm:$0x3]
    %v218 = vld [vmem:[%s2 + $0x2] sm:$0x1]
    %v219 = vlaneseq
    %v220 = vshrl.u32 %v219, 7
    %v221 = vsub.s32 0, %v220
    %v222 = vrot.slane %v218, %v221
    %v226 = vunpack.c.l.b16 %v215
    %v227 = vunpack.c.l.b16 %v216
    %v228 = vunpack.c.l.b16 %v217
    %v229 = vpack.c.b16 %v227, %v226
    %v230 = vpack.c.b16 %v228, %v228
    %v233 = vsel %vm75, %v230, 0
    %235 = vmatprep.subr.bf16.mxu0 0
    %236 = vmatpush1.bf16.msra.mxu0 %v229
    %237 = vmatprep.subr.bf16.mxu0 0
    %238 = vmatpush1.bf16.msra.mxu0 %v233
    %239 = vmatprep.subr.bf16.mxu0 0
    %240 = vmatpush1.bf16.msra.mxu0 0
    %241 = vmatprep.subr.bf16.mxu0 0
    %242 = vmatpush1.bf16.msra.mxu0 0
    %243 = vmatprep.subr.bf16.mxu0 0
    %244 = vmatpush1.bf16.msra.mxu0 0
    %245 = vmatprep.subr.bf16.mxu0 0
    %246 = vmatpush1.bf16.msra.mxu0 0
    %247 = vmatprep.subr.bf16.mxu0 0
    %248 = vmatpush1.bf16.msra.mxu0 0
    %249 = vmatprep.subr.bf16.mxu0 0
    %250 = vmatpush1.bf16.msra.mxu0 0
    %251 = vmatprep.subr.bf16.mxu0 0
    %252 = vmatpush1.bf16.msra.mxu0 0
    %253 = vmatprep.subr.bf16.mxu0 0
    %254 = vmatpush1.bf16.msra.mxu0 0
    %255 = vmatprep.subr.bf16.mxu0 0
    %256 = vmatpush1.bf16.msra.mxu0 0
    %257 = vmatprep.subr.bf16.mxu0 0
    %258 = vmatpush1.bf16.msra.mxu0 0
    %259 = vmatprep.subr.bf16.mxu0 0
    %260 = vmatpush1.bf16.msra.mxu0 0
    %261 = vmatprep.subr.bf16.mxu0 0
    %262 = vmatpush1.bf16.msra.mxu0 0
    %263 = vmatprep.subr.bf16.mxu0 0
    %264 = vmatpush1.bf16.msra.mxu0 0
    %265 = vmatprep.subr.bf16.mxu0 0
    %266 = vmatpush1.bf16.msra.mxu0 0
    %267 = vmatprep.mubr.bf16.mxu0 0
    %268 = vmatmul.mubr.bf16.gmra.mrb[0].mxu0 %v67
    %v269 = vpop.f32.mrb[0].mxu0
    %v270 = vadd.f32 %v222, %v269
    %v271 = vpop.f32.mrb[0].mxu0
    %v272 = vpop.f32.mrb[0].mxu0
    %v273 = vadd.f32 %v222, %v272
    %v274 = vpop.f32.mrb[0].mxu0
    %275 = vmatprep.mubr.bf16.mxu0 0
    %276 = vmatmul.mubr.bf16.gmra.mrb[0].mxu0 %v70
    %v277 = vpop.f32.mrb[0].mxu0
    %v278 = vadd.f32 %v222, %v277
    %v279 = vpop.f32.mrb[0].mxu0
    %v280 = vpop.f32.mrb[0].mxu0
    %v281 = vadd.f32 %v222, %v280
    %v282 = vpop.f32.mrb[0].mxu0
    %283 = vmatprep.mubr.bf16.mxu0 0
    %284 = vmatmul.mubr.bf16.gmra.mrb[0].mxu0 %v73
    %v285 = vpop.f32.mrb[0].mxu0
    %v286 = vadd.f32 %v222, %v285
    %v287 = vpop.f32.mrb[0].mxu0
    %v288 = vpop.f32.mrb[0].mxu0
    %v289 = vadd.f32 %v222, %v288
    %v290 = vpop.f32.mrb[0].mxu0
    %291 = vdwg.mxu0
    %293 = vrot.lane.b32.xlu0 %v117, 20
    %v294 = vpop.permute.xlu0 %293
    %297 = vrot.lane.b32.xlu0 %v122, 40
    %v298 = vpop.permute.xlu0 %297
    %301 = vrot.lane.b32.xlu0 %v125, 60
    %v302 = vpop.permute.xlu0 %301
    %305 = vrot.lane.b32.xlu0 %v130, 80
    %v306 = vpop.permute.xlu0 %305
    %309 = vrot.lane.b32.xlu0 %v133, 100
    %v310 = vpop.permute.xlu0 %309
    %v312 = vsel %vm65, %v114, %v294
    %vm313 = vcmask 326656
    %v314 = vsel %vm313, %v312, %v298
    %vm315 = vcmask 490496
    %v316 = vsel %vm315, %v314, %v302
    %vm317 = vcmask 654336
    %v318 = vsel %vm317, %v316, %v306
    %vm319 = vcmask 818176
    %v320 = vsel %vm319, %v318, %v310
    %322 = vrot.lane.b32.xlu0 %v195, 20
    %v323 = vpop.permute.xlu0 %322
    %326 = vrot.lane.b32.xlu0 %v200, 40
    %v327 = vpop.permute.xlu0 %326
    %330 = vrot.lane.b32.xlu0 %v203, 60
    %v331 = vpop.permute.xlu0 %330
    %334 = vrot.lane.b32.xlu0 %v208, 80
    %v335 = vpop.permute.xlu0 %334
    %338 = vrot.lane.b32.xlu0 %v211, 100
    %v339 = vpop.permute.xlu0 %338
    %v341 = vsel %vm65, %v192, %v323
    %v342 = vsel %vm313, %v341, %v327
    %v343 = vsel %vm315, %v342, %v331
    %v344 = vsel %vm317, %v343, %v335
    %v345 = vsel %vm319, %v344, %v339
    %347 = vrot.lane.b32.xlu0 %v273, 20
    %v348 = vpop.permute.xlu0 %347
    %351 = vrot.lane.b32.xlu0 %v278, 40
    %v352 = vpop.permute.xlu0 %351
    %355 = vrot.lane.b32.xlu0 %v281, 60
    %v356 = vpop.permute.xlu0 %355
    %359 = vrot.lane.b32.xlu0 %v286, 80
    %v360 = vpop.permute.xlu0 %359
    %363 = vrot.lane.b32.xlu0 %v289, 100
    %v364 = vpop.permute.xlu0 %363
    %v366 = vsel %vm65, %v270, %v348
    %v367 = vsel %vm313, %v366, %v352
    %v368 = vsel %vm315, %v367, %v356
    %v369 = vsel %vm317, %v368, %v360
    %v370 = vsel %vm319, %v369, %v364
    %v372 = vcombine.high %v320, %v320
    %v374 = vunpack.c.l.s4 1966171168
    %v375 = vunpack.c.0.s8 %v374
    %v376 = vlaneseq
    %v377 = vshrl.u32 %v376, 7
    %v378 = vsub.s32 %v375, %v377
    %v379 = vrot.slane %v320, %v378
    %v381 = vunpack.c.l.s4 1966171168
    %v382 = vunpack.c.0.s8 %v381
    %v383 = vlaneseq
    %v384 = vshrl.u32 %v383, 7
    %v385 = vsub.s32 %v382, %v384
    %v386 = vrot.slane %v372, %v385
    %v387 = vcombine.high %v379, %v379
    %v388 = vcombine.high %v386, %v386
    %v390 = vunpack.c.l.s4 1966171168
    %v391 = vunpack.c.0.s8 %v390
    %v392 = vlaneseq
    %v393 = vshrl.u32 %v392, 7
    %v394 = vsub.s32 %v391, %v393
    %v395 = vrot.slane %v379, %v394
    %v397 = vunpack.c.l.s4 1966171168
    %v398 = vunpack.c.0.s8 %v397
    %v399 = vlaneseq
    %v400 = vshrl.u32 %v399, 7
    %v401 = vsub.s32 %v398, %v400
    %v402 = vrot.slane %v386, %v401
    %v404 = vunpack.c.l.s4 1966171168
    %v405 = vunpack.c.0.s8 %v404
    %v406 = vlaneseq
    %v407 = vshrl.u32 %v406, 7
    %v408 = vsub.s32 %v405, %v407
    %v409 = vrot.slane %v387, %v408
    %v411 = vunpack.c.l.s4 1966171168
    %v412 = vunpack.c.0.s8 %v411
    %v413 = vlaneseq
    %v414 = vshrl.u32 %v413, 7
    %v415 = vsub.s32 %v412, %v414
    %v416 = vrot.slane %v388, %v415
    %v417 = vcombine.high %v395, %v395
    %v418 = vcombine.high %v402, %v402
    %v419 = vcombine.high %v409, %v409
    %v420 = vcombine.high %v416, %v416
    %v421 = vlaneseq
    %v422 = vshrl.u32 %v421, 7
    %v423 = vsub.s32 0, %v422
    %v424 = vrot.slane %v395, %v423
    %v425 = vlaneseq
    %v426 = vshrl.u32 %v425, 7
    %v427 = vsub.s32 0, %v426
    %v428 = vrot.slane %v409, %v427
    %v429 = vlaneseq
    %v430 = vshrl.u32 %v429, 7
    %v431 = vsub.s32 0, %v430
    %v432 = vrot.slane %v417, %v431
    %v433 = vlaneseq
    %v434 = vshrl.u32 %v433, 7
    %v435 = vsub.s32 0, %v434
    %v436 = vrot.slane %v419, %v435
    %v437 = vlaneseq
    %v438 = vshrl.u32 %v437, 7
    %v439 = vsub.s32 0, %v438
    %v440 = vrot.slane %v402, %v439
    %v441 = vlaneseq
    %v442 = vshrl.u32 %v441, 7
    %v443 = vsub.s32 0, %v442
    %v444 = vrot.slane %v416, %v443
    %v445 = vlaneseq
    %v446 = vshrl.u32 %v445, 7
    %v447 = vsub.s32 0, %v446
    %v448 = vrot.slane %v418, %v447
    %v449 = vlaneseq
    %v450 = vshrl.u32 %v449, 7
    %v451 = vsub.s32 0, %v450
    %v452 = vrot.slane %v420, %v451
    %v461 = vmul.f32 %v424, %v345
    %v462 = vmul.f32 %v428, %v345
    %v463 = vmul.f32 %v432, %v345
    %v464 = vmul.f32 %v436, %v345
    %v465 = vmul.f32 %v440, %v345
    %v466 = vmul.f32 %v444, %v345
    %v467 = vmul.f32 %v448, %v345
    %v468 = vmul.f32 %v452, %v345
    %v469 = vlaneseq
    %v470 = vshrl.u32 %v469, 7
    %vm471 = vcmp.le.s32.totalorder %v470, 0
    %vm472 = vcmp.le.s32.totalorder %v470, 1
    %vm473 = vcmp.le.s32.totalorder %v470, 2
    %vm474 = vcmp.le.s32.totalorder %v470, 3
    %vm475 = vcmp.le.s32.totalorder %v470, 4
    %vm476 = vcmp.le.s32.totalorder %v470, 5
    %vm477 = vcmp.le.s32.totalorder %v470, 6
    %vm478 = vcmp.le.s32.totalorder %v470, 7
    %v479 = vsel %vm471, 1, 0
    %v480 = vsel %vm472, 1, 0
    %v481 = vsel %vm473, 1, 0
    %v482 = vsel %vm474, 1, 0
    %v483 = vsel %vm475, 1, 0
    %v484 = vsel %vm476, 1, 0
    %v485 = vsel %vm477, 1, 0
    %v486 = vsel %vm478, 1, 0
    %vm487 = vcmp.eq.s32.totalorder %v479, 1
    %vm488 = vcmp.eq.s32.totalorder %v480, 1
    %vm489 = vcmp.eq.s32.totalorder %v481, 1
    %vm490 = vcmp.eq.s32.totalorder %v482, 1
    %vm491 = vcmp.eq.s32.totalorder %v483, 1
    %vm492 = vcmp.eq.s32.totalorder %v484, 1
    %vm493 = vcmp.eq.s32.totalorder %v485, 1
    %vm494 = vcmp.eq.s32.totalorder %v486, 1
    %v495 = vsel %vm487, %v461, -1e+30
    %v496 = vsel %vm488, %v462, -1e+30
    %v497 = vsel %vm489, %v463, -1e+30
    %v498 = vsel %vm490, %v464, -1e+30
    %v499 = vsel %vm491, %v465, -1e+30
    %v500 = vsel %vm492, %v466, -1e+30
    %v501 = vsel %vm493, %v467, -1e+30
    %v502 = vsel %vm494, %v468, -1e+30
    %vm503 = vcmask 982016
    %v504 = vsel %vm503, %v495, -inf
    %v505 = vrot.slane %v504, 4
    %v506 = vmax.f32 %v504, %v505
    %v507 = vrot.slane %v506, 2
    %v508 = vmax.f32 %v506, %v507
    %v509 = vrot.slane %v508, 1
    %v510 = vmax.f32 %v508, %v509
    %v511 = vsel %vm503, %v496, -inf
    %v512 = vrot.slane %v511, 4
    %v513 = vmax.f32 %v511, %v512
    %v514 = vrot.slane %v513, 2
    %v515 = vmax.f32 %v513, %v514
    %v516 = vrot.slane %v515, 1
    %v517 = vmax.f32 %v515, %v516
    %v518 = vsel %vm503, %v497, -inf
    %v519 = vrot.slane %v518, 4
    %v520 = vmax.f32 %v518, %v519
    %v521 = vrot.slane %v520, 2
    %v522 = vmax.f32 %v520, %v521
    %v523 = vrot.slane %v522, 1
    %v524 = vmax.f32 %v522, %v523
    %v525 = vsel %vm503, %v498, -inf
    %v526 = vrot.slane %v525, 4
    %v527 = vmax.f32 %v525, %v526
    %v528 = vrot.slane %v527, 2
    %v529 = vmax.f32 %v527, %v528
    %v530 = vrot.slane %v529, 1
    %v531 = vmax.f32 %v529, %v530
    %v532 = vsel %vm503, %v499, -inf
    %v533 = vrot.slane %v532, 4
    %v534 = vmax.f32 %v532, %v533
    %v535 = vrot.slane %v534, 2
    %v536 = vmax.f32 %v534, %v535
    %v537 = vrot.slane %v536, 1
    %v538 = vmax.f32 %v536, %v537
    %v539 = vsel %vm503, %v500, -inf
    %v540 = vrot.slane %v539, 4
    %v541 = vmax.f32 %v539, %v540
    %v542 = vrot.slane %v541, 2
    %v543 = vmax.f32 %v541, %v542
    %v544 = vrot.slane %v543, 1
    %v545 = vmax.f32 %v543, %v544
    %v546 = vsel %vm503, %v501, -inf
    %v547 = vrot.slane %v546, 4
    %v548 = vmax.f32 %v546, %v547
    %v549 = vrot.slane %v548, 2
    %v550 = vmax.f32 %v548, %v549
    %v551 = vrot.slane %v550, 1
    %v552 = vmax.f32 %v550, %v551
    %v553 = vsel %vm503, %v502, -inf
    %v554 = vrot.slane %v553, 4
    %v555 = vmax.f32 %v553, %v554
    %v556 = vrot.slane %v555, 2
    %v557 = vmax.f32 %v555, %v556
    %v558 = vrot.slane %v557, 1
    %v559 = vmax.f32 %v557, %v558
    %v560 = vsub.f32 %v495, %v510
    %v561 = vsub.f32 %v496, %v517
    %v562 = vsub.f32 %v497, %v524
    %v563 = vsub.f32 %v498, %v531
    %v564 = vsub.f32 %v499, %v538
    %v565 = vsub.f32 %v500, %v545
    %v566 = vsub.f32 %v501, %v552
    %v567 = vsub.f32 %v502, %v559
    %v568 = vmul.f32 %v560, 1.442695
    %v569 = vpow.pop %v568
    %v570 = vmul.f32 %v561, 1.442695
    %v571 = vpow.pop %v570
    %v572 = vmul.f32 %v562, 1.442695
    %v573 = vpow.pop %v572
    %v574 = vmul.f32 %v563, 1.442695
    %v575 = vpow.pop %v574
    %v576 = vmul.f32 %v564, 1.442695
    %v577 = vpow.pop %v576
    %v578 = vmul.f32 %v565, 1.442695
    %v579 = vpow.pop %v578
    %v580 = vmul.f32 %v566, 1.442695
    %v581 = vpow.pop %v580
    %v582 = vmul.f32 %v567, 1.442695
    %v583 = vpow.pop %v582
    %v584 = vsel %vm503, %v569, 0.0
    %v585 = vrot.slane %v584, 4
    %v586 = vadd.f32 %v584, %v585
    %v587 = vrot.slane %v586, 2
    %v588 = vadd.f32 %v586, %v587
    %v589 = vrot.slane %v588, 1
    %v590 = vadd.f32 %v588, %v589
    %v591 = vsel %vm503, %v571, 0.0
    %v592 = vrot.slane %v591, 4
    %v593 = vadd.f32 %v591, %v592
    %v594 = vrot.slane %v593, 2
    %v595 = vadd.f32 %v593, %v594
    %v596 = vrot.slane %v595, 1
    %v597 = vadd.f32 %v595, %v596
    %v598 = vsel %vm503, %v573, 0.0
    %v599 = vrot.slane %v598, 4
    %v600 = vadd.f32 %v598, %v599
    %v601 = vrot.slane %v600, 2
    %v602 = vadd.f32 %v600, %v601
    %v603 = vrot.slane %v602, 1
    %v604 = vadd.f32 %v602, %v603
    %v605 = vsel %vm503, %v575, 0.0
    %v606 = vrot.slane %v605, 4
    %v607 = vadd.f32 %v605, %v606
    %v608 = vrot.slane %v607, 2
    %v609 = vadd.f32 %v607, %v608
    %v610 = vrot.slane %v609, 1
    %v611 = vadd.f32 %v609, %v610
    %v612 = vsel %vm503, %v577, 0.0
    %v613 = vrot.slane %v612, 4
    %v614 = vadd.f32 %v612, %v613
    %v615 = vrot.slane %v614, 2
    %v616 = vadd.f32 %v614, %v615
    %v617 = vrot.slane %v616, 1
    %v618 = vadd.f32 %v616, %v617
    %v619 = vsel %vm503, %v579, 0.0
    %v620 = vrot.slane %v619, 4
    %v621 = vadd.f32 %v619, %v620
    %v622 = vrot.slane %v621, 2
    %v623 = vadd.f32 %v621, %v622
    %v624 = vrot.slane %v623, 1
    %v625 = vadd.f32 %v623, %v624
    %v626 = vsel %vm503, %v581, 0.0
    %v627 = vrot.slane %v626, 4
    %v628 = vadd.f32 %v626, %v627
    %v629 = vrot.slane %v628, 2
    %v630 = vadd.f32 %v628, %v629
    %v631 = vrot.slane %v630, 1
    %v632 = vadd.f32 %v630, %v631
    %v633 = vsel %vm503, %v583, 0.0
    %v634 = vrot.slane %v633, 4
    %v635 = vadd.f32 %v633, %v634
    %v636 = vrot.slane %v635, 2
    %v637 = vadd.f32 %v635, %v636
    %v638 = vrot.slane %v637, 1
    %v639 = vadd.f32 %v637, %v638
    %v640 = vrcp.pop %v590
    %v641 = vrcp.pop %v597
    %v642 = vrcp.pop %v604
    %v643 = vrcp.pop %v611
    %v644 = vrcp.pop %v618
    %v645 = vrcp.pop %v625
    %v646 = vrcp.pop %v632
    %v647 = vrcp.pop %v639
    %v648 = vmul.f32 %v569, %v640
    %v649 = vmul.f32 %v571, %v641
    %v650 = vmul.f32 %v573, %v642
    %v651 = vmul.f32 %v575, %v643
    %v652 = vmul.f32 %v577, %v644
    %v653 = vmul.f32 %v579, %v645
    %v654 = vmul.f32 %v581, %v646
    %v655 = vmul.f32 %v583, %v647
    %v656 = vmul.f32 %v648, %v370
    %v657 = vmul.f32 %v649, %v370
    %v658 = vmul.f32 %v650, %v370
    %v659 = vmul.f32 %v651, %v370
    %v660 = vmul.f32 %v652, %v370
    %v661 = vmul.f32 %v653, %v370
    %v662 = vmul.f32 %v654, %v370
    %v663 = vmul.f32 %v655, %v370
    %v664 = vsel %vm503, %v656, 0.0
    %v665 = vrot.slane %v664, 4
    %v666 = vadd.f32 %v664, %v665
    %v667 = vrot.slane %v666, 2
    %v668 = vadd.f32 %v666, %v667
    %v669 = vrot.slane %v668, 1
    %v670 = vadd.f32 %v668, %v669
    %v671 = vsel %vm503, %v657, 0.0
    %v672 = vrot.slane %v671, 4
    %v673 = vadd.f32 %v671, %v672
    %v674 = vrot.slane %v673, 2
    %v675 = vadd.f32 %v673, %v674
    %v676 = vrot.slane %v675, 1
    %v677 = vadd.f32 %v675, %v676
    %v678 = vsel %vm503, %v658, 0.0
    %v679 = vrot.slane %v678, 4
    %v680 = vadd.f32 %v678, %v679
    %v681 = vrot.slane %v680, 2
    %v682 = vadd.f32 %v680, %v681
    %v683 = vrot.slane %v682, 1
    %v684 = vadd.f32 %v682, %v683
    %v685 = vsel %vm503, %v659, 0.0
    %v686 = vrot.slane %v685, 4
    %v687 = vadd.f32 %v685, %v686
    %v688 = vrot.slane %v687, 2
    %v689 = vadd.f32 %v687, %v688
    %v690 = vrot.slane %v689, 1
    %v691 = vadd.f32 %v689, %v690
    %v692 = vsel %vm503, %v660, 0.0
    %v693 = vrot.slane %v692, 4
    %v694 = vadd.f32 %v692, %v693
    %v695 = vrot.slane %v694, 2
    %v696 = vadd.f32 %v694, %v695
    %v697 = vrot.slane %v696, 1
    %v698 = vadd.f32 %v696, %v697
    %v699 = vsel %vm503, %v661, 0.0
    %v700 = vrot.slane %v699, 4
    %v701 = vadd.f32 %v699, %v700
    %v702 = vrot.slane %v701, 2
    %v703 = vadd.f32 %v701, %v702
    %v704 = vrot.slane %v703, 1
    %v705 = vadd.f32 %v703, %v704
    %v706 = vsel %vm503, %v662, 0.0
    %v707 = vrot.slane %v706, 4
    %v708 = vadd.f32 %v706, %v707
    %v709 = vrot.slane %v708, 2
    %v710 = vadd.f32 %v708, %v709
    %v711 = vrot.slane %v710, 1
    %v712 = vadd.f32 %v710, %v711
    %v713 = vsel %vm503, %v663, 0.0
    %v714 = vrot.slane %v713, 4
    %v715 = vadd.f32 %v713, %v714
    %v716 = vrot.slane %v715, 2
    %v717 = vadd.f32 %v715, %v716
    %v718 = vrot.slane %v717, 1
    %v719 = vadd.f32 %v717, %v718
    %728 = vrot.lane.b32.xlu0 %v670, 108
    %v729 = vpop.permute.xlu0 %728
    %730 = vrot.lane.b32.xlu0 %v677, 108
    %v731 = vpop.permute.xlu0 %730
    %732 = vrot.lane.b32.xlu0 %v684, 108
    %v733 = vpop.permute.xlu0 %732
    %734 = vrot.lane.b32.xlu0 %v691, 108
    %v735 = vpop.permute.xlu0 %734
    %736 = vrot.lane.b32.xlu0 %v698, 108
    %v737 = vpop.permute.xlu0 %736
    %738 = vrot.lane.b32.xlu0 %v705, 108
    %v739 = vpop.permute.xlu0 %738
    %740 = vrot.lane.b32.xlu0 %v712, 108
    %v741 = vpop.permute.xlu0 %740
    %742 = vrot.lane.b32.xlu0 %v719, 108
    %v743 = vpop.permute.xlu0 %742
    %752 = vrot.lane.b32.xlu0 %v670, 88
    %v753 = vpop.permute.xlu0 %752
    %754 = vrot.lane.b32.xlu0 %v677, 88
    %v755 = vpop.permute.xlu0 %754
    %756 = vrot.lane.b32.xlu0 %v684, 88
    %v757 = vpop.permute.xlu0 %756
    %758 = vrot.lane.b32.xlu0 %v691, 88
    %v759 = vpop.permute.xlu0 %758
    %760 = vrot.lane.b32.xlu0 %v698, 88
    %v761 = vpop.permute.xlu0 %760
    %762 = vrot.lane.b32.xlu0 %v705, 88
    %v763 = vpop.permute.xlu0 %762
    %764 = vrot.lane.b32.xlu0 %v712, 88
    %v765 = vpop.permute.xlu0 %764
    %766 = vrot.lane.b32.xlu0 %v719, 88
    %v767 = vpop.permute.xlu0 %766
    %776 = vrot.lane.b32.xlu0 %v670, 68
    %v777 = vpop.permute.xlu0 %776
    %778 = vrot.lane.b32.xlu0 %v677, 68
    %v779 = vpop.permute.xlu0 %778
    %780 = vrot.lane.b32.xlu0 %v684, 68
    %v781 = vpop.permute.xlu0 %780
    %782 = vrot.lane.b32.xlu0 %v691, 68
    %v783 = vpop.permute.xlu0 %782
    %784 = vrot.lane.b32.xlu0 %v698, 68
    %v785 = vpop.permute.xlu0 %784
    %786 = vrot.lane.b32.xlu0 %v705, 68
    %v787 = vpop.permute.xlu0 %786
    %788 = vrot.lane.b32.xlu0 %v712, 68
    %v789 = vpop.permute.xlu0 %788
    %790 = vrot.lane.b32.xlu0 %v719, 68
    %v791 = vpop.permute.xlu0 %790
    %800 = vrot.lane.b32.xlu0 %v670, 48
    %v801 = vpop.permute.xlu0 %800
    %802 = vrot.lane.b32.xlu0 %v677, 48
    %v803 = vpop.permute.xlu0 %802
    %804 = vrot.lane.b32.xlu0 %v684, 48
    %v805 = vpop.permute.xlu0 %804
    %806 = vrot.lane.b32.xlu0 %v691, 48
    %v807 = vpop.permute.xlu0 %806
    %808 = vrot.lane.b32.xlu0 %v698, 48
    %v809 = vpop.permute.xlu0 %808
    %810 = vrot.lane.b32.xlu0 %v705, 48
    %v811 = vpop.permute.xlu0 %810
    %812 = vrot.lane.b32.xlu0 %v712, 48
    %v813 = vpop.permute.xlu0 %812
    %814 = vrot.lane.b32.xlu0 %v719, 48
    %v815 = vpop.permute.xlu0 %814
    %824 = vrot.lane.b32.xlu0 %v670, 28
    %v825 = vpop.permute.xlu0 %824
    %826 = vrot.lane.b32.xlu0 %v677, 28
    %v827 = vpop.permute.xlu0 %826
    %828 = vrot.lane.b32.xlu0 %v684, 28
    %v829 = vpop.permute.xlu0 %828
    %830 = vrot.lane.b32.xlu0 %v691, 28
    %v831 = vpop.permute.xlu0 %830
    %832 = vrot.lane.b32.xlu0 %v698, 28
    %v833 = vpop.permute.xlu0 %832
    %834 = vrot.lane.b32.xlu0 %v705, 28
    %v835 = vpop.permute.xlu0 %834
    %836 = vrot.lane.b32.xlu0 %v712, 28
    %v837 = vpop.permute.xlu0 %836
    %838 = vrot.lane.b32.xlu0 %v719, 28
    %v839 = vpop.permute.xlu0 %838
    %v848 = vpack.c.bf16 %v670, %v670
    %v849 = vpack.c.bf16 %v677, %v677
    %v850 = vpack.c.bf16 %v684, %v684
    %v851 = vpack.c.bf16 %v691, %v691
    %v852 = vpack.c.bf16 %v698, %v698
    %v853 = vpack.c.bf16 %v705, %v705
    %v854 = vpack.c.bf16 %v712, %v712
    %v855 = vpack.c.bf16 %v719, %v719
    %v856 = vpack.c.bf16 %v729, %v729
    %v857 = vpack.c.bf16 %v731, %v731
    %v858 = vpack.c.bf16 %v733, %v733
    %v859 = vpack.c.bf16 %v735, %v735
    %v860 = vpack.c.bf16 %v737, %v737
    %v861 = vpack.c.bf16 %v739, %v739
    %v862 = vpack.c.bf16 %v741, %v741
    %v863 = vpack.c.bf16 %v743, %v743
    %v864 = vpack.c.bf16 %v753, %v753
    %v865 = vpack.c.bf16 %v755, %v755
    %v866 = vpack.c.bf16 %v757, %v757
    %v867 = vpack.c.bf16 %v759, %v759
    %v868 = vpack.c.bf16 %v761, %v761
    %v869 = vpack.c.bf16 %v763, %v763
    %v870 = vpack.c.bf16 %v765, %v765
    %v871 = vpack.c.bf16 %v767, %v767
    %v872 = vpack.c.bf16 %v777, %v777
    %v873 = vpack.c.bf16 %v779, %v779
    %v874 = vpack.c.bf16 %v781, %v781
    %v875 = vpack.c.bf16 %v783, %v783
    %v876 = vpack.c.bf16 %v785, %v785
    %v877 = vpack.c.bf16 %v787, %v787
    %v878 = vpack.c.bf16 %v789, %v789
    %v879 = vpack.c.bf16 %v791, %v791
    %v880 = vpack.c.bf16 %v801, %v801
    %v881 = vpack.c.bf16 %v803, %v803
    %v882 = vpack.c.bf16 %v805, %v805
    %v883 = vpack.c.bf16 %v807, %v807
    %v884 = vpack.c.bf16 %v809, %v809
    %v885 = vpack.c.bf16 %v811, %v811
    %v886 = vpack.c.bf16 %v813, %v813
    %v887 = vpack.c.bf16 %v815, %v815
    %v888 = vpack.c.bf16 %v825, %v825
    %v889 = vpack.c.bf16 %v827, %v827
    %v890 = vpack.c.bf16 %v829, %v829
    %v891 = vpack.c.bf16 %v831, %v831
    %v892 = vpack.c.bf16 %v833, %v833
    %v893 = vpack.c.bf16 %v835, %v835
    %v894 = vpack.c.bf16 %v837, %v837
    %v895 = vpack.c.bf16 %v839, %v839
    %v896 = vld [vmem:[%s3] sm:$0xf]
    %v897 = vld [vmem:[%s3 + $0x4] sm:$0xf]
    %v898 = vld [vmem:[%s3 + $0x8] sm:$0x3]
    %v899 = vlaneseq
    %v900 = vshrl.u32 %v899, 7
    %v901 = vsub.s32 0, %v900
    %v902 = vrot.slane %v40, %v901
    %v951 = vunpack.c.l.b16 %v848
    %v952 = vunpack.c.l.b16 %v849
    %v953 = vunpack.c.l.b16 %v850
    %v954 = vunpack.c.l.b16 %v851
    %v955 = vunpack.c.l.b16 %v852
    %v956 = vunpack.c.l.b16 %v853
    %v957 = vunpack.c.l.b16 %v854
    %v958 = vunpack.c.l.b16 %v855
    %v959 = vunpack.c.l.b16 %v856
    %v960 = vunpack.c.l.b16 %v857
    %v961 = vunpack.c.l.b16 %v858
    %v962 = vunpack.c.l.b16 %v859
    %v963 = vunpack.c.l.b16 %v860
    %v964 = vunpack.c.l.b16 %v861
    %v965 = vunpack.c.l.b16 %v862
    %v966 = vunpack.c.l.b16 %v863
    %v967 = vunpack.c.l.b16 %v864
    %v968 = vunpack.c.l.b16 %v865
    %v969 = vunpack.c.l.b16 %v866
    %v970 = vunpack.c.l.b16 %v867
    %v971 = vunpack.c.l.b16 %v868
    %v972 = vunpack.c.l.b16 %v869
    %v973 = vunpack.c.l.b16 %v870
    %v974 = vunpack.c.l.b16 %v871
    %v975 = vunpack.c.l.b16 %v872
    %v976 = vunpack.c.l.b16 %v873
    %v977 = vunpack.c.l.b16 %v874
    %v978 = vunpack.c.l.b16 %v875
    %v979 = vunpack.c.l.b16 %v876
    %v980 = vunpack.c.l.b16 %v877
    %v981 = vunpack.c.l.b16 %v878
    %v982 = vunpack.c.l.b16 %v879
    %v983 = vunpack.c.l.b16 %v880
    %v984 = vunpack.c.l.b16 %v881
    %v985 = vunpack.c.l.b16 %v882
    %v986 = vunpack.c.l.b16 %v883
    %v987 = vunpack.c.l.b16 %v884
    %v988 = vunpack.c.l.b16 %v885
    %v989 = vunpack.c.l.b16 %v886
    %v990 = vunpack.c.l.b16 %v887
    %v991 = vunpack.c.l.b16 %v888
    %v992 = vunpack.c.l.b16 %v889
    %v993 = vunpack.c.l.b16 %v890
    %v994 = vunpack.c.l.b16 %v891
    %v995 = vunpack.c.l.b16 %v892
    %v996 = vunpack.c.l.b16 %v893
    %v997 = vunpack.c.l.b16 %v894
    %v998 = vunpack.c.l.b16 %v895
    %v999 = vrot.slane %v952, 7
    %vm1000 = vcmask 1041409
    %v1001 = vsel %vm1000, %v999, %v951
    %v1002 = vrot.slane %v953, 6
    %vm1003 = vcmask 1042434
    %v1004 = vsel %vm1003, %v1002, %v1001
    %v1005 = vrot.slane %v954, 5
    %vm1006 = vcmask 1043459
    %v1007 = vsel %vm1006, %v1005, %v1004
    %v1008 = vrot.slane %v955, 4
    %vm1009 = vcmask 1044484
    %v1010 = vsel %vm1009, %v1008, %v1007
    %v1011 = vrot.slane %v956, 3
    %vm1012 = vcmask 1045509
    %v1013 = vsel %vm1012, %v1011, %v1010
    %v1014 = vrot.slane %v957, 2
    %vm1015 = vcmask 1046534
    %v1016 = vsel %vm1015, %v1014, %v1013
    %v1017 = vrot.slane %v958, 1
    %vm1018 = vcmask 1047559
    %v1019 = vsel %vm1018, %v1017, %v1016
    %v1020 = vrot.slane %v960, 7
    %v1021 = vsel %vm1000, %v1020, %v959
    %v1022 = vrot.slane %v961, 6
    %v1023 = vsel %vm1003, %v1022, %v1021
    %v1024 = vrot.slane %v962, 5
    %v1025 = vsel %vm1006, %v1024, %v1023
    %v1026 = vrot.slane %v963, 4
    %v1027 = vsel %vm1009, %v1026, %v1025
    %v1028 = vrot.slane %v964, 3
    %v1029 = vsel %vm1012, %v1028, %v1027
    %v1030 = vrot.slane %v965, 2
    %v1031 = vsel %vm1015, %v1030, %v1029
    %v1032 = vrot.slane %v966, 1
    %v1033 = vsel %vm1018, %v1032, %v1031
    %v1034 = vrot.slane %v968, 7
    %v1035 = vsel %vm1000, %v1034, %v967
    %v1036 = vrot.slane %v969, 6
    %v1037 = vsel %vm1003, %v1036, %v1035
    %v1038 = vrot.slane %v970, 5
    %v1039 = vsel %vm1006, %v1038, %v1037
    %v1040 = vrot.slane %v971, 4
    %v1041 = vsel %vm1009, %v1040, %v1039
    %v1042 = vrot.slane %v972, 3
    %v1043 = vsel %vm1012, %v1042, %v1041
    %v1044 = vrot.slane %v973, 2
    %v1045 = vsel %vm1015, %v1044, %v1043
    %v1046 = vrot.slane %v974, 1
    %v1047 = vsel %vm1018, %v1046, %v1045
    %v1048 = vrot.slane %v976, 7
    %v1049 = vsel %vm1000, %v1048, %v975
    %v1050 = vrot.slane %v977, 6
    %v1051 = vsel %vm1003, %v1050, %v1049
    %v1052 = vrot.slane %v978, 5
    %v1053 = vsel %vm1006, %v1052, %v1051
    %v1054 = vrot.slane %v979, 4
    %v1055 = vsel %vm1009, %v1054, %v1053
    %v1056 = vrot.slane %v980, 3
    %v1057 = vsel %vm1012, %v1056, %v1055
    %v1058 = vrot.slane %v981, 2
    %v1059 = vsel %vm1015, %v1058, %v1057
    %v1060 = vrot.slane %v982, 1
    %v1061 = vsel %vm1018, %v1060, %v1059
    %v1062 = vrot.slane %v984, 7
    %v1063 = vsel %vm1000, %v1062, %v983
    %v1064 = vrot.slane %v985, 6
    %v1065 = vsel %vm1003, %v1064, %v1063
    %v1066 = vrot.slane %v986, 5
    %v1067 = vsel %vm1006, %v1066, %v1065
    %v1068 = vrot.slane %v987, 4
    %v1069 = vsel %vm1009, %v1068, %v1067
    %v1070 = vrot.slane %v988, 3
    %v1071 = vsel %vm1012, %v1070, %v1069
    %v1072 = vrot.slane %v989, 2
    %v1073 = vsel %vm1015, %v1072, %v1071
    %v1074 = vrot.slane %v990, 1
    %v1075 = vsel %vm1018, %v1074, %v1073
    %v1076 = vrot.slane %v992, 7
    %v1077 = vsel %vm1000, %v1076, %v991
    %v1078 = vrot.slane %v993, 6
    %v1079 = vsel %vm1003, %v1078, %v1077
    %v1080 = vrot.slane %v994, 5
    %v1081 = vsel %vm1006, %v1080, %v1079
    %v1082 = vrot.slane %v995, 4
    %v1083 = vsel %vm1009, %v1082, %v1081
    %v1084 = vrot.slane %v996, 3
    %v1085 = vsel %vm1012, %v1084, %v1083
    %v1086 = vrot.slane %v997, 2
    %v1087 = vsel %vm1015, %v1086, %v1085
    %v1088 = vrot.slane %v998, 1
    %v1089 = vsel %vm1018, %v1088, %v1087
    %v1090 = vpack.c.b16 %v1033, %v1019
    %v1091 = vpack.c.b16 %v1061, %v1047
    %v1092 = vpack.c.b16 %v1089, %v1075
    %v1096 = vunpack.c.l.b16 %v896
    %v1097 = vunpack.c.l.b16 %v897
    %v1098 = vunpack.c.l.b16 %v898
    %v1099 = vpack.c.b16 %v1097, %v1096
    %v1100 = vpack.c.b16 %v1098, %v1098
    %v1103 = vsel %vm65, %v1090, 0
    %v1106 = vsel %vm65, %v1091, 0
    %v1109 = vsel %vm65, %v1092, 0
    %v1112 = vsel %vm75, %v1100, 0
    %1114 = vmatprep.subr.bf16.mxu0 0
    %1115 = vmatpush1.bf16.msra.mxu0 %v1099
    %1116 = vmatprep.subr.bf16.mxu0 0
    %1117 = vmatpush1.bf16.msra.mxu0 %v1112
    %1118 = vmatprep.subr.bf16.mxu0 0
    %1119 = vmatpush1.bf16.msra.mxu0 0
    %1120 = vmatprep.subr.bf16.mxu0 0
    %1121 = vmatpush1.bf16.msra.mxu0 0
    %1122 = vmatprep.subr.bf16.mxu0 0
    %1123 = vmatpush1.bf16.msra.mxu0 0
    %1124 = vmatprep.subr.bf16.mxu0 0
    %1125 = vmatpush1.bf16.msra.mxu0 0
    %1126 = vmatprep.subr.bf16.mxu0 0
    %1127 = vmatpush1.bf16.msra.mxu0 0
    %1128 = vmatprep.subr.bf16.mxu0 0
    %1129 = vmatpush1.bf16.msra.mxu0 0
    %1130 = vmatprep.subr.bf16.mxu0 0
    %1131 = vmatpush1.bf16.msra.mxu0 0
    %1132 = vmatprep.subr.bf16.mxu0 0
    %1133 = vmatpush1.bf16.msra.mxu0 0
    %1134 = vmatprep.subr.bf16.mxu0 0
    %1135 = vmatpush1.bf16.msra.mxu0 0
    %1136 = vmatprep.subr.bf16.mxu0 0
    %1137 = vmatpush1.bf16.msra.mxu0 0
    %1138 = vmatprep.subr.bf16.mxu0 0
    %1139 = vmatpush1.bf16.msra.mxu0 0
    %1140 = vmatprep.subr.bf16.mxu0 0
    %1141 = vmatpush1.bf16.msra.mxu0 0
    %1142 = vmatprep.subr.bf16.mxu0 0
    %1143 = vmatpush1.bf16.msra.mxu0 0
    %1144 = vmatprep.subr.bf16.mxu0 0
    %1145 = vmatpush1.bf16.msra.mxu0 0
    %1146 = vmatprep.mubr.bf16.mxu0 0
    %1147 = vmatmul.mubr.bf16.gmra.mrb[0].mxu0 %v1103
    %v1148 = vpop.f32.mrb[0].mxu0
    %v1149 = vadd.f32 %v902, %v1148
    %v1150 = vpop.f32.mrb[0].mxu0
    %v1151 = vpop.f32.mrb[0].mxu0
    %v1152 = vadd.f32 %v902, %v1151
    %v1153 = vpop.f32.mrb[0].mxu0
    %1154 = vmatprep.mubr.bf16.mxu0 0
    %1155 = vmatmul.mubr.bf16.gmra.mrb[0].mxu0 %v1106
    %v1156 = vpop.f32.mrb[0].mxu0
    %v1157 = vadd.f32 %v902, %v1156
    %v1158 = vpop.f32.mrb[0].mxu0
    %v1159 = vpop.f32.mrb[0].mxu0
    %v1160 = vadd.f32 %v902, %v1159
    %v1161 = vpop.f32.mrb[0].mxu0
    %1162 = vmatprep.mubr.bf16.mxu0 0
    %1163 = vmatmul.mubr.bf16.gmra.mrb[0].mxu0 %v1109
    %v1164 = vpop.f32.mrb[0].mxu0
    %v1165 = vadd.f32 %v902, %v1164
    %v1166 = vpop.f32.mrb[0].mxu0
    %v1167 = vpop.f32.mrb[0].mxu0
    %v1168 = vadd.f32 %v902, %v1167
    %v1169 = vpop.f32.mrb[0].mxu0
    %1170 = vdwg.mxu0
    %v1171 = vadd.f32 %v31, %v1149
    %v1172 = vadd.f32 %v32, %v1152
    %v1173 = vadd.f32 %v33, %v1157
    %v1174 = vadd.f32 %v34, %v1160
    %v1175 = vadd.f32 %v35, %v1165
    %v1176 = vadd.f32 %v36, %v1168
    %v1177 = vsel %vm65, %v1171, 0.0
    %1178 = vadd.xlane.f32.xlu0 %v1177
    %v1179 = vpop.xlane.xlu0 %1178
    %v1180 = vsel %vm65, %v1172, 0.0
    %1181 = vadd.xlane.f32.xlu0 %v1180
    %v1182 = vpop.xlane.xlu0 %1181
    %v1183 = vsel %vm65, %v1173, 0.0
    %1184 = vadd.xlane.f32.xlu0 %v1183
    %v1185 = vpop.xlane.xlu0 %1184
    %v1186 = vsel %vm65, %v1174, 0.0
    %1187 = vadd.xlane.f32.xlu0 %v1186
    %v1188 = vpop.xlane.xlu0 %1187
    %v1189 = vsel %vm65, %v1175, 0.0
    %1190 = vadd.xlane.f32.xlu0 %v1189
    %v1191 = vpop.xlane.xlu0 %1190
    %v1192 = vsel %vm65, %v1176, 0.0
    %1193 = vadd.xlane.f32.xlu0 %v1192
    %v1194 = vpop.xlane.xlu0 %1193
    %v1195 = vrcp.pop 20.0
    %v1196 = vmul.f32 %v1179, %v1195
    %v1197 = vmul.f32 %v1182, %v1195
    %v1198 = vmul.f32 %v1185, %v1195
    %v1199 = vmul.f32 %v1188, %v1195
    %v1200 = vmul.f32 %v1191, %v1195
    %v1201 = vmul.f32 %v1194, %v1195
    %v1202 = vsub.f32 %v1171, %v1196
    %v1203 = vsub.f32 %v1172, %v1197
    %v1204 = vsub.f32 %v1173, %v1198
    %v1205 = vsub.f32 %v1174, %v1199
    %v1206 = vsub.f32 %v1175, %v1200
    %v1207 = vsub.f32 %v1176, %v1201
    %v1208 = vmul.f32 %v1202, %v1202
    %v1209 = vmul.f32 %v1203, %v1203
    %v1210 = vmul.f32 %v1204, %v1204
    %v1211 = vmul.f32 %v1205, %v1205
    %v1212 = vmul.f32 %v1206, %v1206
    %v1213 = vmul.f32 %v1207, %v1207
    %v1214 = vsel %vm65, %v1208, 0.0
    %1215 = vadd.xlane.f32.xlu0 %v1214
    %v1216 = vpop.xlane.xlu0 %1215
    %v1217 = vsel %vm65, %v1209, 0.0
    %1218 = vadd.xlane.f32.xlu0 %v1217
    %v1219 = vpop.xlane.xlu0 %1218
    %v1220 = vsel %vm65, %v1210, 0.0
    %1221 = vadd.xlane.f32.xlu0 %v1220
    %v1222 = vpop.xlane.xlu0 %1221
    %v1223 = vsel %vm65, %v1211, 0.0
    %1224 = vadd.xlane.f32.xlu0 %v1223
    %v1225 = vpop.xlane.xlu0 %1224
    %v1226 = vsel %vm65, %v1212, 0.0
    %1227 = vadd.xlane.f32.xlu0 %v1226
    %v1228 = vpop.xlane.xlu0 %1227
    %v1229 = vsel %vm65, %v1213, 0.0
    %1230 = vadd.xlane.f32.xlu0 %v1229
    %v1231 = vpop.xlane.xlu0 %1230
    %v1232 = vmul.f32 %v1216, %v1195
    %v1233 = vmul.f32 %v1219, %v1195
    %v1234 = vmul.f32 %v1222, %v1195
    %v1235 = vmul.f32 %v1225, %v1195
    %v1236 = vmul.f32 %v1228, %v1195
    %v1237 = vmul.f32 %v1231, %v1195
    %v1238 = vadd.f32 %v1232, 1e-05
    %v1239 = vadd.f32 %v1233, 1e-05
    %v1240 = vadd.f32 %v1234, 1e-05
    %v1241 = vadd.f32 %v1235, 1e-05
    %v1242 = vadd.f32 %v1236, 1e-05
    %v1243 = vadd.f32 %v1237, 1e-05
    %v1244 = vrsqrt.pop %v1238
    %v1245 = vrsqrt.pop %v1239
    %v1246 = vrsqrt.pop %v1240
    %v1247 = vrsqrt.pop %v1241
    %v1248 = vrsqrt.pop %v1242
    %v1249 = vrsqrt.pop %v1243
    %v1250 = vmul.f32 %v1202, %v1244
    %v1251 = vmul.f32 %v1203, %v1245
    %v1252 = vmul.f32 %v1204, %v1246
    %v1253 = vmul.f32 %v1205, %v1247
    %v1254 = vmul.f32 %v1206, %v1248
    %v1255 = vmul.f32 %v1207, %v1249
    %v1256 = vlaneseq
    %v1257 = vshrl.u32 %v1256, 7
    %v1258 = vsub.s32 0, %v1257
    %v1259 = vrot.slane %v41, %v1258
    %v1260 = vmul.f32 %v1250, %v1259
    %v1261 = vmul.f32 %v1251, %v1259
    %v1262 = vmul.f32 %v1252, %v1259
    %v1263 = vmul.f32 %v1253, %v1259
    %v1264 = vmul.f32 %v1254, %v1259
    %v1265 = vmul.f32 %v1255, %v1259
    %v1266 = vlaneseq
    %v1267 = vshrl.u32 %v1266, 7
    %v1268 = vsub.s32 0, %v1267
    %v1269 = vrot.slane %v42, %v1268
    %v1270 = vadd.f32 %v1260, %v1269
    %v1271 = vadd.f32 %v1261, %v1269
    %v1272 = vadd.f32 %v1262, %v1269
    %v1273 = vadd.f32 %v1263, %v1269
    %v1274 = vadd.f32 %v1264, %v1269
    %v1275 = vadd.f32 %v1265, %v1269
    %v1276 = vpack.c.bf16 %v1271, %v1270
    %v1277 = vpack.c.bf16 %v1273, %v1272
    %v1278 = vpack.c.bf16 %v1275, %v1274
    %v1279 = vld [vmem:[%s4] sm:$0xff]
    %v1280 = vld [vmem:[%s4 + $0x8] sm:$0xff]
    %v1281 = vld [vmem:[%s4 + $0x10] sm:$0xff]
    %v1282 = vld [vmem:[%s4 + $0x18] sm:$0xff]
    %v1283 = vld [vmem:[%s4 + $0x20] sm:$0xff]
    %v1284 = vld [vmem:[%s4 + $0x28] sm:$0xff]
    %v1285 = vld [vmem:[%s4 + $0x30] sm:$0xff]
    %v1286 = vld [vmem:[%s4 + $0x38] sm:$0xff]
    %v1287 = vld [vmem:[%s4 + $0x40] sm:$0xff]
    %v1288 = vld [vmem:[%s4 + $0x48] sm:$0xff]
    %v1289 = vld [vmem:[%s4 + $0x50] sm:$0xff]
    %v1290 = vld [vmem:[%s4 + $0x58] sm:$0xff]
    %v1291 = vld [vmem:[%s4 + $0x60] sm:$0xff]
    %v1292 = vld [vmem:[%s4 + $0x68] sm:$0xff]
    %v1293 = vld [vmem:[%s4 + $0x70] sm:$0xff]
    %v1294 = vld [vmem:[%s4 + $0x78] sm:$0xff]
    %v1295 = vld [vmem:[%s4 + $0x80] sm:$0x33]
    %v1296 = vld [vmem:[%s4 + $0x88] sm:$0x33]
    %v1297 = vld [vmem:[%s4 + $0x90] sm:$0x33]
    %v1298 = vld [vmem:[%s4 + $0x98] sm:$0x33]
    %v1299 = vld [vmem:[%s4 + $0xa0] sm:$0x33]
    %v1300 = vld [vmem:[%s4 + $0xa8] sm:$0x33]
    %v1301 = vld [vmem:[%s4 + $0xb0] sm:$0x33]
    %v1302 = vld [vmem:[%s4 + $0xb8] sm:$0x33]
    %v1303 = vld [vmem:[%s5] sm:$0xff]
    %v1304 = vld [vmem:[%s5 + $0x8] sm:$0xff]
    %v1307 = vlaneseq
    %v1308 = vshrl.u32 %v1307, 7
    %v1309 = vsub.s32 0, %v1308
    %v1310 = vrot.slane %v1303, %v1309
    %v1311 = vlaneseq
    %v1312 = vshrl.u32 %v1311, 7
    %v1313 = vsub.s32 1, %v1312
    %v1314 = vrot.slane %v1303, %v1313
    %v1315 = vlaneseq
    %v1316 = vshrl.u32 %v1315, 7
    %v1317 = vsub.s32 2, %v1316
    %v1318 = vrot.slane %v1303, %v1317
    %v1319 = vlaneseq
    %v1320 = vshrl.u32 %v1319, 7
    %v1321 = vsub.s32 3, %v1320
    %v1322 = vrot.slane %v1303, %v1321
    %v1323 = vlaneseq
    %v1324 = vshrl.u32 %v1323, 7
    %v1325 = vsub.s32 4, %v1324
    %v1326 = vrot.slane %v1303, %v1325
    %v1327 = vlaneseq
    %v1328 = vshrl.u32 %v1327, 7
    %v1329 = vsub.s32 5, %v1328
    %v1330 = vrot.slane %v1303, %v1329
    %v1331 = vlaneseq
    %v1332 = vshrl.u32 %v1331, 7
    %v1333 = vsub.s32 6, %v1332
    %v1334 = vrot.slane %v1303, %v1333
    %v1335 = vlaneseq
    %v1336 = vshrl.u32 %v1335, 7
    %v1337 = vsub.s32 7, %v1336
    %v1338 = vrot.slane %v1303, %v1337
    %v1339 = vlaneseq
    %v1340 = vshrl.u32 %v1339, 7
    %v1341 = vsub.s32 0, %v1340
    %v1342 = vrot.slane %v1304, %v1341
    %v1343 = vlaneseq
    %v1344 = vshrl.u32 %v1343, 7
    %v1345 = vsub.s32 1, %v1344
    %v1346 = vrot.slane %v1304, %v1345
    %v1347 = vlaneseq
    %v1348 = vshrl.u32 %v1347, 7
    %v1349 = vsub.s32 2, %v1348
    %v1350 = vrot.slane %v1304, %v1349
    %v1351 = vlaneseq
    %v1352 = vshrl.u32 %v1351, 7
    %v1353 = vsub.s32 3, %v1352
    %v1354 = vrot.slane %v1304, %v1353
    %v1355 = vlaneseq
    %v1356 = vshrl.u32 %v1355, 7
    %v1357 = vsub.s32 4, %v1356
    %v1358 = vrot.slane %v1304, %v1357
    %v1359 = vlaneseq
    %v1360 = vshrl.u32 %v1359, 7
    %v1361 = vsub.s32 5, %v1360
    %v1362 = vrot.slane %v1304, %v1361
    %v1363 = vlaneseq
    %v1364 = vshrl.u32 %v1363, 7
    %v1365 = vsub.s32 6, %v1364
    %v1366 = vrot.slane %v1304, %v1365
    %v1367 = vlaneseq
    %v1368 = vshrl.u32 %v1367, 7
    %v1369 = vsub.s32 7, %v1368
    %v1370 = vrot.slane %v1304, %v1369
    %v1411 = vunpack.c.l.b16 %v1279
    %v1412 = vunpack.c.h.b16 %v1279
    %v1413 = vunpack.c.l.b16 %v1280
    %v1414 = vunpack.c.h.b16 %v1280
    %v1415 = vunpack.c.l.b16 %v1281
    %v1416 = vunpack.c.h.b16 %v1281
    %v1417 = vunpack.c.l.b16 %v1282
    %v1418 = vunpack.c.h.b16 %v1282
    %v1419 = vunpack.c.l.b16 %v1283
    %v1420 = vunpack.c.h.b16 %v1283
    %v1421 = vunpack.c.l.b16 %v1284
    %v1422 = vunpack.c.h.b16 %v1284
    %v1423 = vunpack.c.l.b16 %v1285
    %v1424 = vunpack.c.h.b16 %v1285
    %v1425 = vunpack.c.l.b16 %v1286
    %v1426 = vunpack.c.h.b16 %v1286
    %v1427 = vunpack.c.l.b16 %v1287
    %v1428 = vunpack.c.h.b16 %v1287
    %v1429 = vunpack.c.l.b16 %v1288
    %v1430 = vunpack.c.h.b16 %v1288
    %v1431 = vunpack.c.l.b16 %v1289
    %v1432 = vunpack.c.h.b16 %v1289
    %v1433 = vunpack.c.l.b16 %v1290
    %v1434 = vunpack.c.h.b16 %v1290
    %v1435 = vunpack.c.l.b16 %v1291
    %v1436 = vunpack.c.h.b16 %v1291
    %v1437 = vunpack.c.l.b16 %v1292
    %v1438 = vunpack.c.h.b16 %v1292
    %v1439 = vunpack.c.l.b16 %v1293
    %v1440 = vunpack.c.h.b16 %v1293
    %v1441 = vunpack.c.l.b16 %v1294
    %v1442 = vunpack.c.h.b16 %v1294
    %v1443 = vunpack.c.l.b16 %v1295
    %v1444 = vunpack.c.h.b16 %v1295
    %v1445 = vunpack.c.l.b16 %v1296
    %v1446 = vunpack.c.h.b16 %v1296
    %v1447 = vunpack.c.l.b16 %v1297
    %v1448 = vunpack.c.h.b16 %v1297
    %v1449 = vunpack.c.l.b16 %v1298
    %v1450 = vunpack.c.h.b16 %v1298
    %v1451 = vunpack.c.l.b16 %v1299
    %v1452 = vunpack.c.h.b16 %v1299
    %v1453 = vunpack.c.l.b16 %v1300
    %v1454 = vunpack.c.h.b16 %v1300
    %v1455 = vunpack.c.l.b16 %v1301
    %v1456 = vunpack.c.h.b16 %v1301
    %v1457 = vunpack.c.l.b16 %v1302
    %v1458 = vunpack.c.h.b16 %v1302
    %v1459 = vpack.c.b16 %v1427, %v1411
    %v1460 = vpack.c.b16 %v1428, %v1412
    %v1461 = vpack.c.b16 %v1429, %v1413
    %v1462 = vpack.c.b16 %v1430, %v1414
    %v1463 = vpack.c.b16 %v1431, %v1415
    %v1464 = vpack.c.b16 %v1432, %v1416
    %v1465 = vpack.c.b16 %v1433, %v1417
    %v1466 = vpack.c.b16 %v1434, %v1418
    %v1467 = vpack.c.b16 %v1435, %v1419
    %v1468 = vpack.c.b16 %v1436, %v1420
    %v1469 = vpack.c.b16 %v1437, %v1421
    %v1470 = vpack.c.b16 %v1438, %v1422
    %v1471 = vpack.c.b16 %v1439, %v1423
    %v1472 = vpack.c.b16 %v1440, %v1424
    %v1473 = vpack.c.b16 %v1441, %v1425
    %v1474 = vpack.c.b16 %v1442, %v1426
    %v1475 = vpack.c.b16 %v1443, %v1443
    %v1476 = vpack.c.b16 %v1444, %v1444
    %v1477 = vpack.c.b16 %v1445, %v1445
    %v1478 = vpack.c.b16 %v1446, %v1446
    %v1479 = vpack.c.b16 %v1447, %v1447
    %v1480 = vpack.c.b16 %v1448, %v1448
    %v1481 = vpack.c.b16 %v1449, %v1449
    %v1482 = vpack.c.b16 %v1450, %v1450
    %v1483 = vpack.c.b16 %v1451, %v1451
    %v1484 = vpack.c.b16 %v1452, %v1452
    %v1485 = vpack.c.b16 %v1453, %v1453
    %v1486 = vpack.c.b16 %v1454, %v1454
    %v1487 = vpack.c.b16 %v1455, %v1455
    %v1488 = vpack.c.b16 %v1456, %v1456
    %v1489 = vpack.c.b16 %v1457, %v1457
    %v1490 = vpack.c.b16 %v1458, %v1458
    %v1508 = vsel %vm65, %v1276, 0
    %v1511 = vsel %vm65, %v1277, 0
    %v1514 = vsel %vm65, %v1278, 0
    %v1517 = vsel %vm75, %v1475, 0
    %v1520 = vsel %vm75, %v1476, 0
    %v1523 = vsel %vm75, %v1477, 0
    %v1526 = vsel %vm75, %v1478, 0
    %v1529 = vsel %vm75, %v1479, 0
    %v1532 = vsel %vm75, %v1480, 0
    %v1535 = vsel %vm75, %v1481, 0
    %v1538 = vsel %vm75, %v1482, 0
    %v1541 = vsel %vm75, %v1483, 0
    %v1544 = vsel %vm75, %v1484, 0
    %v1547 = vsel %vm75, %v1485, 0
    %v1550 = vsel %vm75, %v1486, 0
    %v1553 = vsel %vm75, %v1487, 0
    %v1556 = vsel %vm75, %v1488, 0
    %v1559 = vsel %vm75, %v1489, 0
    %v1562 = vsel %vm75, %v1490, 0
    %1564 = vmatprep.subr.bf16.mxu0 %v1460
    %1565 = vmatpush1.bf16.msra.mxu0 %v1459
    %1566 = vmatprep.subr.bf16.mxu0 %v1520
    %1567 = vmatpush1.bf16.msra.mxu0 %v1517
    %1568 = vmatprep.subr.bf16.mxu0 0
    %1569 = vmatpush1.bf16.msra.mxu0 0
    %1570 = vmatprep.subr.bf16.mxu0 0
    %1571 = vmatpush1.bf16.msra.mxu0 0
    %1572 = vmatprep.subr.bf16.mxu0 0
    %1573 = vmatpush1.bf16.msra.mxu0 0
    %1574 = vmatprep.subr.bf16.mxu0 0
    %1575 = vmatpush1.bf16.msra.mxu0 0
    %1576 = vmatprep.subr.bf16.mxu0 0
    %1577 = vmatpush1.bf16.msra.mxu0 0
    %1578 = vmatprep.subr.bf16.mxu0 0
    %1579 = vmatpush1.bf16.msra.mxu0 0
    %1580 = vmatprep.subr.bf16.mxu0 0
    %1581 = vmatpush1.bf16.msra.mxu0 0
    %1582 = vmatprep.subr.bf16.mxu0 0
    %1583 = vmatpush1.bf16.msra.mxu0 0
    %1584 = vmatprep.subr.bf16.mxu0 0
    %1585 = vmatpush1.bf16.msra.mxu0 0
    %1586 = vmatprep.subr.bf16.mxu0 0
    %1587 = vmatpush1.bf16.msra.mxu0 0
    %1588 = vmatprep.subr.bf16.mxu0 0
    %1589 = vmatpush1.bf16.msra.mxu0 0
    %1590 = vmatprep.subr.bf16.mxu0 0
    %1591 = vmatpush1.bf16.msra.mxu0 0
    %1592 = vmatprep.subr.bf16.mxu0 0
    %1593 = vmatpush1.bf16.msra.mxu0 0
    %1594 = vmatprep.subr.bf16.mxu0 0
    %1595 = vmatpush1.bf16.msra.mxu0 0
    %1596 = vmatprep.mubr.bf16.mxu0 0
    %1597 = vmatmul.mubr.bf16.gmra.mrb[0].mxu0 %v1508
    %v1598 = vpop.f32.mrb[0].mxu0
    %v1599 = vadd.f32 %v1310, %v1598
    %v1600 = vpop.f32.mrb[0].mxu0
    %v1601 = vadd.f32 %v1314, %v1600
    %v1602 = vpop.f32.mrb[0].mxu0
    %v1603 = vadd.f32 %v1310, %v1602
    %v1604 = vpop.f32.mrb[0].mxu0
    %v1605 = vadd.f32 %v1314, %v1604
    %1606 = vmatprep.mubr.bf16.mxu0 0
    %1607 = vmatmul.mubr.bf16.gmra.mrb[0].mxu0 %v1511
    %v1608 = vpop.f32.mrb[0].mxu0
    %v1609 = vadd.f32 %v1310, %v1608
    %v1610 = vpop.f32.mrb[0].mxu0
    %v1611 = vadd.f32 %v1314, %v1610
    %v1612 = vpop.f32.mrb[0].mxu0
    %v1613 = vadd.f32 %v1310, %v1612
    %v1614 = vpop.f32.mrb[0].mxu0
    %v1615 = vadd.f32 %v1314, %v1614
    %1616 = vmatprep.mubr.bf16.mxu0 0
    %1617 = vmatmul.mubr.bf16.gmra.mrb[0].mxu0 %v1514
    %v1618 = vpop.f32.mrb[0].mxu0
    %v1619 = vadd.f32 %v1310, %v1618
    %v1620 = vpop.f32.mrb[0].mxu0
    %v1621 = vadd.f32 %v1314, %v1620
    %v1622 = vpop.f32.mrb[0].mxu0
    %v1623 = vadd.f32 %v1310, %v1622
    %v1624 = vpop.f32.mrb[0].mxu0
    %v1625 = vadd.f32 %v1314, %v1624
    %1626 = vdwg.mxu0
    %1627 = vmatprep.subr.bf16.mxu0 %v1462
    %1628 = vmatpush1.bf16.msra.mxu0 %v1461
    %1629 = vmatprep.subr.bf16.mxu0 %v1526
    %1630 = vmatpush1.bf16.msra.mxu0 %v1523
    %1631 = vmatprep.subr.bf16.mxu0 0
    %1632 = vmatpush1.bf16.msra.mxu0 0
    %1633 = vmatprep.subr.bf16.mxu0 0
    %1634 = vmatpush1.bf16.msra.mxu0 0
    %1635 = vmatprep.subr.bf16.mxu0 0
    %1636 = vmatpush1.bf16.msra.mxu0 0
    %1637 = vmatprep.subr.bf16.mxu0 0
    %1638 = vmatpush1.bf16.msra.mxu0 0
    %1639 = vmatprep.subr.bf16.mxu0 0
    %1640 = vmatpush1.bf16.msra.mxu0 0
    %1641 = vmatprep.subr.bf16.mxu0 0
    %1642 = vmatpush1.bf16.msra.mxu0 0
    %1643 = vmatprep.subr.bf16.mxu0 0
    %1644 = vmatpush1.bf16.msra.mxu0 0
    %1645 = vmatprep.subr.bf16.mxu0 0
    %1646 = vmatpush1.bf16.msra.mxu0 0
    %1647 = vmatprep.subr.bf16.mxu0 0
    %1648 = vmatpush1.bf16.msra.mxu0 0
    %1649 = vmatprep.subr.bf16.mxu0 0
    %1650 = vmatpush1.bf16.msra.mxu0 0
    %1651 = vmatprep.subr.bf16.mxu0 0
    %1652 = vmatpush1.bf16.msra.mxu0 0
    %1653 = vmatprep.subr.bf16.mxu0 0
    %1654 = vmatpush1.bf16.msra.mxu0 0
    %1655 = vmatprep.subr.bf16.mxu0 0
    %1656 = vmatpush1.bf16.msra.mxu0 0
    %1657 = vmatprep.subr.bf16.mxu0 0
    %1658 = vmatpush1.bf16.msra.mxu0 0
    %1659 = vmatprep.mubr.bf16.mxu0 0
    %1660 = vmatmul.mubr.bf16.gmra.mrb[0].mxu0 %v1508
    %v1661 = vpop.f32.mrb[0].mxu0
    %v1662 = vadd.f32 %v1318, %v1661
    %v1663 = vpop.f32.mrb[0].mxu0
    %v1664 = vadd.f32 %v1322, %v1663
    %v1665 = vpop.f32.mrb[0].mxu0
    %v1666 = vadd.f32 %v1318, %v1665
    %v1667 = vpop.f32.mrb[0].mxu0
    %v1668 = vadd.f32 %v1322, %v1667
    %1669 = vmatprep.mubr.bf16.mxu0 0
    %1670 = vmatmul.mubr.bf16.gmra.mrb[0].mxu0 %v1511
    %v1671 = vpop.f32.mrb[0].mxu0
    %v1672 = vadd.f32 %v1318, %v1671
    %v1673 = vpop.f32.mrb[0].mxu0
    %v1674 = vadd.f32 %v1322, %v1673
    %v1675 = vpop.f32.mrb[0].mxu0
    %v1676 = vadd.f32 %v1318, %v1675
    %v1677 = vpop.f32.mrb[0].mxu0
    %v1678 = vadd.f32 %v1322, %v1677
    %1679 = vmatprep.mubr.bf16.mxu0 0
    %1680 = vmatmul.mubr.bf16.gmra.mrb[0].mxu0 %v1514
    %v1681 = vpop.f32.mrb[0].mxu0
    %v1682 = vadd.f32 %v1318, %v1681
    %v1683 = vpop.f32.mrb[0].mxu0
    %v1684 = vadd.f32 %v1322, %v1683
    %v1685 = vpop.f32.mrb[0].mxu0
    %v1686 = vadd.f32 %v1318, %v1685
    %v1687 = vpop.f32.mrb[0].mxu0
    %v1688 = vadd.f32 %v1322, %v1687
    %1689 = vdwg.mxu0
    %1690 = vmatprep.subr.bf16.mxu0 %v1464
    %1691 = vmatpush1.bf16.msra.mxu0 %v1463
    %1692 = vmatprep.subr.bf16.mxu0 %v1532
    %1693 = vmatpush1.bf16.msra.mxu0 %v1529
    %1694 = vmatprep.subr.bf16.mxu0 0
    %1695 = vmatpush1.bf16.msra.mxu0 0
    %1696 = vmatprep.subr.bf16.mxu0 0
    %1697 = vmatpush1.bf16.msra.mxu0 0
    %1698 = vmatprep.subr.bf16.mxu0 0
    %1699 = vmatpush1.bf16.msra.mxu0 0
    %1700 = vmatprep.subr.bf16.mxu0 0
    %1701 = vmatpush1.bf16.msra.mxu0 0
    %1702 = vmatprep.subr.bf16.mxu0 0
    %1703 = vmatpush1.bf16.msra.mxu0 0
    %1704 = vmatprep.subr.bf16.mxu0 0
    %1705 = vmatpush1.bf16.msra.mxu0 0
    %1706 = vmatprep.subr.bf16.mxu0 0
    %1707 = vmatpush1.bf16.msra.mxu0 0
    %1708 = vmatprep.subr.bf16.mxu0 0
    %1709 = vmatpush1.bf16.msra.mxu0 0
    %1710 = vmatprep.subr.bf16.mxu0 0
    %1711 = vmatpush1.bf16.msra.mxu0 0
    %1712 = vmatprep.subr.bf16.mxu0 0
    %1713 = vmatpush1.bf16.msra.mxu0 0
    %1714 = vmatprep.subr.bf16.mxu0 0
    %1715 = vmatpush1.bf16.msra.mxu0 0
    %1716 = vmatprep.subr.bf16.mxu0 0
    %1717 = vmatpush1.bf16.msra.mxu0 0
    %1718 = vmatprep.subr.bf16.mxu0 0
    %1719 = vmatpush1.bf16.msra.mxu0 0
    %1720 = vmatprep.subr.bf16.mxu0 0
    %1721 = vmatpush1.bf16.msra.mxu0 0
    %1722 = vmatprep.mubr.bf16.mxu0 0
    %1723 = vmatmul.mubr.bf16.gmra.mrb[0].mxu0 %v1508
    %v1724 = vpop.f32.mrb[0].mxu0
    %v1725 = vadd.f32 %v1326, %v1724
    %v1726 = vpop.f32.mrb[0].mxu0
    %v1727 = vadd.f32 %v1330, %v1726
    %v1728 = vpop.f32.mrb[0].mxu0
    %v1729 = vadd.f32 %v1326, %v1728
    %v1730 = vpop.f32.mrb[0].mxu0
    %v1731 = vadd.f32 %v1330, %v1730
    %1732 = vmatprep.mubr.bf16.mxu0 0
    %1733 = vmatmul.mubr.bf16.gmra.mrb[0].mxu0 %v1511
    %v1734 = vpop.f32.mrb[0].mxu0
    %v1735 = vadd.f32 %v1326, %v1734
    %v1736 = vpop.f32.mrb[0].mxu0
    %v1737 = vadd.f32 %v1330, %v1736
    %v1738 = vpop.f32.mrb[0].mxu0
    %v1739 = vadd.f32 %v1326, %v1738
    %v1740 = vpop.f32.mrb[0].mxu0
    %v1741 = vadd.f32 %v1330, %v1740
    %1742 = vmatprep.mubr.bf16.mxu0 0
    %1743 = vmatmul.mubr.bf16.gmra.mrb[0].mxu0 %v1514
    %v1744 = vpop.f32.mrb[0].mxu0
    %v1745 = vadd.f32 %v1326, %v1744
    %v1746 = vpop.f32.mrb[0].mxu0
    %v1747 = vadd.f32 %v1330, %v1746
    %v1748 = vpop.f32.mrb[0].mxu0
    %v1749 = vadd.f32 %v1326, %v1748
    %v1750 = vpop.f32.mrb[0].mxu0
    %v1751 = vadd.f32 %v1330, %v1750
    %1752 = vdwg.mxu0
    %1753 = vmatprep.subr.bf16.mxu0 %v1466
    %1754 = vmatpush1.bf16.msra.mxu0 %v1465
    %1755 = vmatprep.subr.bf16.mxu0 %v1538
    %1756 = vmatpush1.bf16.msra.mxu0 %v1535
    %1757 = vmatprep.subr.bf16.mxu0 0
    %1758 = vmatpush1.bf16.msra.mxu0 0
    %1759 = vmatprep.subr.bf16.mxu0 0
    %1760 = vmatpush1.bf16.msra.mxu0 0
    %1761 = vmatprep.subr.bf16.mxu0 0
    %1762 = vmatpush1.bf16.msra.mxu0 0
    %1763 = vmatprep.subr.bf16.mxu0 0
    %1764 = vmatpush1.bf16.msra.mxu0 0
    %1765 = vmatprep.subr.bf16.mxu0 0
    %1766 = vmatpush1.bf16.msra.mxu0 0
    %1767 = vmatprep.subr.bf16.mxu0 0
    %1768 = vmatpush1.bf16.msra.mxu0 0
    %1769 = vmatprep.subr.bf16.mxu0 0
    %1770 = vmatpush1.bf16.msra.mxu0 0
    %1771 = vmatprep.subr.bf16.mxu0 0
    %1772 = vmatpush1.bf16.msra.mxu0 0
    %1773 = vmatprep.subr.bf16.mxu0 0
    %1774 = vmatpush1.bf16.msra.mxu0 0
    %1775 = vmatprep.subr.bf16.mxu0 0
    %1776 = vmatpush1.bf16.msra.mxu0 0
    %1777 = vmatprep.subr.bf16.mxu0 0
    %1778 = vmatpush1.bf16.msra.mxu0 0
    %1779 = vmatprep.subr.bf16.mxu0 0
    %1780 = vmatpush1.bf16.msra.mxu0 0
    %1781 = vmatprep.subr.bf16.mxu0 0
    %1782 = vmatpush1.bf16.msra.mxu0 0
    %1783 = vmatprep.subr.bf16.mxu0 0
    %1784 = vmatpush1.bf16.msra.mxu0 0
    %1785 = vmatprep.mubr.bf16.mxu0 0
    %1786 = vmatmul.mubr.bf16.gmra.mrb[0].mxu0 %v1508
    %v1787 = vpop.f32.mrb[0].mxu0
    %v1788 = vadd.f32 %v1334, %v1787
    %v1789 = vpop.f32.mrb[0].mxu0
    %v1790 = vadd.f32 %v1338, %v1789
    %v1791 = vpop.f32.mrb[0].mxu0
    %v1792 = vadd.f32 %v1334, %v1791
    %v1793 = vpop.f32.mrb[0].mxu0
    %v1794 = vadd.f32 %v1338, %v1793
    %1795 = vmatprep.mubr.bf16.mxu0 0
    %1796 = vmatmul.mubr.bf16.gmra.mrb[0].mxu0 %v1511
    %v1797 = vpop.f32.mrb[0].mxu0
    %v1798 = vadd.f32 %v1334, %v1797
    %v1799 = vpop.f32.mrb[0].mxu0
    %v1800 = vadd.f32 %v1338, %v1799
    %v1801 = vpop.f32.mrb[0].mxu0
    %v1802 = vadd.f32 %v1334, %v1801
    %v1803 = vpop.f32.mrb[0].mxu0
    %v1804 = vadd.f32 %v1338, %v1803
    %1805 = vmatprep.mubr.bf16.mxu0 0
    %1806 = vmatmul.mubr.bf16.gmra.mrb[0].mxu0 %v1514
    %v1807 = vpop.f32.mrb[0].mxu0
    %v1808 = vadd.f32 %v1334, %v1807
    %v1809 = vpop.f32.mrb[0].mxu0
    %v1810 = vadd.f32 %v1338, %v1809
    %v1811 = vpop.f32.mrb[0].mxu0
    %v1812 = vadd.f32 %v1334, %v1811
    %v1813 = vpop.f32.mrb[0].mxu0
    %v1814 = vadd.f32 %v1338, %v1813
    %1815 = vdwg.mxu0
    %1816 = vmatprep.subr.bf16.mxu0 %v1468
    %1817 = vmatpush1.bf16.msra.mxu0 %v1467
    %1818 = vmatprep.subr.bf16.mxu0 %v1544
    %1819 = vmatpush1.bf16.msra.mxu0 %v1541
    %1820 = vmatprep.subr.bf16.mxu0 0
    %1821 = vmatpush1.bf16.msra.mxu0 0
    %1822 = vmatprep.subr.bf16.mxu0 0
    %1823 = vmatpush1.bf16.msra.mxu0 0
    %1824 = vmatprep.subr.bf16.mxu0 0
    %1825 = vmatpush1.bf16.msra.mxu0 0
    %1826 = vmatprep.subr.bf16.mxu0 0
    %1827 = vmatpush1.bf16.msra.mxu0 0
    %1828 = vmatprep.subr.bf16.mxu0 0
    %1829 = vmatpush1.bf16.msra.mxu0 0
    %1830 = vmatprep.subr.bf16.mxu0 0
    %1831 = vmatpush1.bf16.msra.mxu0 0
    %1832 = vmatprep.subr.bf16.mxu0 0
    %1833 = vmatpush1.bf16.msra.mxu0 0
    %1834 = vmatprep.subr.bf16.mxu0 0
    %1835 = vmatpush1.bf16.msra.mxu0 0
    %1836 = vmatprep.subr.bf16.mxu0 0
    %1837 = vmatpush1.bf16.msra.mxu0 0
    %1838 = vmatprep.subr.bf16.mxu0 0
    %1839 = vmatpush1.bf16.msra.mxu0 0
    %1840 = vmatprep.subr.bf16.mxu0 0
    %1841 = vmatpush1.bf16.msra.mxu0 0
    %1842 = vmatprep.subr.bf16.mxu0 0
    %1843 = vmatpush1.bf16.msra.mxu0 0
    %1844 = vmatprep.subr.bf16.mxu0 0
    %1845 = vmatpush1.bf16.msra.mxu0 0
    %1846 = vmatprep.subr.bf16.mxu0 0
    %1847 = vmatpush1.bf16.msra.mxu0 0
    %1848 = vmatprep.mubr.bf16.mxu0 0
    %1849 = vmatmul.mubr.bf16.gmra.mrb[0].mxu0 %v1508
    %v1850 = vpop.f32.mrb[0].mxu0
    %v1851 = vadd.f32 %v1342, %v1850
    %v1852 = vpop.f32.mrb[0].mxu0
    %v1853 = vadd.f32 %v1346, %v1852
    %v1854 = vpop.f32.mrb[0].mxu0
    %v1855 = vadd.f32 %v1342, %v1854
    %v1856 = vpop.f32.mrb[0].mxu0
    %v1857 = vadd.f32 %v1346, %v1856
    %1858 = vmatprep.mubr.bf16.mxu0 0
    %1859 = vmatmul.mubr.bf16.gmra.mrb[0].mxu0 %v1511
    %v1860 = vpop.f32.mrb[0].mxu0
    %v1861 = vadd.f32 %v1342, %v1860
    %v1862 = vpop.f32.mrb[0].mxu0
    %v1863 = vadd.f32 %v1346, %v1862
    %v1864 = vpop.f32.mrb[0].mxu0
    %v1865 = vadd.f32 %v1342, %v1864
    %v1866 = vpop.f32.mrb[0].mxu0
    %v1867 = vadd.f32 %v1346, %v1866
    %1868 = vmatprep.mubr.bf16.mxu0 0
    %1869 = vmatmul.mubr.bf16.gmra.mrb[0].mxu0 %v1514
    %v1870 = vpop.f32.mrb[0].mxu0
    %v1871 = vadd.f32 %v1342, %v1870
    %v1872 = vpop.f32.mrb[0].mxu0
    %v1873 = vadd.f32 %v1346, %v1872
    %v1874 = vpop.f32.mrb[0].mxu0
    %v1875 = vadd.f32 %v1342, %v1874
    %v1876 = vpop.f32.mrb[0].mxu0
    %v1877 = vadd.f32 %v1346, %v1876
    %1878 = vdwg.mxu0
    %1879 = vmatprep.subr.bf16.mxu0 %v1470
    %1880 = vmatpush1.bf16.msra.mxu0 %v1469
    %1881 = vmatprep.subr.bf16.mxu0 %v1550
    %1882 = vmatpush1.bf16.msra.mxu0 %v1547
    %1883 = vmatprep.subr.bf16.mxu0 0
    %1884 = vmatpush1.bf16.msra.mxu0 0
    %1885 = vmatprep.subr.bf16.mxu0 0
    %1886 = vmatpush1.bf16.msra.mxu0 0
    %1887 = vmatprep.subr.bf16.mxu0 0
    %1888 = vmatpush1.bf16.msra.mxu0 0
    %1889 = vmatprep.subr.bf16.mxu0 0
    %1890 = vmatpush1.bf16.msra.mxu0 0
    %1891 = vmatprep.subr.bf16.mxu0 0
    %1892 = vmatpush1.bf16.msra.mxu0 0
    %1893 = vmatprep.subr.bf16.mxu0 0
    %1894 = vmatpush1.bf16.msra.mxu0 0
    %1895 = vmatprep.subr.bf16.mxu0 0
    %1896 = vmatpush1.bf16.msra.mxu0 0
    %1897 = vmatprep.subr.bf16.mxu0 0
    %1898 = vmatpush1.bf16.msra.mxu0 0
    %1899 = vmatprep.subr.bf16.mxu0 0
    %1900 = vmatpush1.bf16.msra.mxu0 0
    %1901 = vmatprep.subr.bf16.mxu0 0
    %1902 = vmatpush1.bf16.msra.mxu0 0
    %1903 = vmatprep.subr.bf16.mxu0 0
    %1904 = vmatpush1.bf16.msra.mxu0 0
    %1905 = vmatprep.subr.bf16.mxu0 0
    %1906 = vmatpush1.bf16.msra.mxu0 0
    %1907 = vmatprep.subr.bf16.mxu0 0
    %1908 = vmatpush1.bf16.msra.mxu0 0
    %1909 = vmatprep.subr.bf16.mxu0 0
    %1910 = vmatpush1.bf16.msra.mxu0 0
    %1911 = vmatprep.mubr.bf16.mxu0 0
    %1912 = vmatmul.mubr.bf16.gmra.mrb[0].mxu0 %v1508
    %v1913 = vpop.f32.mrb[0].mxu0
    %v1914 = vadd.f32 %v1350, %v1913
    %v1915 = vpop.f32.mrb[0].mxu0
    %v1916 = vadd.f32 %v1354, %v1915
    %v1917 = vpop.f32.mrb[0].mxu0
    %v1918 = vadd.f32 %v1350, %v1917
    %v1919 = vpop.f32.mrb[0].mxu0
    %v1920 = vadd.f32 %v1354, %v1919
    %1921 = vmatprep.mubr.bf16.mxu0 0
    %1922 = vmatmul.mubr.bf16.gmra.mrb[0].mxu0 %v1511
    %v1923 = vpop.f32.mrb[0].mxu0
    %v1924 = vadd.f32 %v1350, %v1923
    %v1925 = vpop.f32.mrb[0].mxu0
    %v1926 = vadd.f32 %v1354, %v1925
    %v1927 = vpop.f32.mrb[0].mxu0
    %v1928 = vadd.f32 %v1350, %v1927
    %v1929 = vpop.f32.mrb[0].mxu0
    %v1930 = vadd.f32 %v1354, %v1929
    %1931 = vmatprep.mubr.bf16.mxu0 0
    %1932 = vmatmul.mubr.bf16.gmra.mrb[0].mxu0 %v1514
    %v1933 = vpop.f32.mrb[0].mxu0
    %v1934 = vadd.f32 %v1350, %v1933
    %v1935 = vpop.f32.mrb[0].mxu0
    %v1936 = vadd.f32 %v1354, %v1935
    %v1937 = vpop.f32.mrb[0].mxu0
    %v1938 = vadd.f32 %v1350, %v1937
    %v1939 = vpop.f32.mrb[0].mxu0
    %v1940 = vadd.f32 %v1354, %v1939
    %1941 = vdwg.mxu0
    %1942 = vmatprep.subr.bf16.mxu0 %v1472
    %1943 = vmatpush1.bf16.msra.mxu0 %v1471
    %1944 = vmatprep.subr.bf16.mxu0 %v1556
    %1945 = vmatpush1.bf16.msra.mxu0 %v1553
    %1946 = vmatprep.subr.bf16.mxu0 0
    %1947 = vmatpush1.bf16.msra.mxu0 0
    %1948 = vmatprep.subr.bf16.mxu0 0
    %1949 = vmatpush1.bf16.msra.mxu0 0
    %1950 = vmatprep.subr.bf16.mxu0 0
    %1951 = vmatpush1.bf16.msra.mxu0 0
    %1952 = vmatprep.subr.bf16.mxu0 0
    %1953 = vmatpush1.bf16.msra.mxu0 0
    %1954 = vmatprep.subr.bf16.mxu0 0
    %1955 = vmatpush1.bf16.msra.mxu0 0
    %1956 = vmatprep.subr.bf16.mxu0 0
    %1957 = vmatpush1.bf16.msra.mxu0 0
    %1958 = vmatprep.subr.bf16.mxu0 0
    %1959 = vmatpush1.bf16.msra.mxu0 0
    %1960 = vmatprep.subr.bf16.mxu0 0
    %1961 = vmatpush1.bf16.msra.mxu0 0
    %1962 = vmatprep.subr.bf16.mxu0 0
    %1963 = vmatpush1.bf16.msra.mxu0 0
    %1964 = vmatprep.subr.bf16.mxu0 0
    %1965 = vmatpush1.bf16.msra.mxu0 0
    %1966 = vmatprep.subr.bf16.mxu0 0
    %1967 = vmatpush1.bf16.msra.mxu0 0
    %1968 = vmatprep.subr.bf16.mxu0 0
    %1969 = vmatpush1.bf16.msra.mxu0 0
    %1970 = vmatprep.subr.bf16.mxu0 0
    %1971 = vmatpush1.bf16.msra.mxu0 0
    %1972 = vmatprep.subr.bf16.mxu0 0
    %1973 = vmatpush1.bf16.msra.mxu0 0
    %1974 = vmatprep.mubr.bf16.mxu0 0
    %1975 = vmatmul.mubr.bf16.gmra.mrb[0].mxu0 %v1508
    %v1976 = vpop.f32.mrb[0].mxu0
    %v1977 = vadd.f32 %v1358, %v1976
    %v1978 = vpop.f32.mrb[0].mxu0
    %v1979 = vadd.f32 %v1362, %v1978
    %v1980 = vpop.f32.mrb[0].mxu0
    %v1981 = vadd.f32 %v1358, %v1980
    %v1982 = vpop.f32.mrb[0].mxu0
    %v1983 = vadd.f32 %v1362, %v1982
    %1984 = vmatprep.mubr.bf16.mxu0 0
    %1985 = vmatmul.mubr.bf16.gmra.mrb[0].mxu0 %v1511
    %v1986 = vpop.f32.mrb[0].mxu0
    %v1987 = vadd.f32 %v1358, %v1986
    %v1988 = vpop.f32.mrb[0].mxu0
    %v1989 = vadd.f32 %v1362, %v1988
    %v1990 = vpop.f32.mrb[0].mxu0
    %v1991 = vadd.f32 %v1358, %v1990
    %v1992 = vpop.f32.mrb[0].mxu0
    %v1993 = vadd.f32 %v1362, %v1992
    %1994 = vmatprep.mubr.bf16.mxu0 0
    %1995 = vmatmul.mubr.bf16.gmra.mrb[0].mxu0 %v1514
    %v1996 = vpop.f32.mrb[0].mxu0
    %v1997 = vadd.f32 %v1358, %v1996
    %v1998 = vpop.f32.mrb[0].mxu0
    %v1999 = vadd.f32 %v1362, %v1998
    %v2000 = vpop.f32.mrb[0].mxu0
    %v2001 = vadd.f32 %v1358, %v2000
    %v2002 = vpop.f32.mrb[0].mxu0
    %v2003 = vadd.f32 %v1362, %v2002
    %2004 = vdwg.mxu0
    %2005 = vmatprep.subr.bf16.mxu0 %v1474
    %2006 = vmatpush1.bf16.msra.mxu0 %v1473
    %2007 = vmatprep.subr.bf16.mxu0 %v1562
    %2008 = vmatpush1.bf16.msra.mxu0 %v1559
    %2009 = vmatprep.subr.bf16.mxu0 0
    %2010 = vmatpush1.bf16.msra.mxu0 0
    %2011 = vmatprep.subr.bf16.mxu0 0
    %2012 = vmatpush1.bf16.msra.mxu0 0
    %2013 = vmatprep.subr.bf16.mxu0 0
    %2014 = vmatpush1.bf16.msra.mxu0 0
    %2015 = vmatprep.subr.bf16.mxu0 0
    %2016 = vmatpush1.bf16.msra.mxu0 0
    %2017 = vmatprep.subr.bf16.mxu0 0
    %2018 = vmatpush1.bf16.msra.mxu0 0
    %2019 = vmatprep.subr.bf16.mxu0 0
    %2020 = vmatpush1.bf16.msra.mxu0 0
    %2021 = vmatprep.subr.bf16.mxu0 0
    %2022 = vmatpush1.bf16.msra.mxu0 0
    %2023 = vmatprep.subr.bf16.mxu0 0
    %2024 = vmatpush1.bf16.msra.mxu0 0
    %2025 = vmatprep.subr.bf16.mxu0 0
    %2026 = vmatpush1.bf16.msra.mxu0 0
    %2027 = vmatprep.subr.bf16.mxu0 0
    %2028 = vmatpush1.bf16.msra.mxu0 0
    %2029 = vmatprep.subr.bf16.mxu0 0
    %2030 = vmatpush1.bf16.msra.mxu0 0
    %2031 = vmatprep.subr.bf16.mxu0 0
    %2032 = vmatpush1.bf16.msra.mxu0 0
    %2033 = vmatprep.subr.bf16.mxu0 0
    %2034 = vmatpush1.bf16.msra.mxu0 0
    %2035 = vmatprep.subr.bf16.mxu0 0
    %2036 = vmatpush1.bf16.msra.mxu0 0
    %2037 = vmatprep.mubr.bf16.mxu0 0
    %2038 = vmatmul.mubr.bf16.gmra.mrb[0].mxu0 %v1508
    %v2039 = vpop.f32.mrb[0].mxu0
    %v2040 = vadd.f32 %v1366, %v2039
    %v2041 = vpop.f32.mrb[0].mxu0
    %v2042 = vadd.f32 %v1370, %v2041
    %v2043 = vpop.f32.mrb[0].mxu0
    %v2044 = vadd.f32 %v1366, %v2043
    %v2045 = vpop.f32.mrb[0].mxu0
    %v2046 = vadd.f32 %v1370, %v2045
    %2047 = vmatprep.mubr.bf16.mxu0 0
    %2048 = vmatmul.mubr.bf16.gmra.mrb[0].mxu0 %v1511
    %v2049 = vpop.f32.mrb[0].mxu0
    %v2050 = vadd.f32 %v1366, %v2049
    %v2051 = vpop.f32.mrb[0].mxu0
    %v2052 = vadd.f32 %v1370, %v2051
    %v2053 = vpop.f32.mrb[0].mxu0
    %v2054 = vadd.f32 %v1366, %v2053
    %v2055 = vpop.f32.mrb[0].mxu0
    %v2056 = vadd.f32 %v1370, %v2055
    %2057 = vmatprep.mubr.bf16.mxu0 0
    %2058 = vmatmul.mubr.bf16.gmra.mrb[0].mxu0 %v1514
    %v2059 = vpop.f32.mrb[0].mxu0
    %v2060 = vadd.f32 %v1366, %v2059
    %v2061 = vpop.f32.mrb[0].mxu0
    %v2062 = vadd.f32 %v1370, %v2061
    %v2063 = vpop.f32.mrb[0].mxu0
    %v2064 = vadd.f32 %v1366, %v2063
    %v2065 = vpop.f32.mrb[0].mxu0
    %v2066 = vadd.f32 %v1370, %v2065
    %2067 = vdwg.mxu0
    %v2068 = vmax.f32 %v1599, 0.0
    %v2069 = vmax.f32 %v1601, 0.0
    %v2070 = vmax.f32 %v1662, 0.0
    %v2071 = vmax.f32 %v1664, 0.0
    %v2072 = vmax.f32 %v1725, 0.0
    %v2073 = vmax.f32 %v1727, 0.0
    %v2074 = vmax.f32 %v1788, 0.0
    %v2075 = vmax.f32 %v1790, 0.0
    %v2076 = vmax.f32 %v1851, 0.0
    %v2077 = vmax.f32 %v1853, 0.0
    %v2078 = vmax.f32 %v1914, 0.0
    %v2079 = vmax.f32 %v1916, 0.0
    %v2080 = vmax.f32 %v1977, 0.0
    %v2081 = vmax.f32 %v1979, 0.0
    %v2082 = vmax.f32 %v2040, 0.0
    %v2083 = vmax.f32 %v2042, 0.0
    %v2084 = vmax.f32 %v1603, 0.0
    %v2085 = vmax.f32 %v1605, 0.0
    %v2086 = vmax.f32 %v1666, 0.0
    %v2087 = vmax.f32 %v1668, 0.0
    %v2088 = vmax.f32 %v1729, 0.0
    %v2089 = vmax.f32 %v1731, 0.0
    %v2090 = vmax.f32 %v1792, 0.0
    %v2091 = vmax.f32 %v1794, 0.0
    %v2092 = vmax.f32 %v1855, 0.0
    %v2093 = vmax.f32 %v1857, 0.0
    %v2094 = vmax.f32 %v1918, 0.0
    %v2095 = vmax.f32 %v1920, 0.0
    %v2096 = vmax.f32 %v1981, 0.0
    %v2097 = vmax.f32 %v1983, 0.0
    %v2098 = vmax.f32 %v2044, 0.0
    %v2099 = vmax.f32 %v2046, 0.0
    %v2100 = vmax.f32 %v1609, 0.0
    %v2101 = vmax.f32 %v1611, 0.0
    %v2102 = vmax.f32 %v1672, 0.0
    %v2103 = vmax.f32 %v1674, 0.0
    %v2104 = vmax.f32 %v1735, 0.0
    %v2105 = vmax.f32 %v1737, 0.0
    %v2106 = vmax.f32 %v1798, 0.0
    %v2107 = vmax.f32 %v1800, 0.0
    %v2108 = vmax.f32 %v1861, 0.0
    %v2109 = vmax.f32 %v1863, 0.0
    %v2110 = vmax.f32 %v1924, 0.0
    %v2111 = vmax.f32 %v1926, 0.0
    %v2112 = vmax.f32 %v1987, 0.0
    %v2113 = vmax.f32 %v1989, 0.0
    %v2114 = vmax.f32 %v2050, 0.0
    %v2115 = vmax.f32 %v2052, 0.0
    %v2116 = vmax.f32 %v1613, 0.0
    %v2117 = vmax.f32 %v1615, 0.0
    %v2118 = vmax.f32 %v1676, 0.0
    %v2119 = vmax.f32 %v1678, 0.0
    %v2120 = vmax.f32 %v1739, 0.0
    %v2121 = vmax.f32 %v1741, 0.0
    %v2122 = vmax.f32 %v1802, 0.0
    %v2123 = vmax.f32 %v1804, 0.0
    %v2124 = vmax.f32 %v1865, 0.0
    %v2125 = vmax.f32 %v1867, 0.0
    %v2126 = vmax.f32 %v1928, 0.0
    %v2127 = vmax.f32 %v1930, 0.0
    %v2128 = vmax.f32 %v1991, 0.0
    %v2129 = vmax.f32 %v1993, 0.0
    %v2130 = vmax.f32 %v2054, 0.0
    %v2131 = vmax.f32 %v2056, 0.0
    %v2132 = vmax.f32 %v1619, 0.0
    %v2133 = vmax.f32 %v1621, 0.0
    %v2134 = vmax.f32 %v1682, 0.0
    %v2135 = vmax.f32 %v1684, 0.0
    %v2136 = vmax.f32 %v1745, 0.0
    %v2137 = vmax.f32 %v1747, 0.0
    %v2138 = vmax.f32 %v1808, 0.0
    %v2139 = vmax.f32 %v1810, 0.0
    %v2140 = vmax.f32 %v1871, 0.0
    %v2141 = vmax.f32 %v1873, 0.0
    %v2142 = vmax.f32 %v1934, 0.0
    %v2143 = vmax.f32 %v1936, 0.0
    %v2144 = vmax.f32 %v1997, 0.0
    %v2145 = vmax.f32 %v1999, 0.0
    %v2146 = vmax.f32 %v2060, 0.0
    %v2147 = vmax.f32 %v2062, 0.0
    %v2148 = vmax.f32 %v1623, 0.0
    %v2149 = vmax.f32 %v1625, 0.0
    %v2150 = vmax.f32 %v1686, 0.0
    %v2151 = vmax.f32 %v1688, 0.0
    %v2152 = vmax.f32 %v1749, 0.0
    %v2153 = vmax.f32 %v1751, 0.0
    %v2154 = vmax.f32 %v1812, 0.0
    %v2155 = vmax.f32 %v1814, 0.0
    %v2156 = vmax.f32 %v1875, 0.0
    %v2157 = vmax.f32 %v1877, 0.0
    %v2158 = vmax.f32 %v1938, 0.0
    %v2159 = vmax.f32 %v1940, 0.0
    %v2160 = vmax.f32 %v2001, 0.0
    %v2161 = vmax.f32 %v2003, 0.0
    %v2162 = vmax.f32 %v2064, 0.0
    %v2163 = vmax.f32 %v2066, 0.0
    %v2164 = vpack.c.bf16 %v2084, %v2068
    %v2165 = vpack.c.bf16 %v2085, %v2069
    %v2166 = vpack.c.bf16 %v2086, %v2070
    %v2167 = vpack.c.bf16 %v2087, %v2071
    %v2168 = vpack.c.bf16 %v2088, %v2072
    %v2169 = vpack.c.bf16 %v2089, %v2073
    %v2170 = vpack.c.bf16 %v2090, %v2074
    %v2171 = vpack.c.bf16 %v2091, %v2075
    %v2172 = vpack.c.bf16 %v2092, %v2076
    %v2173 = vpack.c.bf16 %v2093, %v2077
    %v2174 = vpack.c.bf16 %v2094, %v2078
    %v2175 = vpack.c.bf16 %v2095, %v2079
    %v2176 = vpack.c.bf16 %v2096, %v2080
    %v2177 = vpack.c.bf16 %v2097, %v2081
    %v2178 = vpack.c.bf16 %v2098, %v2082
    %v2179 = vpack.c.bf16 %v2099, %v2083
    %v2180 = vpack.c.bf16 %v2116, %v2100
    %v2181 = vpack.c.bf16 %v2117, %v2101
    %v2182 = vpack.c.bf16 %v2118, %v2102
    %v2183 = vpack.c.bf16 %v2119, %v2103
    %v2184 = vpack.c.bf16 %v2120, %v2104
    %v2185 = vpack.c.bf16 %v2121, %v2105
    %v2186 = vpack.c.bf16 %v2122, %v2106
    %v2187 = vpack.c.bf16 %v2123, %v2107
    %v2188 = vpack.c.bf16 %v2124, %v2108
    %v2189 = vpack.c.bf16 %v2125, %v2109
    %v2190 = vpack.c.bf16 %v2126, %v2110
    %v2191 = vpack.c.bf16 %v2127, %v2111
    %v2192 = vpack.c.bf16 %v2128, %v2112
    %v2193 = vpack.c.bf16 %v2129, %v2113
    %v2194 = vpack.c.bf16 %v2130, %v2114
    %v2195 = vpack.c.bf16 %v2131, %v2115
    %v2196 = vpack.c.bf16 %v2148, %v2132
    %v2197 = vpack.c.bf16 %v2149, %v2133
    %v2198 = vpack.c.bf16 %v2150, %v2134
    %v2199 = vpack.c.bf16 %v2151, %v2135
    %v2200 = vpack.c.bf16 %v2152, %v2136
    %v2201 = vpack.c.bf16 %v2153, %v2137
    %v2202 = vpack.c.bf16 %v2154, %v2138
    %v2203 = vpack.c.bf16 %v2155, %v2139
    %v2204 = vpack.c.bf16 %v2156, %v2140
    %v2205 = vpack.c.bf16 %v2157, %v2141
    %v2206 = vpack.c.bf16 %v2158, %v2142
    %v2207 = vpack.c.bf16 %v2159, %v2143
    %v2208 = vpack.c.bf16 %v2160, %v2144
    %v2209 = vpack.c.bf16 %v2161, %v2145
    %v2210 = vpack.c.bf16 %v2162, %v2146
    %v2211 = vpack.c.bf16 %v2163, %v2147
    %v2212 = vld [vmem:[%s6] sm:$0xf]
    %v2213 = vld [vmem:[%s6 + $0x4] sm:$0xf]
    %v2214 = vld [vmem:[%s6 + $0x8] sm:$0xf]
    %v2215 = vld [vmem:[%s6 + $0xc] sm:$0xf]
    %v2216 = vld [vmem:[%s6 + $0x10] sm:$0xf]
    %v2217 = vld [vmem:[%s6 + $0x14] sm:$0xf]
    %v2218 = vld [vmem:[%s6 + $0x18] sm:$0xf]
    %v2219 = vld [vmem:[%s6 + $0x1c] sm:$0xf]
    %v2220 = vld [vmem:[%s6 + $0x20] sm:$0xf]
    %v2221 = vld [vmem:[%s6 + $0x24] sm:$0xf]
    %v2222 = vld [vmem:[%s6 + $0x28] sm:$0xf]
    %v2223 = vld [vmem:[%s6 + $0x2c] sm:$0xf]
    %v2224 = vld [vmem:[%s6 + $0x30] sm:$0xf]
    %v2225 = vld [vmem:[%s6 + $0x34] sm:$0xf]
    %v2226 = vld [vmem:[%s6 + $0x38] sm:$0xf]
    %v2227 = vld [vmem:[%s6 + $0x3c] sm:$0xf]
    %v2228 = vld [vmem:[%s6 + $0x40] sm:$0xf]
    %v2229 = vld [vmem:[%s6 + $0x44] sm:$0xf]
    %v2230 = vld [vmem:[%s6 + $0x48] sm:$0xf]
    %v2231 = vld [vmem:[%s6 + $0x4c] sm:$0xf]
    %v2232 = vld [vmem:[%s6 + $0x50] sm:$0xf]
    %v2233 = vld [vmem:[%s6 + $0x54] sm:$0xf]
    %v2234 = vld [vmem:[%s6 + $0x58] sm:$0xf]
    %v2235 = vld [vmem:[%s6 + $0x5c] sm:$0xf]
    %v2236 = vld [vmem:[%s6 + $0x60] sm:$0xf]
    %v2237 = vld [vmem:[%s6 + $0x64] sm:$0xf]
    %v2238 = vld [vmem:[%s6 + $0x68] sm:$0xf]
    %v2239 = vld [vmem:[%s6 + $0x6c] sm:$0xf]
    %v2240 = vld [vmem:[%s6 + $0x70] sm:$0xf]
    %v2241 = vld [vmem:[%s6 + $0x74] sm:$0xf]
    %v2242 = vld [vmem:[%s6 + $0x78] sm:$0xf]
    %v2243 = vld [vmem:[%s6 + $0x7c] sm:$0xf]
    %v2244 = vld [vmem:[%s6 + $0x80] sm:$0xf]
    %v2245 = vld [vmem:[%s6 + $0x84] sm:$0xf]
    %v2246 = vld [vmem:[%s6 + $0x88] sm:$0xf]
    %v2247 = vld [vmem:[%s6 + $0x8c] sm:$0xf]
    %v2248 = vld [vmem:[%s6 + $0x90] sm:$0xf]
    %v2249 = vld [vmem:[%s6 + $0x94] sm:$0xf]
    %v2250 = vld [vmem:[%s6 + $0x98] sm:$0xf]
    %v2251 = vld [vmem:[%s6 + $0x9c] sm:$0xf]
    %v2252 = vld [vmem:[%s6 + $0xa0] sm:$0xf]
    %v2253 = vld [vmem:[%s6 + $0xa4] sm:$0xf]
    %v2254 = vld [vmem:[%s6 + $0xa8] sm:$0xf]
    %v2255 = vld [vmem:[%s6 + $0xac] sm:$0xf]
    %v2256 = vld [vmem:[%s6 + $0xb0] sm:$0xf]
    %v2257 = vld [vmem:[%s6 + $0xb4] sm:$0xf]
    %v2258 = vld [vmem:[%s6 + $0xb8] sm:$0xf]
    %v2259 = vld [vmem:[%s6 + $0xbc] sm:$0xf]
    %v2260 = vld [vmem:[%s6 + $0xc0] sm:$0xf]
    %v2261 = vld [vmem:[%s6 + $0xc4] sm:$0xf]
    %v2262 = vld [vmem:[%s6 + $0xc8] sm:$0xf]
    %v2263 = vld [vmem:[%s6 + $0xcc] sm:$0xf]
    %v2264 = vld [vmem:[%s6 + $0xd0] sm:$0xf]
    %v2265 = vld [vmem:[%s6 + $0xd4] sm:$0xf]
    %v2266 = vld [vmem:[%s6 + $0xd8] sm:$0xf]
    %v2267 = vld [vmem:[%s6 + $0xdc] sm:$0xf]
    %v2268 = vld [vmem:[%s6 + $0xe0] sm:$0xf]
    %v2269 = vld [vmem:[%s6 + $0xe4] sm:$0xf]
    %v2270 = vld [vmem:[%s6 + $0xe8] sm:$0xf]
    %v2271 = vld [vmem:[%s6 + $0xec] sm:$0xf]
    %v2272 = vld [vmem:[%s6 + $0xf0] sm:$0xf]
    %v2273 = vld [vmem:[%s6 + $0xf4] sm:$0xf]
    %v2274 = vld [vmem:[%s6 + $0xf8] sm:$0xf]
    %v2275 = vld [vmem:[%s6 + $0xfc] sm:$0xf]
    %v2276 = vld [vmem:[%s6 + $0x100] sm:$0xf]
    %v2277 = vld [vmem:[%s6 + $0x104] sm:$0xf]
    %v2278 = vld [vmem:[%s6 + $0x108] sm:$0xf]
    %v2279 = vld [vmem:[%s6 + $0x10c] sm:$0xf]
    %v2280 = vld [vmem:[%s6 + $0x110] sm:$0xf]
    %v2281 = vld [vmem:[%s6 + $0x114] sm:$0xf]
    %v2282 = vld [vmem:[%s6 + $0x118] sm:$0xf]
    %v2283 = vld [vmem:[%s6 + $0x11c] sm:$0xf]
    %v2284 = vld [vmem:[%s6 + $0x120] sm:$0xf]
    %v2285 = vld [vmem:[%s6 + $0x124] sm:$0xf]
    %v2286 = vld [vmem:[%s6 + $0x128] sm:$0xf]
    %v2287 = vld [vmem:[%s6 + $0x12c] sm:$0xf]
    %v2288 = vld [vmem:[%s6 + $0x130] sm:$0xf]
    %v2289 = vld [vmem:[%s6 + $0x134] sm:$0xf]
    %v2290 = vld [vmem:[%s6 + $0x138] sm:$0xf]
    %v2291 = vld [vmem:[%s6 + $0x13c] sm:$0xf]
    %v2292 = vld [vmem:[%s6 + $0x140] sm:$0xf]
    %v2293 = vld [vmem:[%s6 + $0x144] sm:$0xf]
    %v2294 = vld [vmem:[%s6 + $0x148] sm:$0xf]
    %v2295 = vld [vmem:[%s6 + $0x14c] sm:$0xf]
    %v2296 = vld [vmem:[%s6 + $0x150] sm:$0xf]
    %v2297 = vld [vmem:[%s6 + $0x154] sm:$0xf]
    %v2298 = vld [vmem:[%s6 + $0x158] sm:$0xf]
    %v2299 = vld [vmem:[%s6 + $0x15c] sm:$0xf]
    %v2300 = vld [vmem:[%s6 + $0x160] sm:$0xf]
    %v2301 = vld [vmem:[%s6 + $0x164] sm:$0xf]
    %v2302 = vld [vmem:[%s6 + $0x168] sm:$0xf]
    %v2303 = vld [vmem:[%s6 + $0x16c] sm:$0xf]
    %v2304 = vld [vmem:[%s6 + $0x170] sm:$0xf]
    %v2305 = vld [vmem:[%s6 + $0x174] sm:$0xf]
    %v2306 = vld [vmem:[%s6 + $0x178] sm:$0xf]
    %v2307 = vld [vmem:[%s6 + $0x17c] sm:$0xf]
    %v2308 = vld [vmem:[%s6 + $0x180] sm:$0xf]
    %v2309 = vld [vmem:[%s6 + $0x184] sm:$0xf]
    %v2310 = vld [vmem:[%s6 + $0x188] sm:$0xf]
    %v2311 = vld [vmem:[%s6 + $0x18c] sm:$0xf]
    %v2312 = vld [vmem:[%s6 + $0x190] sm:$0xf]
    %v2313 = vld [vmem:[%s6 + $0x194] sm:$0xf]
    %v2314 = vld [vmem:[%s6 + $0x198] sm:$0xf]
    %v2315 = vld [vmem:[%s6 + $0x19c] sm:$0xf]
    %v2316 = vld [vmem:[%s6 + $0x1a0] sm:$0xf]
    %v2317 = vld [vmem:[%s6 + $0x1a4] sm:$0xf]
    %v2318 = vld [vmem:[%s6 + $0x1a8] sm:$0xf]
    %v2319 = vld [vmem:[%s6 + $0x1ac] sm:$0xf]
    %v2320 = vld [vmem:[%s6 + $0x1b0] sm:$0xf]
    %v2321 = vld [vmem:[%s6 + $0x1b4] sm:$0xf]
    %v2322 = vld [vmem:[%s6 + $0x1b8] sm:$0xf]
    %v2323 = vld [vmem:[%s6 + $0x1bc] sm:$0xf]
    %v2324 = vld [vmem:[%s6 + $0x1c0] sm:$0xf]
    %v2325 = vld [vmem:[%s6 + $0x1c4] sm:$0xf]
    %v2326 = vld [vmem:[%s6 + $0x1c8] sm:$0xf]
    %v2327 = vld [vmem:[%s6 + $0x1cc] sm:$0xf]
    %v2328 = vld [vmem:[%s6 + $0x1d0] sm:$0xf]
    %v2329 = vld [vmem:[%s6 + $0x1d4] sm:$0xf]
    %v2330 = vld [vmem:[%s6 + $0x1d8] sm:$0xf]
    %v2331 = vld [vmem:[%s6 + $0x1dc] sm:$0xf]
    %v2332 = vld [vmem:[%s6 + $0x1e0] sm:$0xf]
    %v2333 = vld [vmem:[%s6 + $0x1e4] sm:$0xf]
    %v2334 = vld [vmem:[%s6 + $0x1e8] sm:$0xf]
    %v2335 = vld [vmem:[%s6 + $0x1ec] sm:$0xf]
    %v2336 = vld [vmem:[%s6 + $0x1f0] sm:$0xf]
    %v2337 = vld [vmem:[%s6 + $0x1f4] sm:$0xf]
    %v2338 = vld [vmem:[%s6 + $0x1f8] sm:$0xf]
    %v2339 = vld [vmem:[%s6 + $0x1fc] sm:$0xf]
    %v2340 = vld [vmem:[%s6 + $0x200] sm:$0xf]
    %v2341 = vld [vmem:[%s6 + $0x204] sm:$0xf]
    %v2342 = vld [vmem:[%s6 + $0x208] sm:$0xf]
    %v2343 = vld [vmem:[%s6 + $0x20c] sm:$0xf]
    %v2344 = vld [vmem:[%s6 + $0x210] sm:$0xf]
    %v2345 = vld [vmem:[%s6 + $0x214] sm:$0xf]
    %v2346 = vld [vmem:[%s6 + $0x218] sm:$0xf]
    %v2347 = vld [vmem:[%s6 + $0x21c] sm:$0xf]
    %v2348 = vld [vmem:[%s6 + $0x220] sm:$0xf]
    %v2349 = vld [vmem:[%s6 + $0x224] sm:$0xf]
    %v2350 = vld [vmem:[%s6 + $0x228] sm:$0xf]
    %v2351 = vld [vmem:[%s6 + $0x22c] sm:$0xf]
    %v2352 = vld [vmem:[%s6 + $0x230] sm:$0xf]
    %v2353 = vld [vmem:[%s6 + $0x234] sm:$0xf]
    %v2354 = vld [vmem:[%s6 + $0x238] sm:$0xf]
    %v2355 = vld [vmem:[%s6 + $0x23c] sm:$0xf]
    %v2356 = vld [vmem:[%s6 + $0x240] sm:$0xf]
    %v2357 = vld [vmem:[%s6 + $0x244] sm:$0xf]
    %v2358 = vld [vmem:[%s6 + $0x248] sm:$0xf]
    %v2359 = vld [vmem:[%s6 + $0x24c] sm:$0xf]
    %v2360 = vld [vmem:[%s6 + $0x250] sm:$0xf]
    %v2361 = vld [vmem:[%s6 + $0x254] sm:$0xf]
    %v2362 = vld [vmem:[%s6 + $0x258] sm:$0xf]
    %v2363 = vld [vmem:[%s6 + $0x25c] sm:$0xf]
    %v2364 = vld [vmem:[%s6 + $0x260] sm:$0xf]
    %v2365 = vld [vmem:[%s6 + $0x264] sm:$0xf]
    %v2366 = vld [vmem:[%s6 + $0x268] sm:$0xf]
    %v2367 = vld [vmem:[%s6 + $0x26c] sm:$0xf]
    %v2368 = vld [vmem:[%s6 + $0x270] sm:$0xf]
    %v2369 = vld [vmem:[%s6 + $0x274] sm:$0xf]
    %v2370 = vld [vmem:[%s6 + $0x278] sm:$0xf]
    %v2371 = vld [vmem:[%s6 + $0x27c] sm:$0xf]
    %v2372 = vld [vmem:[%s6 + $0x280] sm:$0xf]
    %v2373 = vld [vmem:[%s6 + $0x284] sm:$0xf]
    %v2374 = vld [vmem:[%s6 + $0x288] sm:$0xf]
    %v2375 = vld [vmem:[%s6 + $0x28c] sm:$0xf]
    %v2376 = vld [vmem:[%s6 + $0x290] sm:$0xf]
    %v2377 = vld [vmem:[%s6 + $0x294] sm:$0xf]
    %v2378 = vld [vmem:[%s6 + $0x298] sm:$0xf]
    %v2379 = vld [vmem:[%s6 + $0x29c] sm:$0xf]
    %v2380 = vld [vmem:[%s6 + $0x2a0] sm:$0xf]
    %v2381 = vld [vmem:[%s6 + $0x2a4] sm:$0xf]
    %v2382 = vld [vmem:[%s6 + $0x2a8] sm:$0xf]
    %v2383 = vld [vmem:[%s6 + $0x2ac] sm:$0xf]
    %v2384 = vld [vmem:[%s6 + $0x2b0] sm:$0xf]
    %v2385 = vld [vmem:[%s6 + $0x2b4] sm:$0xf]
    %v2386 = vld [vmem:[%s6 + $0x2b8] sm:$0xf]
    %v2387 = vld [vmem:[%s6 + $0x2bc] sm:$0xf]
    %v2388 = vld [vmem:[%s6 + $0x2c0] sm:$0xf]
    %v2389 = vld [vmem:[%s6 + $0x2c4] sm:$0xf]
    %v2390 = vld [vmem:[%s6 + $0x2c8] sm:$0xf]
    %v2391 = vld [vmem:[%s6 + $0x2cc] sm:$0xf]
    %v2392 = vld [vmem:[%s6 + $0x2d0] sm:$0xf]
    %v2393 = vld [vmem:[%s6 + $0x2d4] sm:$0xf]
    %v2394 = vld [vmem:[%s6 + $0x2d8] sm:$0xf]
    %v2395 = vld [vmem:[%s6 + $0x2dc] sm:$0xf]
    %v2396 = vld [vmem:[%s6 + $0x2e0] sm:$0xf]
    %v2397 = vld [vmem:[%s6 + $0x2e4] sm:$0xf]
    %v2398 = vld [vmem:[%s6 + $0x2e8] sm:$0xf]
    %v2399 = vld [vmem:[%s6 + $0x2ec] sm:$0xf]
    %v2400 = vld [vmem:[%s6 + $0x2f0] sm:$0xf]
    %v2401 = vld [vmem:[%s6 + $0x2f4] sm:$0xf]
    %v2402 = vld [vmem:[%s6 + $0x2f8] sm:$0xf]
    %v2403 = vld [vmem:[%s6 + $0x2fc] sm:$0xf]
    %v2404 = vld [vmem:[%s6 + $0x300] sm:$0xf]
    %v2405 = vld [vmem:[%s6 + $0x304] sm:$0xf]
    %v2406 = vld [vmem:[%s6 + $0x308] sm:$0xf]
    %v2407 = vld [vmem:[%s6 + $0x30c] sm:$0xf]
    %v2408 = vld [vmem:[%s6 + $0x310] sm:$0xf]
    %v2409 = vld [vmem:[%s6 + $0x314] sm:$0xf]
    %v2410 = vld [vmem:[%s6 + $0x318] sm:$0xf]
    %v2411 = vld [vmem:[%s6 + $0x31c] sm:$0xf]
    %v2412 = vld [vmem:[%s6 + $0x320] sm:$0xf]
    %v2413 = vld [vmem:[%s6 + $0x324] sm:$0xf]
    %v2414 = vld [vmem:[%s6 + $0x328] sm:$0xf]
    %v2415 = vld [vmem:[%s6 + $0x32c] sm:$0xf]
    %v2416 = vld [vmem:[%s6 + $0x330] sm:$0xf]
    %v2417 = vld [vmem:[%s6 + $0x334] sm:$0xf]
    %v2418 = vld [vmem:[%s6 + $0x338] sm:$0xf]
    %v2419 = vld [vmem:[%s6 + $0x33c] sm:$0xf]
    %v2420 = vld [vmem:[%s6 + $0x340] sm:$0xf]
    %v2421 = vld [vmem:[%s6 + $0x344] sm:$0xf]
    %v2422 = vld [vmem:[%s6 + $0x348] sm:$0xf]
    %v2423 = vld [vmem:[%s6 + $0x34c] sm:$0xf]
    %v2424 = vld [vmem:[%s6 + $0x350] sm:$0xf]
    %v2425 = vld [vmem:[%s6 + $0x354] sm:$0xf]
    %v2426 = vld [vmem:[%s6 + $0x358] sm:$0xf]
    %v2427 = vld [vmem:[%s6 + $0x35c] sm:$0xf]
    %v2428 = vld [vmem:[%s6 + $0x360] sm:$0xf]
    %v2429 = vld [vmem:[%s6 + $0x364] sm:$0xf]
    %v2430 = vld [vmem:[%s6 + $0x368] sm:$0xf]
    %v2431 = vld [vmem:[%s6 + $0x36c] sm:$0xf]
    %v2432 = vld [vmem:[%s6 + $0x370] sm:$0xf]
    %v2433 = vld [vmem:[%s6 + $0x374] sm:$0xf]
    %v2434 = vld [vmem:[%s6 + $0x378] sm:$0xf]
    %v2435 = vld [vmem:[%s6 + $0x37c] sm:$0xf]
    %v2436 = vld [vmem:[%s6 + $0x380] sm:$0xf]
    %v2437 = vld [vmem:[%s6 + $0x384] sm:$0xf]
    %v2438 = vld [vmem:[%s6 + $0x388] sm:$0xf]
    %v2439 = vld [vmem:[%s6 + $0x38c] sm:$0xf]
    %v2440 = vld [vmem:[%s6 + $0x390] sm:$0xf]
    %v2441 = vld [vmem:[%s6 + $0x394] sm:$0xf]
    %v2442 = vld [vmem:[%s6 + $0x398] sm:$0xf]
    %v2443 = vld [vmem:[%s6 + $0x39c] sm:$0xf]
    %v2444 = vld [vmem:[%s6 + $0x3a0] sm:$0xf]
    %v2445 = vld [vmem:[%s6 + $0x3a4] sm:$0xf]
    %v2446 = vld [vmem:[%s6 + $0x3a8] sm:$0xf]
    %v2447 = vld [vmem:[%s6 + $0x3ac] sm:$0xf]
    %v2448 = vld [vmem:[%s6 + $0x3b0] sm:$0xf]
    %v2449 = vld [vmem:[%s6 + $0x3b4] sm:$0xf]
    %v2450 = vld [vmem:[%s6 + $0x3b8] sm:$0xf]
    %v2451 = vld [vmem:[%s6 + $0x3bc] sm:$0xf]
    %v2452 = vld [vmem:[%s6 + $0x3c0] sm:$0xf]
    %v2453 = vld [vmem:[%s6 + $0x3c4] sm:$0xf]
    %v2454 = vld [vmem:[%s6 + $0x3c8] sm:$0xf]
    %v2455 = vld [vmem:[%s6 + $0x3cc] sm:$0xf]
    %v2456 = vld [vmem:[%s6 + $0x3d0] sm:$0xf]
    %v2457 = vld [vmem:[%s6 + $0x3d4] sm:$0xf]
    %v2458 = vld [vmem:[%s6 + $0x3d8] sm:$0xf]
    %v2459 = vld [vmem:[%s6 + $0x3dc] sm:$0xf]
    %v2460 = vld [vmem:[%s6 + $0x3e0] sm:$0xf]
    %v2461 = vld [vmem:[%s6 + $0x3e4] sm:$0xf]
    %v2462 = vld [vmem:[%s6 + $0x3e8] sm:$0xf]
    %v2463 = vld [vmem:[%s6 + $0x3ec] sm:$0xf]
    %v2464 = vld [vmem:[%s6 + $0x3f0] sm:$0xf]
    %v2465 = vld [vmem:[%s6 + $0x3f4] sm:$0xf]
    %v2466 = vld [vmem:[%s6 + $0x3f8] sm:$0xf]
    %v2467 = vld [vmem:[%s6 + $0x3fc] sm:$0xf]
    %v2468 = vlaneseq
    %v2469 = vshrl.u32 %v2468, 7
    %v2470 = vsub.s32 0, %v2469
    %v2471 = vrot.slane %v43, %v2470
    %v2728 = vunpack.c.l.b16 %v2212
    %v2729 = vunpack.c.l.b16 %v2213
    %v2730 = vunpack.c.l.b16 %v2214
    %v2731 = vunpack.c.l.b16 %v2215
    %v2732 = vunpack.c.l.b16 %v2216
    %v2733 = vunpack.c.l.b16 %v2217
    %v2734 = vunpack.c.l.b16 %v2218
    %v2735 = vunpack.c.l.b16 %v2219
    %v2736 = vunpack.c.l.b16 %v2220
    %v2737 = vunpack.c.l.b16 %v2221
    %v2738 = vunpack.c.l.b16 %v2222
    %v2739 = vunpack.c.l.b16 %v2223
    %v2740 = vunpack.c.l.b16 %v2224
    %v2741 = vunpack.c.l.b16 %v2225
    %v2742 = vunpack.c.l.b16 %v2226
    %v2743 = vunpack.c.l.b16 %v2227
    %v2744 = vunpack.c.l.b16 %v2228
    %v2745 = vunpack.c.l.b16 %v2229
    %v2746 = vunpack.c.l.b16 %v2230
    %v2747 = vunpack.c.l.b16 %v2231
    %v2748 = vunpack.c.l.b16 %v2232
    %v2749 = vunpack.c.l.b16 %v2233
    %v2750 = vunpack.c.l.b16 %v2234
    %v2751 = vunpack.c.l.b16 %v2235
    %v2752 = vunpack.c.l.b16 %v2236
    %v2753 = vunpack.c.l.b16 %v2237
    %v2754 = vunpack.c.l.b16 %v2238
    %v2755 = vunpack.c.l.b16 %v2239
    %v2756 = vunpack.c.l.b16 %v2240
    %v2757 = vunpack.c.l.b16 %v2241
    %v2758 = vunpack.c.l.b16 %v2242
    %v2759 = vunpack.c.l.b16 %v2243
    %v2760 = vunpack.c.l.b16 %v2244
    %v2761 = vunpack.c.l.b16 %v2245
    %v2762 = vunpack.c.l.b16 %v2246
    %v2763 = vunpack.c.l.b16 %v2247
    %v2764 = vunpack.c.l.b16 %v2248
    %v2765 = vunpack.c.l.b16 %v2249
    %v2766 = vunpack.c.l.b16 %v2250
    %v2767 = vunpack.c.l.b16 %v2251
    %v2768 = vunpack.c.l.b16 %v2252
    %v2769 = vunpack.c.l.b16 %v2253
    %v2770 = vunpack.c.l.b16 %v2254
    %v2771 = vunpack.c.l.b16 %v2255
    %v2772 = vunpack.c.l.b16 %v2256
    %v2773 = vunpack.c.l.b16 %v2257
    %v2774 = vunpack.c.l.b16 %v2258
    %v2775 = vunpack.c.l.b16 %v2259
    %v2776 = vunpack.c.l.b16 %v2260
    %v2777 = vunpack.c.l.b16 %v2261
    %v2778 = vunpack.c.l.b16 %v2262
    %v2779 = vunpack.c.l.b16 %v2263
    %v2780 = vunpack.c.l.b16 %v2264
    %v2781 = vunpack.c.l.b16 %v2265
    %v2782 = vunpack.c.l.b16 %v2266
    %v2783 = vunpack.c.l.b16 %v2267
    %v2784 = vunpack.c.l.b16 %v2268
    %v2785 = vunpack.c.l.b16 %v2269
    %v2786 = vunpack.c.l.b16 %v2270
    %v2787 = vunpack.c.l.b16 %v2271
    %v2788 = vunpack.c.l.b16 %v2272
    %v2789 = vunpack.c.l.b16 %v2273
    %v2790 = vunpack.c.l.b16 %v2274
    %v2791 = vunpack.c.l.b16 %v2275
    %v2792 = vunpack.c.l.b16 %v2276
    %v2793 = vunpack.c.l.b16 %v2277
    %v2794 = vunpack.c.l.b16 %v2278
    %v2795 = vunpack.c.l.b16 %v2279
    %v2796 = vunpack.c.l.b16 %v2280
    %v2797 = vunpack.c.l.b16 %v2281
    %v2798 = vunpack.c.l.b16 %v2282
    %v2799 = vunpack.c.l.b16 %v2283
    %v2800 = vunpack.c.l.b16 %v2284
    %v2801 = vunpack.c.l.b16 %v2285
    %v2802 = vunpack.c.l.b16 %v2286
    %v2803 = vunpack.c.l.b16 %v2287
    %v2804 = vunpack.c.l.b16 %v2288
    %v2805 = vunpack.c.l.b16 %v2289
    %v2806 = vunpack.c.l.b16 %v2290
    %v2807 = vunpack.c.l.b16 %v2291
    %v2808 = vunpack.c.l.b16 %v2292
    %v2809 = vunpack.c.l.b16 %v2293
    %v2810 = vunpack.c.l.b16 %v2294
    %v2811 = vunpack.c.l.b16 %v2295
    %v2812 = vunpack.c.l.b16 %v2296
    %v2813 = vunpack.c.l.b16 %v2297
    %v2814 = vunpack.c.l.b16 %v2298
    %v2815 = vunpack.c.l.b16 %v2299
    %v2816 = vunpack.c.l.b16 %v2300
    %v2817 = vunpack.c.l.b16 %v2301
    %v2818 = vunpack.c.l.b16 %v2302
    %v2819 = vunpack.c.l.b16 %v2303
    %v2820 = vunpack.c.l.b16 %v2304
    %v2821 = vunpack.c.l.b16 %v2305
    %v2822 = vunpack.c.l.b16 %v2306
    %v2823 = vunpack.c.l.b16 %v2307
    %v2824 = vunpack.c.l.b16 %v2308
    %v2825 = vunpack.c.l.b16 %v2309
    %v2826 = vunpack.c.l.b16 %v2310
    %v2827 = vunpack.c.l.b16 %v2311
    %v2828 = vunpack.c.l.b16 %v2312
    %v2829 = vunpack.c.l.b16 %v2313
    %v2830 = vunpack.c.l.b16 %v2314
    %v2831 = vunpack.c.l.b16 %v2315
    %v2832 = vunpack.c.l.b16 %v2316
    %v2833 = vunpack.c.l.b16 %v2317
    %v2834 = vunpack.c.l.b16 %v2318
    %v2835 = vunpack.c.l.b16 %v2319
    %v2836 = vunpack.c.l.b16 %v2320
    %v2837 = vunpack.c.l.b16 %v2321
    %v2838 = vunpack.c.l.b16 %v2322
    %v2839 = vunpack.c.l.b16 %v2323
    %v2840 = vunpack.c.l.b16 %v2324
    %v2841 = vunpack.c.l.b16 %v2325
    %v2842 = vunpack.c.l.b16 %v2326
    %v2843 = vunpack.c.l.b16 %v2327
    %v2844 = vunpack.c.l.b16 %v2328
    %v2845 = vunpack.c.l.b16 %v2329
    %v2846 = vunpack.c.l.b16 %v2330
    %v2847 = vunpack.c.l.b16 %v2331
    %v2848 = vunpack.c.l.b16 %v2332
    %v2849 = vunpack.c.l.b16 %v2333
    %v2850 = vunpack.c.l.b16 %v2334
    %v2851 = vunpack.c.l.b16 %v2335
    %v2852 = vunpack.c.l.b16 %v2336
    %v2853 = vunpack.c.l.b16 %v2337
    %v2854 = vunpack.c.l.b16 %v2338
    %v2855 = vunpack.c.l.b16 %v2339
    %v2856 = vunpack.c.l.b16 %v2340
    %v2857 = vunpack.c.l.b16 %v2341
    %v2858 = vunpack.c.l.b16 %v2342
    %v2859 = vunpack.c.l.b16 %v2343
    %v2860 = vunpack.c.l.b16 %v2344
    %v2861 = vunpack.c.l.b16 %v2345
    %v2862 = vunpack.c.l.b16 %v2346
    %v2863 = vunpack.c.l.b16 %v2347
    %v2864 = vunpack.c.l.b16 %v2348
    %v2865 = vunpack.c.l.b16 %v2349
    %v2866 = vunpack.c.l.b16 %v2350
    %v2867 = vunpack.c.l.b16 %v2351
    %v2868 = vunpack.c.l.b16 %v2352
    %v2869 = vunpack.c.l.b16 %v2353
    %v2870 = vunpack.c.l.b16 %v2354
    %v2871 = vunpack.c.l.b16 %v2355
    %v2872 = vunpack.c.l.b16 %v2356
    %v2873 = vunpack.c.l.b16 %v2357
    %v2874 = vunpack.c.l.b16 %v2358
    %v2875 = vunpack.c.l.b16 %v2359
    %v2876 = vunpack.c.l.b16 %v2360
    %v2877 = vunpack.c.l.b16 %v2361
    %v2878 = vunpack.c.l.b16 %v2362
    %v2879 = vunpack.c.l.b16 %v2363
    %v2880 = vunpack.c.l.b16 %v2364
    %v2881 = vunpack.c.l.b16 %v2365
    %v2882 = vunpack.c.l.b16 %v2366
    %v2883 = vunpack.c.l.b16 %v2367
    %v2884 = vunpack.c.l.b16 %v2368
    %v2885 = vunpack.c.l.b16 %v2369
    %v2886 = vunpack.c.l.b16 %v2370
    %v2887 = vunpack.c.l.b16 %v2371
    %v2888 = vunpack.c.l.b16 %v2372
    %v2889 = vunpack.c.l.b16 %v2373
    %v2890 = vunpack.c.l.b16 %v2374
    %v2891 = vunpack.c.l.b16 %v2375
    %v2892 = vunpack.c.l.b16 %v2376
    %v2893 = vunpack.c.l.b16 %v2377
    %v2894 = vunpack.c.l.b16 %v2378
    %v2895 = vunpack.c.l.b16 %v2379
    %v2896 = vunpack.c.l.b16 %v2380
    %v2897 = vunpack.c.l.b16 %v2381
    %v2898 = vunpack.c.l.b16 %v2382
    %v2899 = vunpack.c.l.b16 %v2383
    %v2900 = vunpack.c.l.b16 %v2384
    %v2901 = vunpack.c.l.b16 %v2385
    %v2902 = vunpack.c.l.b16 %v2386
    %v2903 = vunpack.c.l.b16 %v2387
    %v2904 = vunpack.c.l.b16 %v2388
    %v2905 = vunpack.c.l.b16 %v2389
    %v2906 = vunpack.c.l.b16 %v2390
    %v2907 = vunpack.c.l.b16 %v2391
    %v2908 = vunpack.c.l.b16 %v2392
    %v2909 = vunpack.c.l.b16 %v2393
    %v2910 = vunpack.c.l.b16 %v2394
    %v2911 = vunpack.c.l.b16 %v2395
    %v2912 = vunpack.c.l.b16 %v2396
    %v2913 = vunpack.c.l.b16 %v2397
    %v2914 = vunpack.c.l.b16 %v2398
    %v2915 = vunpack.c.l.b16 %v2399
    %v2916 = vunpack.c.l.b16 %v2400
    %v2917 = vunpack.c.l.b16 %v2401
    %v2918 = vunpack.c.l.b16 %v2402
    %v2919 = vunpack.c.l.b16 %v2403
    %v2920 = vunpack.c.l.b16 %v2404
    %v2921 = vunpack.c.l.b16 %v2405
    %v2922 = vunpack.c.l.b16 %v2406
    %v2923 = vunpack.c.l.b16 %v2407
    %v2924 = vunpack.c.l.b16 %v2408
    %v2925 = vunpack.c.l.b16 %v2409
    %v2926 = vunpack.c.l.b16 %v2410
    %v2927 = vunpack.c.l.b16 %v2411
    %v2928 = vunpack.c.l.b16 %v2412
    %v2929 = vunpack.c.l.b16 %v2413
    %v2930 = vunpack.c.l.b16 %v2414
    %v2931 = vunpack.c.l.b16 %v2415
    %v2932 = vunpack.c.l.b16 %v2416
    %v2933 = vunpack.c.l.b16 %v2417
    %v2934 = vunpack.c.l.b16 %v2418
    %v2935 = vunpack.c.l.b16 %v2419
    %v2936 = vunpack.c.l.b16 %v2420
    %v2937 = vunpack.c.l.b16 %v2421
    %v2938 = vunpack.c.l.b16 %v2422
    %v2939 = vunpack.c.l.b16 %v2423
    %v2940 = vunpack.c.l.b16 %v2424
    %v2941 = vunpack.c.l.b16 %v2425
    %v2942 = vunpack.c.l.b16 %v2426
    %v2943 = vunpack.c.l.b16 %v2427
    %v2944 = vunpack.c.l.b16 %v2428
    %v2945 = vunpack.c.l.b16 %v2429
    %v2946 = vunpack.c.l.b16 %v2430
    %v2947 = vunpack.c.l.b16 %v2431
    %v2948 = vunpack.c.l.b16 %v2432
    %v2949 = vunpack.c.l.b16 %v2433
    %v2950 = vunpack.c.l.b16 %v2434
    %v2951 = vunpack.c.l.b16 %v2435
    %v2952 = vunpack.c.l.b16 %v2436
    %v2953 = vunpack.c.l.b16 %v2437
    %v2954 = vunpack.c.l.b16 %v2438
    %v2955 = vunpack.c.l.b16 %v2439
    %v2956 = vunpack.c.l.b16 %v2440
    %v2957 = vunpack.c.l.b16 %v2441
    %v2958 = vunpack.c.l.b16 %v2442
    %v2959 = vunpack.c.l.b16 %v2443
    %v2960 = vunpack.c.l.b16 %v2444
    %v2961 = vunpack.c.l.b16 %v2445
    %v2962 = vunpack.c.l.b16 %v2446
    %v2963 = vunpack.c.l.b16 %v2447
    %v2964 = vunpack.c.l.b16 %v2448
    %v2965 = vunpack.c.l.b16 %v2449
    %v2966 = vunpack.c.l.b16 %v2450
    %v2967 = vunpack.c.l.b16 %v2451
    %v2968 = vunpack.c.l.b16 %v2452
    %v2969 = vunpack.c.l.b16 %v2453
    %v2970 = vunpack.c.l.b16 %v2454
    %v2971 = vunpack.c.l.b16 %v2455
    %v2972 = vunpack.c.l.b16 %v2456
    %v2973 = vunpack.c.l.b16 %v2457
    %v2974 = vunpack.c.l.b16 %v2458
    %v2975 = vunpack.c.l.b16 %v2459
    %v2976 = vunpack.c.l.b16 %v2460
    %v2977 = vunpack.c.l.b16 %v2461
    %v2978 = vunpack.c.l.b16 %v2462
    %v2979 = vunpack.c.l.b16 %v2463
    %v2980 = vunpack.c.l.b16 %v2464
    %v2981 = vunpack.c.l.b16 %v2465
    %v2982 = vunpack.c.l.b16 %v2466
    %v2983 = vunpack.c.l.b16 %v2467
    %v2984 = vpack.c.b16 %v2729, %v2728
    %v2985 = vpack.c.b16 %v2731, %v2730
    %v2986 = vpack.c.b16 %v2733, %v2732
    %v2987 = vpack.c.b16 %v2735, %v2734
    %v2988 = vpack.c.b16 %v2737, %v2736
    %v2989 = vpack.c.b16 %v2739, %v2738
    %v2990 = vpack.c.b16 %v2741, %v2740
    %v2991 = vpack.c.b16 %v2743, %v2742
    %v2992 = vpack.c.b16 %v2745, %v2744
    %v2993 = vpack.c.b16 %v2747, %v2746
    %v2994 = vpack.c.b16 %v2749, %v2748
    %v2995 = vpack.c.b16 %v2751, %v2750
    %v2996 = vpack.c.b16 %v2753, %v2752
    %v2997 = vpack.c.b16 %v2755, %v2754
    %v2998 = vpack.c.b16 %v2757, %v2756
    %v2999 = vpack.c.b16 %v2759, %v2758
    %v3000 = vpack.c.b16 %v2761, %v2760
    %v3001 = vpack.c.b16 %v2763, %v2762
    %v3002 = vpack.c.b16 %v2765, %v2764
    %v3003 = vpack.c.b16 %v2767, %v2766
    %v3004 = vpack.c.b16 %v2769, %v2768
    %v3005 = vpack.c.b16 %v2771, %v2770
    %v3006 = vpack.c.b16 %v2773, %v2772
    %v3007 = vpack.c.b16 %v2775, %v2774
    %v3008 = vpack.c.b16 %v2777, %v2776
    %v3009 = vpack.c.b16 %v2779, %v2778
    %v3010 = vpack.c.b16 %v2781, %v2780
    %v3011 = vpack.c.b16 %v2783, %v2782
    %v3012 = vpack.c.b16 %v2785, %v2784
    %v3013 = vpack.c.b16 %v2787, %v2786
    %v3014 = vpack.c.b16 %v2789, %v2788
    %v3015 = vpack.c.b16 %v2791, %v2790
    %v3016 = vpack.c.b16 %v2793, %v2792
    %v3017 = vpack.c.b16 %v2795, %v2794
    %v3018 = vpack.c.b16 %v2797, %v2796
    %v3019 = vpack.c.b16 %v2799, %v2798
    %v3020 = vpack.c.b16 %v2801, %v2800
    %v3021 = vpack.c.b16 %v2803, %v2802
    %v3022 = vpack.c.b16 %v2805, %v2804
    %v3023 = vpack.c.b16 %v2807, %v2806
    %v3024 = vpack.c.b16 %v2809, %v2808
    %v3025 = vpack.c.b16 %v2811, %v2810
    %v3026 = vpack.c.b16 %v2813, %v2812
    %v3027 = vpack.c.b16 %v2815, %v2814
    %v3028 = vpack.c.b16 %v2817, %v2816
    %v3029 = vpack.c.b16 %v2819, %v2818
    %v3030 = vpack.c.b16 %v2821, %v2820
    %v3031 = vpack.c.b16 %v2823, %v2822
    %v3032 = vpack.c.b16 %v2825, %v2824
    %v3033 = vpack.c.b16 %v2827, %v2826
    %v3034 = vpack.c.b16 %v2829, %v2828
    %v3035 = vpack.c.b16 %v2831, %v2830
    %v3036 = vpack.c.b16 %v2833, %v2832
    %v3037 = vpack.c.b16 %v2835, %v2834
    %v3038 = vpack.c.b16 %v2837, %v2836
    %v3039 = vpack.c.b16 %v2839, %v2838
    %v3040 = vpack.c.b16 %v2841, %v2840
    %v3041 = vpack.c.b16 %v2843, %v2842
    %v3042 = vpack.c.b16 %v2845, %v2844
    %v3043 = vpack.c.b16 %v2847, %v2846
    %v3044 = vpack.c.b16 %v2849, %v2848
    %v3045 = vpack.c.b16 %v2851, %v2850
    %v3046 = vpack.c.b16 %v2853, %v2852
    %v3047 = vpack.c.b16 %v2855, %v2854
    %v3048 = vpack.c.b16 %v2857, %v2856
    %v3049 = vpack.c.b16 %v2859, %v2858
    %v3050 = vpack.c.b16 %v2861, %v2860
    %v3051 = vpack.c.b16 %v2863, %v2862
    %v3052 = vpack.c.b16 %v2865, %v2864
    %v3053 = vpack.c.b16 %v2867, %v2866
    %v3054 = vpack.c.b16 %v2869, %v2868
    %v3055 = vpack.c.b16 %v2871, %v2870
    %v3056 = vpack.c.b16 %v2873, %v2872
    %v3057 = vpack.c.b16 %v2875, %v2874
    %v3058 = vpack.c.b16 %v2877, %v2876
    %v3059 = vpack.c.b16 %v2879, %v2878
    %v3060 = vpack.c.b16 %v2881, %v2880
    %v3061 = vpack.c.b16 %v2883, %v2882
    %v3062 = vpack.c.b16 %v2885, %v2884
    %v3063 = vpack.c.b16 %v2887, %v2886
    %v3064 = vpack.c.b16 %v2889, %v2888
    %v3065 = vpack.c.b16 %v2891, %v2890
    %v3066 = vpack.c.b16 %v2893, %v2892
    %v3067 = vpack.c.b16 %v2895, %v2894
    %v3068 = vpack.c.b16 %v2897, %v2896
    %v3069 = vpack.c.b16 %v2899, %v2898
    %v3070 = vpack.c.b16 %v2901, %v2900
    %v3071 = vpack.c.b16 %v2903, %v2902
    %v3072 = vpack.c.b16 %v2905, %v2904
    %v3073 = vpack.c.b16 %v2907, %v2906
    %v3074 = vpack.c.b16 %v2909, %v2908
    %v3075 = vpack.c.b16 %v2911, %v2910
    %v3076 = vpack.c.b16 %v2913, %v2912
    %v3077 = vpack.c.b16 %v2915, %v2914
    %v3078 = vpack.c.b16 %v2917, %v2916
    %v3079 = vpack.c.b16 %v2919, %v2918
    %v3080 = vpack.c.b16 %v2921, %v2920
    %v3081 = vpack.c.b16 %v2923, %v2922
    %v3082 = vpack.c.b16 %v2925, %v2924
    %v3083 = vpack.c.b16 %v2927, %v2926
    %v3084 = vpack.c.b16 %v2929, %v2928
    %v3085 = vpack.c.b16 %v2931, %v2930
    %v3086 = vpack.c.b16 %v2933, %v2932
    %v3087 = vpack.c.b16 %v2935, %v2934
    %v3088 = vpack.c.b16 %v2937, %v2936
    %v3089 = vpack.c.b16 %v2939, %v2938
    %v3090 = vpack.c.b16 %v2941, %v2940
    %v3091 = vpack.c.b16 %v2943, %v2942
    %v3092 = vpack.c.b16 %v2945, %v2944
    %v3093 = vpack.c.b16 %v2947, %v2946
    %v3094 = vpack.c.b16 %v2949, %v2948
    %v3095 = vpack.c.b16 %v2951, %v2950
    %v3096 = vpack.c.b16 %v2953, %v2952
    %v3097 = vpack.c.b16 %v2955, %v2954
    %v3098 = vpack.c.b16 %v2957, %v2956
    %v3099 = vpack.c.b16 %v2959, %v2958
    %v3100 = vpack.c.b16 %v2961, %v2960
    %v3101 = vpack.c.b16 %v2963, %v2962
    %v3102 = vpack.c.b16 %v2965, %v2964
    %v3103 = vpack.c.b16 %v2967, %v2966
    %v3104 = vpack.c.b16 %v2969, %v2968
    %v3105 = vpack.c.b16 %v2971, %v2970
    %v3106 = vpack.c.b16 %v2973, %v2972
    %v3107 = vpack.c.b16 %v2975, %v2974
    %v3108 = vpack.c.b16 %v2977, %v2976
    %v3109 = vpack.c.b16 %v2979, %v2978
    %v3110 = vpack.c.b16 %v2981, %v2980
    %v3111 = vpack.c.b16 %v2983, %v2982
    %3240 = vmatprep.subr.bf16.mxu0 0
    %3241 = vmatpush1.bf16.msra.mxu0 %v2984
    %3242 = vmatprep.subr.bf16.mxu0 0
    %3243 = vmatpush1.bf16.msra.mxu0 %v2985
    %3244 = vmatprep.subr.bf16.mxu0 0
    %3245 = vmatpush1.bf16.msra.mxu0 %v2986
    %3246 = vmatprep.subr.bf16.mxu0 0
    %3247 = vmatpush1.bf16.msra.mxu0 %v2987
    %3248 = vmatprep.subr.bf16.mxu0 0
    %3249 = vmatpush1.bf16.msra.mxu0 %v2988
    %3250 = vmatprep.subr.bf16.mxu0 0
    %3251 = vmatpush1.bf16.msra.mxu0 %v2989
    %3252 = vmatprep.subr.bf16.mxu0 0
    %3253 = vmatpush1.bf16.msra.mxu0 %v2990
    %3254 = vmatprep.subr.bf16.mxu0 0
    %3255 = vmatpush1.bf16.msra.mxu0 %v2991
    %3256 = vmatprep.subr.bf16.mxu0 0
    %3257 = vmatpush1.bf16.msra.mxu0 %v2992
    %3258 = vmatprep.subr.bf16.mxu0 0
    %3259 = vmatpush1.bf16.msra.mxu0 %v2993
    %3260 = vmatprep.subr.bf16.mxu0 0
    %3261 = vmatpush1.bf16.msra.mxu0 %v2994
    %3262 = vmatprep.subr.bf16.mxu0 0
    %3263 = vmatpush1.bf16.msra.mxu0 %v2995
    %3264 = vmatprep.subr.bf16.mxu0 0
    %3265 = vmatpush1.bf16.msra.mxu0 %v2996
    %3266 = vmatprep.subr.bf16.mxu0 0
    %3267 = vmatpush1.bf16.msra.mxu0 %v2997
    %3268 = vmatprep.subr.bf16.mxu0 0
    %3269 = vmatpush1.bf16.msra.mxu0 %v2998
    %3270 = vmatprep.subr.bf16.mxu0 0
    %3271 = vmatpush1.bf16.msra.mxu0 %v2999
    %3272 = vmatprep.mubr.bf16.mxu0 %v2165
    %3273 = vmatmul.mubr.bf16.gmra.mrb[0].mxu0 %v2164
    %v3274 = vpop.f32.mrb[0].mxu0
    %v3275 = vadd.f32 %v2471, %v3274
    %v3276 = vpop.f32.mrb[0].mxu0
    %v3277 = vpop.f32.mrb[0].mxu0
    %v3278 = vadd.f32 %v2471, %v3277
    %v3279 = vpop.f32.mrb[0].mxu0
    %3280 = vmatprep.mubr.bf16.mxu0 %v2181
    %3281 = vmatmul.mubr.bf16.gmra.mrb[0].mxu0 %v2180
    %v3282 = vpop.f32.mrb[0].mxu0
    %v3283 = vadd.f32 %v2471, %v3282
    %v3284 = vpop.f32.mrb[0].mxu0
    %v3285 = vpop.f32.mrb[0].mxu0
    %v3286 = vadd.f32 %v2471, %v3285
    %v3287 = vpop.f32.mrb[0].mxu0
    %3288 = vmatprep.mubr.bf16.mxu0 %v2197
    %3289 = vmatmul.mubr.bf16.gmra.mrb[0].mxu0 %v2196
    %v3290 = vpop.f32.mrb[0].mxu0
    %v3291 = vadd.f32 %v2471, %v3290
    %v3292 = vpop.f32.mrb[0].mxu0
    %v3293 = vpop.f32.mrb[0].mxu0
    %v3294 = vadd.f32 %v2471, %v3293
    %v3295 = vpop.f32.mrb[0].mxu0
    %3296 = vdwg.mxu0
    %3297 = vmatprep.subr.bf16.mxu0 0
    %3298 = vmatpush1.bf16.msra.mxu0 %v3000
    %3299 = vmatprep.subr.bf16.mxu0 0
    %3300 = vmatpush1.bf16.msra.mxu0 %v3001
    %3301 = vmatprep.subr.bf16.mxu0 0
    %3302 = vmatpush1.bf16.msra.mxu0 %v3002
    %3303 = vmatprep.subr.bf16.mxu0 0
    %3304 = vmatpush1.bf16.msra.mxu0 %v3003
    %3305 = vmatprep.subr.bf16.mxu0 0
    %3306 = vmatpush1.bf16.msra.mxu0 %v3004
    %3307 = vmatprep.subr.bf16.mxu0 0
    %3308 = vmatpush1.bf16.msra.mxu0 %v3005
    %3309 = vmatprep.subr.bf16.mxu0 0
    %3310 = vmatpush1.bf16.msra.mxu0 %v3006
    %3311 = vmatprep.subr.bf16.mxu0 0
    %3312 = vmatpush1.bf16.msra.mxu0 %v3007
    %3313 = vmatprep.subr.bf16.mxu0 0
    %3314 = vmatpush1.bf16.msra.mxu0 %v3008
    %3315 = vmatprep.subr.bf16.mxu0 0
    %3316 = vmatpush1.bf16.msra.mxu0 %v3009
    %3317 = vmatprep.subr.bf16.mxu0 0
    %3318 = vmatpush1.bf16.msra.mxu0 %v3010
    %3319 = vmatprep.subr.bf16.mxu0 0
    %3320 = vmatpush1.bf16.msra.mxu0 %v3011
    %3321 = vmatprep.subr.bf16.mxu0 0
    %3322 = vmatpush1.bf16.msra.mxu0 %v3012
    %3323 = vmatprep.subr.bf16.mxu0 0
    %3324 = vmatpush1.bf16.msra.mxu0 %v3013
    %3325 = vmatprep.subr.bf16.mxu0 0
    %3326 = vmatpush1.bf16.msra.mxu0 %v3014
    %3327 = vmatprep.subr.bf16.mxu0 0
    %3328 = vmatpush1.bf16.msra.mxu0 %v3015
    %3329 = vmatprep.mubr.bf16.mxu0 %v2167
    %3330 = vmatmul.mubr.bf16.gmra.mrb[0].mxu0 %v2166
    %v3331 = vpop.f32.mrb[0].mxu0
    %v3332 = vadd.f32 %v3275, %v3331
    %v3333 = vpop.f32.mrb[0].mxu0
    %v3334 = vpop.f32.mrb[0].mxu0
    %v3335 = vadd.f32 %v3278, %v3334
    %v3336 = vpop.f32.mrb[0].mxu0
    %3337 = vmatprep.mubr.bf16.mxu0 %v2183
    %3338 = vmatmul.mubr.bf16.gmra.mrb[0].mxu0 %v2182
    %v3339 = vpop.f32.mrb[0].mxu0
    %v3340 = vadd.f32 %v3283, %v3339
    %v3341 = vpop.f32.mrb[0].mxu0
    %v3342 = vpop.f32.mrb[0].mxu0
    %v3343 = vadd.f32 %v3286, %v3342
    %v3344 = vpop.f32.mrb[0].mxu0
    %3345 = vmatprep.mubr.bf16.mxu0 %v2199
    %3346 = vmatmul.mubr.bf16.gmra.mrb[0].mxu0 %v2198
    %v3347 = vpop.f32.mrb[0].mxu0
    %v3348 = vadd.f32 %v3291, %v3347
    %v3349 = vpop.f32.mrb[0].mxu0
    %v3350 = vpop.f32.mrb[0].mxu0
    %v3351 = vadd.f32 %v3294, %v3350
    %v3352 = vpop.f32.mrb[0].mxu0
    %3353 = vdwg.mxu0
    %3354 = vmatprep.subr.bf16.mxu0 0
    %3355 = vmatpush1.bf16.msra.mxu0 %v3016
    %3356 = vmatprep.subr.bf16.mxu0 0
    %3357 = vmatpush1.bf16.msra.mxu0 %v3017
    %3358 = vmatprep.subr.bf16.mxu0 0
    %3359 = vmatpush1.bf16.msra.mxu0 %v3018
    %3360 = vmatprep.subr.bf16.mxu0 0
    %3361 = vmatpush1.bf16.msra.mxu0 %v3019
    %3362 = vmatprep.subr.bf16.mxu0 0
    %3363 = vmatpush1.bf16.msra.mxu0 %v3020
    %3364 = vmatprep.subr.bf16.mxu0 0
    %3365 = vmatpush1.bf16.msra.mxu0 %v3021
    %3366 = vmatprep.subr.bf16.mxu0 0
    %3367 = vmatpush1.bf16.msra.mxu0 %v3022
    %3368 = vmatprep.subr.bf16.mxu0 0
    %3369 = vmatpush1.bf16.msra.mxu0 %v3023
    %3370 = vmatprep.subr.bf16.mxu0 0
    %3371 = vmatpush1.bf16.msra.mxu0 %v3024
    %3372 = vmatprep.subr.bf16.mxu0 0
    %3373 = vmatpush1.bf16.msra.mxu0 %v3025
    %3374 = vmatprep.subr.bf16.mxu0 0
    %3375 = vmatpush1.bf16.msra.mxu0 %v3026
    %3376 = vmatprep.subr.bf16.mxu0 0
    %3377 = vmatpush1.bf16.msra.mxu0 %v3027
    %3378 = vmatprep.subr.bf16.mxu0 0
    %3379 = vmatpush1.bf16.msra.mxu0 %v3028
    %3380 = vmatprep.subr.bf16.mxu0 0
    %3381 = vmatpush1.bf16.msra.mxu0 %v3029
    %3382 = vmatprep.subr.bf16.mxu0 0
    %3383 = vmatpush1.bf16.msra.mxu0 %v3030
    %3384 = vmatprep.subr.bf16.mxu0 0
    %3385 = vmatpush1.bf16.msra.mxu0 %v3031
    %3386 = vmatprep.mubr.bf16.mxu0 %v2169
    %3387 = vmatmul.mubr.bf16.gmra.mrb[0].mxu0 %v2168
    %v3388 = vpop.f32.mrb[0].mxu0
    %v3389 = vadd.f32 %v3332, %v3388
    %v3390 = vpop.f32.mrb[0].mxu0
    %v3391 = vpop.f32.mrb[0].mxu0
    %v3392 = vadd.f32 %v3335, %v3391
    %v3393 = vpop.f32.mrb[0].mxu0
    %3394 = vmatprep.mubr.bf16.mxu0 %v2185
    %3395 = vmatmul.mubr.bf16.gmra.mrb[0].mxu0 %v2184
    %v3396 = vpop.f32.mrb[0].mxu0
    %v3397 = vadd.f32 %v3340, %v3396
    %v3398 = vpop.f32.mrb[0].mxu0
    %v3399 = vpop.f32.mrb[0].mxu0
    %v3400 = vadd.f32 %v3343, %v3399
    %v3401 = vpop.f32.mrb[0].mxu0
    %3402 = vmatprep.mubr.bf16.mxu0 %v2201
    %3403 = vmatmul.mubr.bf16.gmra.mrb[0].mxu0 %v2200
    %v3404 = vpop.f32.mrb[0].mxu0
    %v3405 = vadd.f32 %v3348, %v3404
    %v3406 = vpop.f32.mrb[0].mxu0
    %v3407 = vpop.f32.mrb[0].mxu0
    %v3408 = vadd.f32 %v3351, %v3407
    %v3409 = vpop.f32.mrb[0].mxu0
    %3410 = vdwg.mxu0
    %3411 = vmatprep.subr.bf16.mxu0 0
    %3412 = vmatpush1.bf16.msra.mxu0 %v3032
    %3413 = vmatprep.subr.bf16.mxu0 0
    %3414 = vmatpush1.bf16.msra.mxu0 %v3033
    %3415 = vmatprep.subr.bf16.mxu0 0
    %3416 = vmatpush1.bf16.msra.mxu0 %v3034
    %3417 = vmatprep.subr.bf16.mxu0 0
    %3418 = vmatpush1.bf16.msra.mxu0 %v3035
    %3419 = vmatprep.subr.bf16.mxu0 0
    %3420 = vmatpush1.bf16.msra.mxu0 %v3036
    %3421 = vmatprep.subr.bf16.mxu0 0
    %3422 = vmatpush1.bf16.msra.mxu0 %v3037
    %3423 = vmatprep.subr.bf16.mxu0 0
    %3424 = vmatpush1.bf16.msra.mxu0 %v3038
    %3425 = vmatprep.subr.bf16.mxu0 0
    %3426 = vmatpush1.bf16.msra.mxu0 %v3039
    %3427 = vmatprep.subr.bf16.mxu0 0
    %3428 = vmatpush1.bf16.msra.mxu0 %v3040
    %3429 = vmatprep.subr.bf16.mxu0 0
    %3430 = vmatpush1.bf16.msra.mxu0 %v3041
    %3431 = vmatprep.subr.bf16.mxu0 0
    %3432 = vmatpush1.bf16.msra.mxu0 %v3042
    %3433 = vmatprep.subr.bf16.mxu0 0
    %3434 = vmatpush1.bf16.msra.mxu0 %v3043
    %3435 = vmatprep.subr.bf16.mxu0 0
    %3436 = vmatpush1.bf16.msra.mxu0 %v3044
    %3437 = vmatprep.subr.bf16.mxu0 0
    %3438 = vmatpush1.bf16.msra.mxu0 %v3045
    %3439 = vmatprep.subr.bf16.mxu0 0
    %3440 = vmatpush1.bf16.msra.mxu0 %v3046
    %3441 = vmatprep.subr.bf16.mxu0 0
    %3442 = vmatpush1.bf16.msra.mxu0 %v3047
    %3443 = vmatprep.mubr.bf16.mxu0 %v2171
    %3444 = vmatmul.mubr.bf16.gmra.mrb[0].mxu0 %v2170
    %v3445 = vpop.f32.mrb[0].mxu0
    %v3446 = vadd.f32 %v3389, %v3445
    %v3447 = vpop.f32.mrb[0].mxu0
    %v3448 = vpop.f32.mrb[0].mxu0
    %v3449 = vadd.f32 %v3392, %v3448
    %v3450 = vpop.f32.mrb[0].mxu0
    %3451 = vmatprep.mubr.bf16.mxu0 %v2187
    %3452 = vmatmul.mubr.bf16.gmra.mrb[0].mxu0 %v2186
    %v3453 = vpop.f32.mrb[0].mxu0
    %v3454 = vadd.f32 %v3397, %v3453
    %v3455 = vpop.f32.mrb[0].mxu0
    %v3456 = vpop.f32.mrb[0].mxu0
    %v3457 = vadd.f32 %v3400, %v3456
    %v3458 = vpop.f32.mrb[0].mxu0
    %3459 = vmatprep.mubr.bf16.mxu0 %v2203
    %3460 = vmatmul.mubr.bf16.gmra.mrb[0].mxu0 %v2202
    %v3461 = vpop.f32.mrb[0].mxu0
    %v3462 = vadd.f32 %v3405, %v3461
    %v3463 = vpop.f32.mrb[0].mxu0
    %v3464 = vpop.f32.mrb[0].mxu0
    %v3465 = vadd.f32 %v3408, %v3464
    %v3466 = vpop.f32.mrb[0].mxu0
    %3467 = vdwg.mxu0
    %3468 = vmatprep.subr.bf16.mxu0 0
    %3469 = vmatpush1.bf16.msra.mxu0 %v3048
    %3470 = vmatprep.subr.bf16.mxu0 0
    %3471 = vmatpush1.bf16.msra.mxu0 %v3049
    %3472 = vmatprep.subr.bf16.mxu0 0
    %3473 = vmatpush1.bf16.msra.mxu0 %v3050
    %3474 = vmatprep.subr.bf16.mxu0 0
    %3475 = vmatpush1.bf16.msra.mxu0 %v3051
    %3476 = vmatprep.subr.bf16.mxu0 0
    %3477 = vmatpush1.bf16.msra.mxu0 %v3052
    %3478 = vmatprep.subr.bf16.mxu0 0
    %3479 = vmatpush1.bf16.msra.mxu0 %v3053
    %3480 = vmatprep.subr.bf16.mxu0 0
    %3481 = vmatpush1.bf16.msra.mxu0 %v3054
    %3482 = vmatprep.subr.bf16.mxu0 0
    %3483 = vmatpush1.bf16.msra.mxu0 %v3055
    %3484 = vmatprep.subr.bf16.mxu0 0
    %3485 = vmatpush1.bf16.msra.mxu0 %v3056
    %3486 = vmatprep.subr.bf16.mxu0 0
    %3487 = vmatpush1.bf16.msra.mxu0 %v3057
    %3488 = vmatprep.subr.bf16.mxu0 0
    %3489 = vmatpush1.bf16.msra.mxu0 %v3058
    %3490 = vmatprep.subr.bf16.mxu0 0
    %3491 = vmatpush1.bf16.msra.mxu0 %v3059
    %3492 = vmatprep.subr.bf16.mxu0 0
    %3493 = vmatpush1.bf16.msra.mxu0 %v3060
    %3494 = vmatprep.subr.bf16.mxu0 0
    %3495 = vmatpush1.bf16.msra.mxu0 %v3061
    %3496 = vmatprep.subr.bf16.mxu0 0
    %3497 = vmatpush1.bf16.msra.mxu0 %v3062
    %3498 = vmatprep.subr.bf16.mxu0 0
    %3499 = vmatpush1.bf16.msra.mxu0 %v3063
    %3500 = vmatprep.mubr.bf16.mxu0 %v2173
    %3501 = vmatmul.mubr.bf16.gmra.mrb[0].mxu0 %v2172
    %v3502 = vpop.f32.mrb[0].mxu0
    %v3503 = vadd.f32 %v3446, %v3502
    %v3504 = vpop.f32.mrb[0].mxu0
    %v3505 = vpop.f32.mrb[0].mxu0
    %v3506 = vadd.f32 %v3449, %v3505
    %v3507 = vpop.f32.mrb[0].mxu0
    %3508 = vmatprep.mubr.bf16.mxu0 %v2189
    %3509 = vmatmul.mubr.bf16.gmra.mrb[0].mxu0 %v2188
    %v3510 = vpop.f32.mrb[0].mxu0
    %v3511 = vadd.f32 %v3454, %v3510
    %v3512 = vpop.f32.mrb[0].mxu0
    %v3513 = vpop.f32.mrb[0].mxu0
    %v3514 = vadd.f32 %v3457, %v3513
    %v3515 = vpop.f32.mrb[0].mxu0
    %3516 = vmatprep.mubr.bf16.mxu0 %v2205
    %3517 = vmatmul.mubr.bf16.gmra.mrb[0].mxu0 %v2204
    %v3518 = vpop.f32.mrb[0].mxu0
    %v3519 = vadd.f32 %v3462, %v3518
    %v3520 = vpop.f32.mrb[0].mxu0
    %v3521 = vpop.f32.mrb[0].mxu0
    %v3522 = vadd.f32 %v3465, %v3521
    %v3523 = vpop.f32.mrb[0].mxu0
    %3524 = vdwg.mxu0
    %3525 = vmatprep.subr.bf16.mxu0 0
    %3526 = vmatpush1.bf16.msra.mxu0 %v3064
    %3527 = vmatprep.subr.bf16.mxu0 0
    %3528 = vmatpush1.bf16.msra.mxu0 %v3065
    %3529 = vmatprep.subr.bf16.mxu0 0
    %3530 = vmatpush1.bf16.msra.mxu0 %v3066
    %3531 = vmatprep.subr.bf16.mxu0 0
    %3532 = vmatpush1.bf16.msra.mxu0 %v3067
    %3533 = vmatprep.subr.bf16.mxu0 0
    %3534 = vmatpush1.bf16.msra.mxu0 %v3068
    %3535 = vmatprep.subr.bf16.mxu0 0
    %3536 = vmatpush1.bf16.msra.mxu0 %v3069
    %3537 = vmatprep.subr.bf16.mxu0 0
    %3538 = vmatpush1.bf16.msra.mxu0 %v3070
    %3539 = vmatprep.subr.bf16.mxu0 0
    %3540 = vmatpush1.bf16.msra.mxu0 %v3071
    %3541 = vmatprep.subr.bf16.mxu0 0
    %3542 = vmatpush1.bf16.msra.mxu0 %v3072
    %3543 = vmatprep.subr.bf16.mxu0 0
    %3544 = vmatpush1.bf16.msra.mxu0 %v3073
    %3545 = vmatprep.subr.bf16.mxu0 0
    %3546 = vmatpush1.bf16.msra.mxu0 %v3074
    %3547 = vmatprep.subr.bf16.mxu0 0
    %3548 = vmatpush1.bf16.msra.mxu0 %v3075
    %3549 = vmatprep.subr.bf16.mxu0 0
    %3550 = vmatpush1.bf16.msra.mxu0 %v3076
    %3551 = vmatprep.subr.bf16.mxu0 0
    %3552 = vmatpush1.bf16.msra.mxu0 %v3077
    %3553 = vmatprep.subr.bf16.mxu0 0
    %3554 = vmatpush1.bf16.msra.mxu0 %v3078
    %3555 = vmatprep.subr.bf16.mxu0 0
    %3556 = vmatpush1.bf16.msra.mxu0 %v3079
    %3557 = vmatprep.mubr.bf16.mxu0 %v2175
    %3558 = vmatmul.mubr.bf16.gmra.mrb[0].mxu0 %v2174
    %v3559 = vpop.f32.mrb[0].mxu0
    %v3560 = vadd.f32 %v3503, %v3559
    %v3561 = vpop.f32.mrb[0].mxu0
    %v3562 = vpop.f32.mrb[0].mxu0
    %v3563 = vadd.f32 %v3506, %v3562
    %v3564 = vpop.f32.mrb[0].mxu0
    %3565 = vmatprep.mubr.bf16.mxu0 %v2191
    %3566 = vmatmul.mubr.bf16.gmra.mrb[0].mxu0 %v2190
    %v3567 = vpop.f32.mrb[0].mxu0
    %v3568 = vadd.f32 %v3511, %v3567
    %v3569 = vpop.f32.mrb[0].mxu0
    %v3570 = vpop.f32.mrb[0].mxu0
    %v3571 = vadd.f32 %v3514, %v3570
    %v3572 = vpop.f32.mrb[0].mxu0
    %3573 = vmatprep.mubr.bf16.mxu0 %v2207
    %3574 = vmatmul.mubr.bf16.gmra.mrb[0].mxu0 %v2206
    %v3575 = vpop.f32.mrb[0].mxu0
    %v3576 = vadd.f32 %v3519, %v3575
    %v3577 = vpop.f32.mrb[0].mxu0
    %v3578 = vpop.f32.mrb[0].mxu0
    %v3579 = vadd.f32 %v3522, %v3578
    %v3580 = vpop.f32.mrb[0].mxu0
    %3581 = vdwg.mxu0
    %3582 = vmatprep.subr.bf16.mxu0 0
    %3583 = vmatpush1.bf16.msra.mxu0 %v3080
    %3584 = vmatprep.subr.bf16.mxu0 0
    %3585 = vmatpush1.bf16.msra.mxu0 %v3081
    %3586 = vmatprep.subr.bf16.mxu0 0
    %3587 = vmatpush1.bf16.msra.mxu0 %v3082
    %3588 = vmatprep.subr.bf16.mxu0 0
    %3589 = vmatpush1.bf16.msra.mxu0 %v3083
    %3590 = vmatprep.subr.bf16.mxu0 0
    %3591 = vmatpush1.bf16.msra.mxu0 %v3084
    %3592 = vmatprep.subr.bf16.mxu0 0
    %3593 = vmatpush1.bf16.msra.mxu0 %v3085
    %3594 = vmatprep.subr.bf16.mxu0 0
    %3595 = vmatpush1.bf16.msra.mxu0 %v3086
    %3596 = vmatprep.subr.bf16.mxu0 0
    %3597 = vmatpush1.bf16.msra.mxu0 %v3087
    %3598 = vmatprep.subr.bf16.mxu0 0
    %3599 = vmatpush1.bf16.msra.mxu0 %v3088
    %3600 = vmatprep.subr.bf16.mxu0 0
    %3601 = vmatpush1.bf16.msra.mxu0 %v3089
    %3602 = vmatprep.subr.bf16.mxu0 0
    %3603 = vmatpush1.bf16.msra.mxu0 %v3090
    %3604 = vmatprep.subr.bf16.mxu0 0
    %3605 = vmatpush1.bf16.msra.mxu0 %v3091
    %3606 = vmatprep.subr.bf16.mxu0 0
    %3607 = vmatpush1.bf16.msra.mxu0 %v3092
    %3608 = vmatprep.subr.bf16.mxu0 0
    %3609 = vmatpush1.bf16.msra.mxu0 %v3093
    %3610 = vmatprep.subr.bf16.mxu0 0
    %3611 = vmatpush1.bf16.msra.mxu0 %v3094
    %3612 = vmatprep.subr.bf16.mxu0 0
    %3613 = vmatpush1.bf16.msra.mxu0 %v3095
    %3614 = vmatprep.mubr.bf16.mxu0 %v2177
    %3615 = vmatmul.mubr.bf16.gmra.mrb[0].mxu0 %v2176
    %v3616 = vpop.f32.mrb[0].mxu0
    %v3617 = vadd.f32 %v3560, %v3616
    %v3618 = vpop.f32.mrb[0].mxu0
    %v3619 = vpop.f32.mrb[0].mxu0
    %v3620 = vadd.f32 %v3563, %v3619
    %v3621 = vpop.f32.mrb[0].mxu0
    %3622 = vmatprep.mubr.bf16.mxu0 %v2193
    %3623 = vmatmul.mubr.bf16.gmra.mrb[0].mxu0 %v2192
    %v3624 = vpop.f32.mrb[0].mxu0
    %v3625 = vadd.f32 %v3568, %v3624
    %v3626 = vpop.f32.mrb[0].mxu0
    %v3627 = vpop.f32.mrb[0].mxu0
    %v3628 = vadd.f32 %v3571, %v3627
    %v3629 = vpop.f32.mrb[0].mxu0
    %3630 = vmatprep.mubr.bf16.mxu0 %v2209
    %3631 = vmatmul.mubr.bf16.gmra.mrb[0].mxu0 %v2208
    %v3632 = vpop.f32.mrb[0].mxu0
    %v3633 = vadd.f32 %v3576, %v3632
    %v3634 = vpop.f32.mrb[0].mxu0
    %v3635 = vpop.f32.mrb[0].mxu0
    %v3636 = vadd.f32 %v3579, %v3635
    %v3637 = vpop.f32.mrb[0].mxu0
    %3638 = vdwg.mxu0
    %3639 = vmatprep.subr.bf16.mxu0 0
    %3640 = vmatpush1.bf16.msra.mxu0 %v3096
    %3641 = vmatprep.subr.bf16.mxu0 0
    %3642 = vmatpush1.bf16.msra.mxu0 %v3097
    %3643 = vmatprep.subr.bf16.mxu0 0
    %3644 = vmatpush1.bf16.msra.mxu0 %v3098
    %3645 = vmatprep.subr.bf16.mxu0 0
    %3646 = vmatpush1.bf16.msra.mxu0 %v3099
    %3647 = vmatprep.subr.bf16.mxu0 0
    %3648 = vmatpush1.bf16.msra.mxu0 %v3100
    %3649 = vmatprep.subr.bf16.mxu0 0
    %3650 = vmatpush1.bf16.msra.mxu0 %v3101
    %3651 = vmatprep.subr.bf16.mxu0 0
    %3652 = vmatpush1.bf16.msra.mxu0 %v3102
    %3653 = vmatprep.subr.bf16.mxu0 0
    %3654 = vmatpush1.bf16.msra.mxu0 %v3103
    %3655 = vmatprep.subr.bf16.mxu0 0
    %3656 = vmatpush1.bf16.msra.mxu0 %v3104
    %3657 = vmatprep.subr.bf16.mxu0 0
    %3658 = vmatpush1.bf16.msra.mxu0 %v3105
    %3659 = vmatprep.subr.bf16.mxu0 0
    %3660 = vmatpush1.bf16.msra.mxu0 %v3106
    %3661 = vmatprep.subr.bf16.mxu0 0
    %3662 = vmatpush1.bf16.msra.mxu0 %v3107
    %3663 = vmatprep.subr.bf16.mxu0 0
    %3664 = vmatpush1.bf16.msra.mxu0 %v3108
    %3665 = vmatprep.subr.bf16.mxu0 0
    %3666 = vmatpush1.bf16.msra.mxu0 %v3109
    %3667 = vmatprep.subr.bf16.mxu0 0
    %3668 = vmatpush1.bf16.msra.mxu0 %v3110
    %3669 = vmatprep.subr.bf16.mxu0 0
    %3670 = vmatpush1.bf16.msra.mxu0 %v3111
    %3671 = vmatprep.mubr.bf16.mxu0 %v2179
    %3672 = vmatmul.mubr.bf16.gmra.mrb[0].mxu0 %v2178
    %v3673 = vpop.f32.mrb[0].mxu0
    %v3674 = vadd.f32 %v3617, %v3673
    %v3675 = vpop.f32.mrb[0].mxu0
    %v3676 = vpop.f32.mrb[0].mxu0
    %v3677 = vadd.f32 %v3620, %v3676
    %v3678 = vpop.f32.mrb[0].mxu0
    %3679 = vmatprep.mubr.bf16.mxu0 %v2195
    %3680 = vmatmul.mubr.bf16.gmra.mrb[0].mxu0 %v2194
    %v3681 = vpop.f32.mrb[0].mxu0
    %v3682 = vadd.f32 %v3625, %v3681
    %v3683 = vpop.f32.mrb[0].mxu0
    %v3684 = vpop.f32.mrb[0].mxu0
    %v3685 = vadd.f32 %v3628, %v3684
    %v3686 = vpop.f32.mrb[0].mxu0
    %3687 = vmatprep.mubr.bf16.mxu0 %v2211
    %3688 = vmatmul.mubr.bf16.gmra.mrb[0].mxu0 %v2210
    %v3689 = vpop.f32.mrb[0].mxu0
    %v3690 = vadd.f32 %v3633, %v3689
    %v3691 = vpop.f32.mrb[0].mxu0
    %v3692 = vpop.f32.mrb[0].mxu0
    %v3693 = vadd.f32 %v3636, %v3692
    %v3694 = vpop.f32.mrb[0].mxu0
    %3695 = vdwg.mxu0
    %v3696 = vadd.f32 %v1270, %v3674
    %v3697 = vadd.f32 %v1271, %v3677
    %v3698 = vadd.f32 %v1272, %v3682
    %v3699 = vadd.f32 %v1273, %v3685
    %v3700 = vadd.f32 %v1274, %v3690
    %v3701 = vadd.f32 %v1275, %v3693
    %v3702 = vsel %vm65, %v3696, 0.0
    %3703 = vadd.xlane.f32.xlu0 %v3702
    %v3704 = vpop.xlane.xlu0 %3703
    %v3705 = vsel %vm65, %v3697, 0.0
    %3706 = vadd.xlane.f32.xlu0 %v3705
    %v3707 = vpop.xlane.xlu0 %3706
    %v3708 = vsel %vm65, %v3698, 0.0
    %3709 = vadd.xlane.f32.xlu0 %v3708
    %v3710 = vpop.xlane.xlu0 %3709
    %v3711 = vsel %vm65, %v3699, 0.0
    %3712 = vadd.xlane.f32.xlu0 %v3711
    %v3713 = vpop.xlane.xlu0 %3712
    %v3714 = vsel %vm65, %v3700, 0.0
    %3715 = vadd.xlane.f32.xlu0 %v3714
    %v3716 = vpop.xlane.xlu0 %3715
    %v3717 = vsel %vm65, %v3701, 0.0
    %3718 = vadd.xlane.f32.xlu0 %v3717
    %v3719 = vpop.xlane.xlu0 %3718
    %v3720 = vmul.f32 %v3704, %v1195
    %v3721 = vmul.f32 %v3707, %v1195
    %v3722 = vmul.f32 %v3710, %v1195
    %v3723 = vmul.f32 %v3713, %v1195
    %v3724 = vmul.f32 %v3716, %v1195
    %v3725 = vmul.f32 %v3719, %v1195
    %v3726 = vsub.f32 %v3696, %v3720
    %v3727 = vsub.f32 %v3697, %v3721
    %v3728 = vsub.f32 %v3698, %v3722
    %v3729 = vsub.f32 %v3699, %v3723
    %v3730 = vsub.f32 %v3700, %v3724
    %v3731 = vsub.f32 %v3701, %v3725
    %v3732 = vmul.f32 %v3726, %v3726
    %v3733 = vmul.f32 %v3727, %v3727
    %v3734 = vmul.f32 %v3728, %v3728
    %v3735 = vmul.f32 %v3729, %v3729
    %v3736 = vmul.f32 %v3730, %v3730
    %v3737 = vmul.f32 %v3731, %v3731
    %v3738 = vsel %vm65, %v3732, 0.0
    %3739 = vadd.xlane.f32.xlu0 %v3738
    %v3740 = vpop.xlane.xlu0 %3739
    %v3741 = vsel %vm65, %v3733, 0.0
    %3742 = vadd.xlane.f32.xlu0 %v3741
    %v3743 = vpop.xlane.xlu0 %3742
    %v3744 = vsel %vm65, %v3734, 0.0
    %3745 = vadd.xlane.f32.xlu0 %v3744
    %v3746 = vpop.xlane.xlu0 %3745
    %v3747 = vsel %vm65, %v3735, 0.0
    %3748 = vadd.xlane.f32.xlu0 %v3747
    %v3749 = vpop.xlane.xlu0 %3748
    %v3750 = vsel %vm65, %v3736, 0.0
    %3751 = vadd.xlane.f32.xlu0 %v3750
    %v3752 = vpop.xlane.xlu0 %3751
    %v3753 = vsel %vm65, %v3737, 0.0
    %3754 = vadd.xlane.f32.xlu0 %v3753
    %v3755 = vpop.xlane.xlu0 %3754
    %v3756 = vmul.f32 %v3740, %v1195
    %v3757 = vmul.f32 %v3743, %v1195
    %v3758 = vmul.f32 %v3746, %v1195
    %v3759 = vmul.f32 %v3749, %v1195
    %v3760 = vmul.f32 %v3752, %v1195
    %v3761 = vmul.f32 %v3755, %v1195
    %v3762 = vadd.f32 %v3756, 1e-05
    %v3763 = vadd.f32 %v3757, 1e-05
    %v3764 = vadd.f32 %v3758, 1e-05
    %v3765 = vadd.f32 %v3759, 1e-05
    %v3766 = vadd.f32 %v3760, 1e-05
    %v3767 = vadd.f32 %v3761, 1e-05
    %v3768 = vrsqrt.pop %v3762
    %v3769 = vrsqrt.pop %v3763
    %v3770 = vrsqrt.pop %v3764
    %v3771 = vrsqrt.pop %v3765
    %v3772 = vrsqrt.pop %v3766
    %v3773 = vrsqrt.pop %v3767
    %v3774 = vmul.f32 %v3726, %v3768
    %v3775 = vmul.f32 %v3727, %v3769
    %v3776 = vmul.f32 %v3728, %v3770
    %v3777 = vmul.f32 %v3729, %v3771
    %v3778 = vmul.f32 %v3730, %v3772
    %v3779 = vmul.f32 %v3731, %v3773
    %v3780 = vlaneseq
    %v3781 = vshrl.u32 %v3780, 7
    %v3782 = vsub.s32 0, %v3781
    %v3783 = vrot.slane %v44, %v3782
    %v3784 = vmul.f32 %v3774, %v3783
    %v3785 = vmul.f32 %v3775, %v3783
    %v3786 = vmul.f32 %v3776, %v3783
    %v3787 = vmul.f32 %v3777, %v3783
    %v3788 = vmul.f32 %v3778, %v3783
    %v3789 = vmul.f32 %v3779, %v3783
    %v3790 = vlaneseq
    %v3791 = vshrl.u32 %v3790, 7
    %v3792 = vsub.s32 0, %v3791
    %v3793 = vrot.slane %v45, %v3792
    %v3794 = vadd.f32 %v3784, %v3793
    %v3795 = vadd.f32 %v3785, %v3793
    %v3796 = vadd.f32 %v3786, %v3793
    %v3797 = vadd.f32 %v3787, %v3793
    %v3798 = vadd.f32 %v3788, %v3793
    %v3799 = vadd.f32 %v3789, %v3793
    %v3800 = vlaneseq
    %v3801 = vshrl.u32 %v3800, 7
    %v3802 = vsub.s32 0, %v3801
    %v3803 = vrot.slane %v46, %v3802
    %v3804 = vmul.f32 %v3794, %v3803
    %v3805 = vmul.f32 %v3795, %v3803
    %v3806 = vmul.f32 %v3796, %v3803
    %v3807 = vmul.f32 %v3797, %v3803
    %v3808 = vmul.f32 %v3798, %v3803
    %v3809 = vmul.f32 %v3799, %v3803
    %v3810 = vsel %vm65, %v3804, 0.0
    %3811 = vadd.xlane.f32.xlu0 %v3810
    %v3812 = vpop.xlane.xlu0 %3811
    %v3813 = vsel %vm65, %v3805, 0.0
    %3814 = vadd.xlane.f32.xlu0 %v3813
    %v3815 = vpop.xlane.xlu0 %3814
    %v3816 = vsel %vm65, %v3806, 0.0
    %3817 = vadd.xlane.f32.xlu0 %v3816
    %v3818 = vpop.xlane.xlu0 %3817
    %v3819 = vsel %vm65, %v3807, 0.0
    %3820 = vadd.xlane.f32.xlu0 %v3819
    %v3821 = vpop.xlane.xlu0 %3820
    %v3822 = vsel %vm65, %v3808, 0.0
    %3823 = vadd.xlane.f32.xlu0 %v3822
    %v3824 = vpop.xlane.xlu0 %3823
    %v3825 = vsel %vm65, %v3809, 0.0
    %3826 = vadd.xlane.f32.xlu0 %v3825
    %v3827 = vpop.xlane.xlu0 %3826
    %s3829 = vtos %v47
    %v3830 = vstv %s3829
    %v3832 = vadd.f32 %v3812, %v3830
    %v3833 = vadd.f32 %v3815, %v3830
    %v3834 = vadd.f32 %v3818, %v3830
    %v3835 = vadd.f32 %v3821, %v3830
    %v3836 = vadd.f32 %v3824, %v3830
    %v3837 = vadd.f32 %v3827, %v3830
    %v3844 = vlaneseq
    %v3845 = vand.u32 %v3844, 127
    %v3846 = vlaneseq
    %v3847 = vshrl.u32 %v3846, 7
    %v3848 = vsub.s32 %v3845, %v3847
    %v3849 = vrot.slane %v3832, %v3848
    %v3850 = vlaneseq
    %v3851 = vshrl.u32 %v3850, 7
    %v3852 = vsub.s32 %v3845, %v3851
    %v3853 = vrot.slane %v3833, %v3852
    %v3854 = vlaneseq
    %v3855 = vshrl.u32 %v3854, 7
    %v3856 = vsub.s32 %v3845, %v3855
    %v3857 = vrot.slane %v3834, %v3856
    %v3858 = vlaneseq
    %v3859 = vshrl.u32 %v3858, 7
    %v3860 = vsub.s32 %v3845, %v3859
    %v3861 = vrot.slane %v3835, %v3860
    %v3862 = vlaneseq
    %v3863 = vshrl.u32 %v3862, 7
    %v3864 = vsub.s32 %v3845, %v3863
    %v3865 = vrot.slane %v3836, %v3864
    %v3866 = vlaneseq
    %v3867 = vshrl.u32 %v3866, 7
    %v3868 = vsub.s32 %v3845, %v3867
    %v3869 = vrot.slane %v3837, %v3868
    %v3870 = vsel %vm1000, %v3853, %v3849
    %v3871 = vsel %vm1003, %v3857, %v3870
    %v3872 = vsel %vm1006, %v3861, %v3871
    %v3873 = vsel %vm1009, %v3865, %v3872
    %v3874 = vsel %vm1012, %v3869, %v3873
    %vm3876 = vcmask 62464
    %3877 = vst.msk [vmem:[#allocation2] sm:$0x3f] %vm3876, %v3874
    // Predicated region
    $region34: #{tpu_custom_call.1} parent=1 // pred_check
      _
    $region35: #{tpu_custom_call.1} parent=1 // pred_check_branch
      %3879 = sbr.rel (0) target = $region37
    $region36: #{tpu_custom_call.1} parent=1 // pred_region
      %s3881 = ssub.s32 128, 128
      %3882 = vsyncadd [#allocation3], %s3881
      %s3884 = sshll.u32 [#allocation2], 4
      %s3885 = int_to_ptr.vmem [resolvable:$true] %s3884
      %3887 = dma.vmem_to_hbm [thread:$0]  %s3885, 128, %s8, [#allocation3]
    $region37: #{tpu_custom_call.1} parent=1 // pred_fallthru
      _
    // Predicated region
    $region38: #{tpu_custom_call.1} parent=1 // pred_check
      _
    $region39: #{tpu_custom_call.1} parent=1 // pred_check_branch
      %3889 = sbr.rel (0) target = $region41
    $region40: #{tpu_custom_call.1} parent=1 // pred_region
      %3890 = dma.done [#allocation3], 128
    $region41: #{tpu_custom_call.1} parent=1 // pred_fallthru
      _
    %3891 = vsyncpa [#allocation3], 1

</llo_original>
